<compile_context>
chip_gen: v7x
topology: tpu7x:2x2x1
jax: 0.10.0
libtpu: 0.0.40
codegen_flags: <defaults>
</compile_context>

<pallas_src>
from functools import partial

import jax
import jax.numpy as jnp
from jax import lax
from jax.experimental import pallas as pl
from jax.experimental.pallas import tpu as pltpu


# ---------------------------------------------------------------------------
# Fused Block kernel: PatchMerging (space-to-depth matmul + folded BN) followed
# by `depth` MLPBlocks. Nb batch images per grid step; weights are shared
# across steps; the activation never leaves VMEM until the final store.
# ---------------------------------------------------------------------------
def _block_kernel(xp_ref, wm_ref, msc_ref, msh_ref,
                  wf_ref, sc1_ref, sh1_ref, w2_ref, ls_ref,
                  o_ref, xpad_ref,
                  *, depth, Nb, Ho, Wo, cc):
    HW = Ho * Wo
    M = Nb * HW
    kin = xp_ref.shape[-1]
    dim = wm_ref.shape[-1]
    bf16 = jnp.bfloat16

    # ---- PatchMerging: strided conv as one (M, p*p*din) x (p*p*din, dim)
    #      bf16 matmul (f32 accumulation) + folded BatchNorm ----
    y = jnp.dot(xp_ref[...].reshape(M, kin), wm_ref[...],
                preferred_element_type=jnp.float32)            # (M, dim) f32
    y = y * msc_ref[...] + msh_ref[...]

    # Zero the halo-padded conv scratch. Only the interior is rewritten per
    # depth step, so the 1-pixel halo stays zero. Done unconditionally: with
    # "parallel" grid sharding each TensorCore owns its own scratch.
    xpad_ref[...] = jnp.zeros_like(xpad_ref)

    taps = [(dh, dw) for dh in range(3) for dw in range(3)]
    for d in range(depth):                                     # static unroll (depth small)
        # TODO(synk): switch to lax.fori_loop with dynamic weight indexing for
        # real FasterNet stage depths (8-13) to bound code size / vreg pressure.

        # -- Partial_conv3 (split_cat): 3x3 same-conv on the first cc channels.
        xpad_ref[:, 1:Ho + 1, 1:Wo + 1, :] = (
            y[:, :cc].astype(bf16).reshape(Nb, Ho, Wo, cc))

        # im2col windows built in registers (no VMEM slab, no masked 32-lane
        # stores); the untouched channels are appended so the pconv and the
        # MLP's first 1x1 conv collapse into a SINGLE K = 9*cc + (dim-cc)
        # matmul against the pre-folded weight wf = [w3 @ w1[:cc]; w1[cc:]].
        wins = [xpad_ref[:, dh:dh + Ho, dw:dw + Wo, :].reshape(M, cc)
                for (dh, dw) in taps]
        col = jnp.concatenate(wins + [y[:, cc:].astype(bf16)], axis=1)

        # -- MLP: fused (pconv + fc1) matmul -> folded BN -> ReLU -> fc2 --
        h = jnp.dot(col, wf_ref[d], preferred_element_type=jnp.float32)
        h = jnp.maximum(h * sc1_ref[d] + sh1_ref[d], 0.0)      # (M, hid) f32
        out = jnp.dot(h.astype(bf16), w2_ref[d],
                      preferred_element_type=jnp.float32)      # (M, dim) f32

        # -- residual + layer_scale (DropPath(0) = identity), all in f32 --
        y = y + ls_ref[d] * out

    # Lane-dense store: last dim = dim (multiple of 128).
    o_ref[...] = y.reshape(Nb, HW, dim).astype(o_ref.dtype)


def _pick_nb(N, HW):
    """Images per grid step: aim for >=256 matmul rows (MXU depth on v6e/v7x)
    while keeping >=2 grid steps when the batch allows it (v7x has 2 TCs)."""
    nb = max(1, min(N, -(-256 // HW)))
    while N % nb or (nb > 1 and N // nb < 2):
        nb -= 1
    return nb


# ---------------------------------------------------------------------------
# Wrapper: NCHW in / NCHW out (PyTorch convention).
# ---------------------------------------------------------------------------
def block_forward(x_nchw, P, Nb=None):
    N, din, H, W = x_nchw.shape
    p, dim, cc, depth = P['p'], P['dim'], P['cc'], P['depth']
    Ho, Wo = H // p, W // p
    HW = Ho * Wo
    kin = p * p * din
    hid = P['wf_all'].shape[-1]
    Kf = 9 * cc + (dim - cc)
    if Nb is None:
        Nb = _pick_nb(N, HW)

    # Cast to bf16 BEFORE the layout shuffle: halves the wrapper-side HBM
    # traffic and the kernel-input DMA. Space-to-depth for the strided merge
    # conv is a single cheap XLA pass.
    # TODO(synk): express the space-to-depth via the input index_map so the
    # merged slab is never materialized in HBM.
    xb = x_nchw.astype(jnp.bfloat16)
    xp = (jnp.transpose(xb, (0, 2, 3, 1))
          .reshape(N, Ho, p, Wo, p, din)
          .transpose(0, 1, 3, 2, 4, 5)
          .reshape(N, HW, kin))

    kernel = partial(_block_kernel, depth=depth, Nb=Nb, Ho=Ho, Wo=Wo, cc=cc)

    y = pl.pallas_call(
        kernel,
        out_shape=jax.ShapeDtypeStruct((N, HW, dim), jnp.float32),
        grid=(N // Nb,),
        in_specs=[
            pl.BlockSpec((Nb, HW, kin), lambda n: (n, 0, 0)),       # merged input
            pl.BlockSpec((kin, dim), lambda n: (0, 0)),             # merge W (bf16)
            pl.BlockSpec((1, dim), lambda n: (0, 0)),               # merge BN scale
            pl.BlockSpec((1, dim), lambda n: (0, 0)),               # merge BN shift
            pl.BlockSpec((depth, Kf, hid), lambda n: (0, 0, 0)),    # fused pconv+fc1 W
            pl.BlockSpec((depth, 1, hid), lambda n: (0, 0, 0)),     # fc1 BN scale
            pl.BlockSpec((depth, 1, hid), lambda n: (0, 0, 0)),     # fc1 BN shift
            pl.BlockSpec((depth, hid, dim), lambda n: (0, 0, 0)),   # fc2 W
            pl.BlockSpec((depth, 1, dim), lambda n: (0, 0, 0)),     # layer_scale
        ],
        out_specs=pl.BlockSpec((Nb, HW, dim), lambda n: (n, 0, 0)),
        scratch_shapes=[
            pltpu.VMEM((Nb, Ho + 2, Wo + 2, cc), jnp.bfloat16),     # halo-padded chans
        ],
        compiler_params=pltpu.CompilerParams(
            dimension_semantics=("parallel",)),
    )(xp, P['merge_w_mat'], P['merge_sc2'], P['merge_sh2'],
      P['wf_all'], P['sc1_all'], P['sh1_all'], P['w2_all'], P['ls_all'])

    return jnp.transpose(y.reshape(N, Ho, Wo, dim), (0, 3, 1, 2))   # -> NCHW


# ---------------------------------------------------------------------------
# Parameter init (deterministic, synthetic) + layout conversion for the kernel
# ---------------------------------------------------------------------------
def _bn_fold(gamma, beta, mean, var, eps=1e-5):
    sc = gamma / jnp.sqrt(var + eps)
    sh = beta - mean * sc
    return sc, sh


def init_block_params(key, dim, depth, n_div, mlp_ratio, merge_size,
                      layer_scale_init_value):
    din = dim // 2
    cc = dim // n_div
    hid = int(dim * mlp_ratio)
    p = merge_size
    ks = iter(jax.random.split(key, 8 + 8 * depth))
    nrm = lambda shape, fan_in: (jax.random.normal(next(ks), shape, jnp.float32)
                                 / jnp.sqrt(fan_in))

    P = {'p': p, 'cc': cc, 'dim': dim, 'depth': depth}

    # PatchMerging: Conv2d(din -> dim, k=p, s=p, bias=False) + BatchNorm2d(dim)
    merge_w = nrm((dim, din, p, p), din * p * p)                       # OIHW
    g = 1.0 + 0.1 * jax.random.normal(next(ks), (dim,), jnp.float32)
    b = 0.1 * jax.random.normal(next(ks), (dim,), jnp.float32)
    m = 0.1 * jax.random.normal(next(ks), (dim,), jnp.float32)
    v = jax.random.uniform(next(ks), (dim,), jnp.float32, minval=0.5, maxval=1.5)
    sc, sh = _bn_fold(g, b, m, v)
    P['merge_w'], P['merge_sc'], P['merge_sh'] = merge_w, sc, sh       # reference
    P['merge_w_mat'] = (merge_w.transpose(2, 3, 1, 0)                  # (ph,pw,ci)->o
                        .reshape(p * p * din, dim).astype(jnp.bfloat16))
    P['merge_sc2'] = sc.reshape(1, dim)
    P['merge_sh2'] = sh.reshape(1, dim)

    blocks_ref = []
    wf_all, w2_all, sc1_all, sh1_all, ls_all = [], [], [], [], []
    for _ in range(depth):
        w3 = nrm((cc, cc, 3, 3), cc * 9)                               # OIHW
        w1 = nrm((hid, dim), dim)                                      # 1x1 (out,in)
        g1 = 1.0 + 0.1 * jax.random.normal(next(ks), (hid,), jnp.float32)
        b1 = 0.1 * jax.random.normal(next(ks), (hid,), jnp.float32)
        m1 = 0.1 * jax.random.normal(next(ks), (hid,), jnp.float32)
        v1 = jax.random.uniform(next(ks), (hid,), jnp.float32, minval=0.5, maxval=1.5)
        w2 = nrm((dim, hid), hid)                                      # 1x1 (out,in)
        ls = layer_scale_init_value * jnp.ones((dim,), jnp.float32)
        sc1, sh1 = _bn_fold(g1, b1, m1, v1)

        blocks_ref.append({'w3': w3, 'w1_oi': w1, 'w2_oi': w2,
                           'sc1': sc1, 'sh1': sh1, 'ls': ls})

        w3_mat = w3.transpose(2, 3, 1, 0).reshape(9 * cc, cc)          # (dh,dw,ci)->o
        w1_t = w1.T                                                    # (dim, hid)
        # Pre-fold the pconv weight into fc1 for the conv'd channels and append
        # the untouched-channel rows: ONE K = 9*cc + (dim-cc) matmul per block.
        wf = jnp.concatenate([w3_mat @ w1_t[:cc, :], w1_t[cc:, :]], axis=0)
        wf_all.append(wf)
        w2_all.append(w2.T)                                            # (hid, dim)
        sc1_all.append(sc1.reshape(1, hid))
        sh1_all.append(sh1.reshape(1, hid))
        ls_all.append(ls.reshape(1, dim))

    P['blocks_ref'] = blocks_ref
    P['wf_all'] = jnp.stack(wf_all).astype(jnp.bfloat16)
    P['w2_all'] = jnp.stack(w2_all).astype(jnp.bfloat16)
    P['sc1_all'] = jnp.stack(sc1_all)
    P['sh1_all'] = jnp.stack(sh1_all)
    P['ls_all'] = jnp.stack(ls_all)
    return P


# ---------------------------------------------------------------------------
# Pure-JAX (XLA, f32 HIGHEST) reference with PyTorch NCHW semantics
# ---------------------------------------------------------------------------
def reference_forward(x_nchw, P):
    dn = ('NCHW', 'OIHW', 'NCHW')
    hp = lax.Precision.HIGHEST
    y = lax.conv_general_dilated(x_nchw, P['merge_w'], (P['p'], P['p']), 'VALID',
                                 dimension_numbers=dn, precision=hp)
    y = y * P['merge_sc'][None, :, None, None] + P['merge_sh'][None, :, None, None]
    cc = P['cc']
    for blk in P['blocks_ref']:
        shortcut = y
        x1 = lax.conv_general_dilated(y[:, :cc], blk['w3'], (1, 1), ((1, 1), (1, 1)),
                                      dimension_numbers=dn, precision=hp)
        xm = jnp.concatenate([x1, y[:, cc:]], axis=1)
        h = jnp.einsum('nchw,dc->ndhw', xm, blk['w1_oi'], precision=hp)
        h = jnp.maximum(h * blk['sc1'][None, :, None, None]
                        + blk['sh1'][None, :, None, None], 0.0)
        o = jnp.einsum('ndhw,cd->nchw', h, blk['w2_oi'], precision=hp)
        y = shortcut + blk['ls'][None, :, None, None] * o
    return y


if __name__ == "__main__":
    key = jax.random.PRNGKey(0)
    kx, kp = jax.random.split(key)

    # Block(dim=128, depth=2, n_div=4, mlp_ratio=2.0, drop_path=[0.,0.],
    #       layer_scale_init_value=0.1, use_merge=True, merge_size=2)
    # dim=128 is a real FasterNet-S stage width and keeps the channel axis
    # lane-dense; batch=4 lets the kernel use Nb=2 images per grid step
    # (M=128 matmul rows) while still giving v7x's two TensorCores a grid
    # step each.
    N, dim, depth, n_div, mlp_ratio, merge_size = 4, 128, 2, 4, 2.0, 2
    H = W = 16

    # Block input has dim // 2 channels (PatchMerging doubles them), NCHW.
    x = jax.random.normal(kx, (N, dim // 2, H, W), jnp.float32)
    P = init_block_params(kp, dim, depth, n_div, mlp_ratio, merge_size,
                          layer_scale_init_value=0.1)

    fwd = jax.jit(lambda xx: block_forward(xx, P))
    out = jax.block_until_ready(fwd(x))
    assert out.shape == (N, dim, H // merge_size, W // merge_size), out.shape

    ref = reference_forward(x, P)
    # bf16 MXU inputs (f32 accumulation) vs. HIGHEST-precision f32 reference.
    err = float(jnp.max(jnp.abs(out - ref)))
    assert err < 5e-2, f"max abs error too large: {err}"
    print("KERNEL_OK")
</pallas_src>

<mosaic_0001>
module attributes {stable_mosaic.version = 11 : i64} {
  func.func @_block_kernel(%arg0: i32, %arg1: memref<2x64x256xbf16, #tpu.memory_space<vmem>>, %arg2: memref<256x128xbf16, #tpu.memory_space<vmem>>, %arg3: memref<1x128xf32, #tpu.memory_space<vmem>>, %arg4: memref<1x128xf32, #tpu.memory_space<vmem>>, %arg5: memref<2x384x256xbf16, #tpu.memory_space<vmem>>, %arg6: memref<2x1x256xf32, #tpu.memory_space<vmem>>, %arg7: memref<2x1x256xf32, #tpu.memory_space<vmem>>, %arg8: memref<2x256x128xbf16, #tpu.memory_space<vmem>>, %arg9: memref<2x1x128xf32, #tpu.memory_space<vmem>>, %arg10: memref<2x64x128xf32, #tpu.memory_space<vmem>>, %arg11: memref<2x10x10x32xbf16, #tpu.memory_space<vmem>>) attributes {dimension_semantics = [#tpu.dimension_semantics<parallel>], iteration_bounds = array<i64: 2>, scalar_prefetch = 0 : i64, scratch_operands = 1 : i64, tpu.core_type = #tpu.core_type<tc>, window_params = [{transform_indices = @transform_0, window_bounds = array<i64: 2, 64, 256>}, {pipeline_mode = #tpu.pipeline_mode<synchronous>, transform_indices = @transform_1, window_bounds = array<i64: 256, 128>}, {pipeline_mode = #tpu.pipeline_mode<synchronous>, transform_indices = @transform_2, window_bounds = array<i64: 1, 128>}, {pipeline_mode = #tpu.pipeline_mode<synchronous>, transform_indices = @transform_3, window_bounds = array<i64: 1, 128>}, {pipeline_mode = #tpu.pipeline_mode<synchronous>, transform_indices = @transform_4, window_bounds = array<i64: 2, 384, 256>}, {pipeline_mode = #tpu.pipeline_mode<synchronous>, transform_indices = @transform_5, window_bounds = array<i64: 2, 1, 256>}, {pipeline_mode = #tpu.pipeline_mode<synchronous>, transform_indices = @transform_6, window_bounds = array<i64: 2, 1, 256>}, {pipeline_mode = #tpu.pipeline_mode<synchronous>, transform_indices = @transform_7, window_bounds = array<i64: 2, 256, 128>}, {pipeline_mode = #tpu.pipeline_mode<synchronous>, transform_indices = @transform_8, window_bounds = array<i64: 2, 1, 128>}, {transform_indices = @transform_9, window_bounds = array<i64: 2, 64, 128>}]} {
    %c0 = arith.constant 0 : index
    %c0_0 = arith.constant 0 : index
    %c0_1 = arith.constant 0 : index
    %0 = vector.load %arg1[%c0, %c0_0, %c0_1] : memref<2x64x256xbf16, #tpu.memory_space<vmem>>, vector<2x64x256xbf16>
    %1 = vector.shape_cast %0 : vector<2x64x256xbf16> to vector<128x256xbf16>
    %c0_2 = arith.constant 0 : index
    %c0_3 = arith.constant 0 : index
    %2 = vector.load %arg2[%c0_2, %c0_3] : memref<256x128xbf16, #tpu.memory_space<vmem>>, vector<256x128xbf16>
    %cst = arith.constant dense<0.000000e+00> : vector<128x128xf32>
    %3 = tpu.matmul %1, %2, %cst {dimension_numbers = #tpu.dot_dimension_numbers<[1], [0], [0], [1], [0, 0, 1, 1], [], []>} : vector<128x256xbf16>, vector<256x128xbf16>, vector<128x128xf32> -> vector<128x128xf32>
    %c0_4 = arith.constant 0 : index
    %c0_5 = arith.constant 0 : index
    %4 = vector.load %arg3[%c0_4, %c0_5] : memref<1x128xf32, #tpu.memory_space<vmem>>, vector<1x128xf32>
    %5 = vector.broadcast %4 : vector<1x128xf32> to vector<128x128xf32>
    %6 = arith.mulf %3, %5 : vector<128x128xf32>
    %c0_6 = arith.constant 0 : index
    %c0_7 = arith.constant 0 : index
    %7 = vector.load %arg4[%c0_6, %c0_7] : memref<1x128xf32, #tpu.memory_space<vmem>>, vector<1x128xf32>
    %8 = vector.broadcast %7 : vector<1x128xf32> to vector<128x128xf32>
    %9 = arith.addf %6, %8 : vector<128x128xf32>
    %cst_8 = arith.constant 0.000000e+00 : bf16
    %10 = vector.broadcast %cst_8 : bf16 to vector<2x10x10x32xbf16>
    %c0_9 = arith.constant 0 : index
    %c0_10 = arith.constant 0 : index
    %c0_11 = arith.constant 0 : index
    %c0_12 = arith.constant 0 : index
    %11 = vector.load %arg11[%c0_9, %c0_10, %c0_11, %c0_12] : memref<2x10x10x32xbf16, #tpu.memory_space<vmem>>, vector<2x10x10x32xbf16>
    tpu.vector_store %arg11[%c0_9, %c0_10, %c0_11, %c0_12], %10 {strides = array<i32>} : memref<2x10x10x32xbf16, #tpu.memory_space<vmem>>, vector<2x10x10x32xbf16>,
    %12 = vector.extract_strided_slice %9 {offsets = [0, 0], sizes = [128, 32], strides = [1, 1]} : vector<128x128xf32> to vector<128x32xf32>
    %13 = arith.truncf %12 : vector<128x32xf32> to vector<128x32xbf16>
    %14 = vector.shape_cast %13 : vector<128x32xbf16> to vector<2x8x8x32xbf16>
    %c0_13 = arith.constant 0 : index
    %c1 = arith.constant 1 : index
    %c1_14 = arith.constant 1 : index
    %c0_15 = arith.constant 0 : index
    %15 = vector.load %arg11[%c0_13, %c1, %c1_14, %c0_15] : memref<2x10x10x32xbf16, #tpu.memory_space<vmem>>, vector<2x8x8x32xbf16>
    tpu.vector_store %arg11[%c0_13, %c1, %c1_14, %c0_15], %14 {strides = array<i32>} : memref<2x10x10x32xbf16, #tpu.memory_space<vmem>>, vector<2x8x8x32xbf16>,
    %c0_16 = arith.constant 0 : index
    %c0_17 = arith.constant 0 : index
    %c0_18 = arith.constant 0 : index
    %c0_19 = arith.constant 0 : index
    %16 = vector.load %arg11[%c0_16, %c0_17, %c0_18, %c0_19] : memref<2x10x10x32xbf16, #tpu.memory_space<vmem>>, vector<2x8x8x32xbf16>
    %17 = vector.shape_cast %16 : vector<2x8x8x32xbf16> to vector<128x32xbf16>
    %c0_20 = arith.constant 0 : index
    %c0_21 = arith.constant 0 : index
    %c1_22 = arith.constant 1 : index
    %c0_23 = arith.constant 0 : index
    %18 = vector.load %arg11[%c0_20, %c0_21, %c1_22, %c0_23] : memref<2x10x10x32xbf16, #tpu.memory_space<vmem>>, vector<2x8x8x32xbf16>
    %19 = vector.shape_cast %18 : vector<2x8x8x32xbf16> to vector<128x32xbf16>
    %c0_24 = arith.constant 0 : index
    %c0_25 = arith.constant 0 : index
    %c2 = arith.constant 2 : index
    %c0_26 = arith.constant 0 : index
    %20 = vector.load %arg11[%c0_24, %c0_25, %c2, %c0_26] : memref<2x10x10x32xbf16, #tpu.memory_space<vmem>>, vector<2x8x8x32xbf16>
    %21 = vector.shape_cast %20 : vector<2x8x8x32xbf16> to vector<128x32xbf16>
    %c0_27 = arith.constant 0 : index
    %c1_28 = arith.constant 1 : index
    %c0_29 = arith.constant 0 : index
    %c0_30 = arith.constant 0 : index
    %22 = vector.load %arg11[%c0_27, %c1_28, %c0_29, %c0_30] : memref<2x10x10x32xbf16, #tpu.memory_space<vmem>>, vector<2x8x8x32xbf16>
    %23 = vector.shape_cast %22 : vector<2x8x8x32xbf16> to vector<128x32xbf16>
    %c0_31 = arith.constant 0 : index
    %c1_32 = arith.constant 1 : index
    %c1_33 = arith.constant 1 : index
    %c0_34 = arith.constant 0 : index
    %24 = vector.load %arg11[%c0_31, %c1_32, %c1_33, %c0_34] : memref<2x10x10x32xbf16, #tpu.memory_space<vmem>>, vector<2x8x8x32xbf16>
    %25 = vector.shape_cast %24 : vector<2x8x8x32xbf16> to vector<128x32xbf16>
    %c0_35 = arith.constant 0 : index
    %c1_36 = arith.constant 1 : index
    %c2_37 = arith.constant 2 : index
    %c0_38 = arith.constant 0 : index
    %26 = vector.load %arg11[%c0_35, %c1_36, %c2_37, %c0_38] : memref<2x10x10x32xbf16, #tpu.memory_space<vmem>>, vector<2x8x8x32xbf16>
    %27 = vector.shape_cast %26 : vector<2x8x8x32xbf16> to vector<128x32xbf16>
    %c0_39 = arith.constant 0 : index
    %c2_40 = arith.constant 2 : index
    %c0_41 = arith.constant 0 : index
    %c0_42 = arith.constant 0 : index
    %28 = vector.load %arg11[%c0_39, %c2_40, %c0_41, %c0_42] : memref<2x10x10x32xbf16, #tpu.memory_space<vmem>>, vector<2x8x8x32xbf16>
    %29 = vector.shape_cast %28 : vector<2x8x8x32xbf16> to vector<128x32xbf16>
    %c0_43 = arith.constant 0 : index
    %c2_44 = arith.constant 2 : index
    %c1_45 = arith.constant 1 : index
    %c0_46 = arith.constant 0 : index
    %30 = vector.load %arg11[%c0_43, %c2_44, %c1_45, %c0_46] : memref<2x10x10x32xbf16, #tpu.memory_space<vmem>>, vector<2x8x8x32xbf16>
    %31 = vector.shape_cast %30 : vector<2x8x8x32xbf16> to vector<128x32xbf16>
    %c0_47 = arith.constant 0 : index
    %c2_48 = arith.constant 2 : index
    %c2_49 = arith.constant 2 : index
    %c0_50 = arith.constant 0 : index
    %32 = vector.load %arg11[%c0_47, %c2_48, %c2_49, %c0_50] : memref<2x10x10x32xbf16, #tpu.memory_space<vmem>>, vector<2x8x8x32xbf16>
    %33 = vector.shape_cast %32 : vector<2x8x8x32xbf16> to vector<128x32xbf16>
    %34 = vector.extract_strided_slice %9 {offsets = [0, 32], sizes = [128, 96], strides = [1, 1]} : vector<128x128xf32> to vector<128x96xf32>
    %35 = arith.truncf %34 : vector<128x96xf32> to vector<128x96xbf16>
    %36 = tpu.concatenate %17, %19, %21, %23, %25, %27, %29, %31, %33, %35 in 1 : vector<128x32xbf16>, vector<128x32xbf16>, vector<128x32xbf16>, vector<128x32xbf16>, vector<128x32xbf16>, vector<128x32xbf16>, vector<128x32xbf16>, vector<128x32xbf16>, vector<128x32xbf16>, vector<128x96xbf16> -> vector<128x384xbf16>
    %c0_51 = arith.constant 0 : index
    %c0_52 = arith.constant 0 : index
    %c0_53 = arith.constant 0 : index
    %37 = vector.load %arg5[%c0_51, %c0_52, %c0_53] : memref<2x384x256xbf16, #tpu.memory_space<vmem>>, vector<1x384x256xbf16>
    %38 = vector.shape_cast %37 : vector<1x384x256xbf16> to vector<384x256xbf16>
    %cst_54 = arith.constant dense<0.000000e+00> : vector<128x256xf32>
    %39 = tpu.matmul %36, %38, %cst_54 {dimension_numbers = #tpu.dot_dimension_numbers<[1], [0], [0], [1], [0, 0, 1, 1], [], []>} : vector<128x384xbf16>, vector<384x256xbf16>, vector<128x256xf32> -> vector<128x256xf32>
    %c0_55 = arith.constant 0 : index
    %c0_56 = arith.constant 0 : index
    %c0_57 = arith.constant 0 : index
    %40 = vector.load %arg6[%c0_55, %c0_56, %c0_57] : memref<2x1x256xf32, #tpu.memory_space<vmem>>, vector<1x1x256xf32>
    %41 = vector.shape_cast %40 : vector<1x1x256xf32> to vector<1x256xf32>
    %42 = vector.broadcast %41 : vector<1x256xf32> to vector<128x256xf32>
    %43 = arith.mulf %39, %42 : vector<128x256xf32>
    %c0_58 = arith.constant 0 : index
    %c0_59 = arith.constant 0 : index
    %c0_60 = arith.constant 0 : index
    %44 = vector.load %arg7[%c0_58, %c0_59, %c0_60] : memref<2x1x256xf32, #tpu.memory_space<vmem>>, vector<1x1x256xf32>
    %45 = vector.shape_cast %44 : vector<1x1x256xf32> to vector<1x256xf32>
    %46 = vector.broadcast %45 : vector<1x256xf32> to vector<128x256xf32>
    %47 = arith.addf %43, %46 : vector<128x256xf32>
    %cst_61 = arith.constant 0.000000e+00 : f32
    %48 = vector.broadcast %cst_61 : f32 to vector<128x256xf32>
    %49 = arith.maximumf %47, %48 : vector<128x256xf32>
    %50 = arith.truncf %49 : vector<128x256xf32> to vector<128x256xbf16>
    %c0_62 = arith.constant 0 : index
    %c0_63 = arith.constant 0 : index
    %c0_64 = arith.constant 0 : index
    %51 = vector.load %arg8[%c0_62, %c0_63, %c0_64] : memref<2x256x128xbf16, #tpu.memory_space<vmem>>, vector<1x256x128xbf16>
    %52 = vector.shape_cast %51 : vector<1x256x128xbf16> to vector<256x128xbf16>
    %cst_65 = arith.constant dense<0.000000e+00> : vector<128x128xf32>
    %53 = tpu.matmul %50, %52, %cst_65 {dimension_numbers = #tpu.dot_dimension_numbers<[1], [0], [0], [1], [0, 0, 1, 1], [], []>} : vector<128x256xbf16>, vector<256x128xbf16>, vector<128x128xf32> -> vector<128x128xf32>
    %c0_66 = arith.constant 0 : index
    %c0_67 = arith.constant 0 : index
    %c0_68 = arith.constant 0 : index
    %54 = vector.load %arg9[%c0_66, %c0_67, %c0_68] : memref<2x1x128xf32, #tpu.memory_space<vmem>>, vector<1x1x128xf32>
    %55 = vector.shape_cast %54 : vector<1x1x128xf32> to vector<1x128xf32>
    %56 = vector.broadcast %55 : vector<1x128xf32> to vector<128x128xf32>
    %57 = arith.mulf %56, %53 : vector<128x128xf32>
    %58 = arith.addf %9, %57 : vector<128x128xf32>
    %59 = vector.extract_strided_slice %58 {offsets = [0, 0], sizes = [128, 32], strides = [1, 1]} : vector<128x128xf32> to vector<128x32xf32>
    %60 = arith.truncf %59 : vector<128x32xf32> to vector<128x32xbf16>
    %61 = vector.shape_cast %60 : vector<128x32xbf16> to vector<2x8x8x32xbf16>
    %c0_69 = arith.constant 0 : index
    %c1_70 = arith.constant 1 : index
    %c1_71 = arith.constant 1 : index
    %c0_72 = arith.constant 0 : index
    %62 = vector.load %arg11[%c0_69, %c1_70, %c1_71, %c0_72] : memref<2x10x10x32xbf16, #tpu.memory_space<vmem>>, vector<2x8x8x32xbf16>
    tpu.vector_store %arg11[%c0_69, %c1_70, %c1_71, %c0_72], %61 {strides = array<i32>} : memref<2x10x10x32xbf16, #tpu.memory_space<vmem>>, vector<2x8x8x32xbf16>,
    %c0_73 = arith.constant 0 : index
    %c0_74 = arith.constant 0 : index
    %c0_75 = arith.constant 0 : index
    %c0_76 = arith.constant 0 : index
    %63 = vector.load %arg11[%c0_73, %c0_74, %c0_75, %c0_76] : memref<2x10x10x32xbf16, #tpu.memory_space<vmem>>, vector<2x8x8x32xbf16>
    %64 = vector.shape_cast %63 : vector<2x8x8x32xbf16> to vector<128x32xbf16>
    %c0_77 = arith.constant 0 : index
    %c0_78 = arith.constant 0 : index
    %c1_79 = arith.constant 1 : index
    %c0_80 = arith.constant 0 : index
    %65 = vector.load %arg11[%c0_77, %c0_78, %c1_79, %c0_80] : memref<2x10x10x32xbf16, #tpu.memory_space<vmem>>, vector<2x8x8x32xbf16>
    %66 = vector.shape_cast %65 : vector<2x8x8x32xbf16> to vector<128x32xbf16>
    %c0_81 = arith.constant 0 : index
    %c0_82 = arith.constant 0 : index
    %c2_83 = arith.constant 2 : index
    %c0_84 = arith.constant 0 : index
    %67 = vector.load %arg11[%c0_81, %c0_82, %c2_83, %c0_84] : memref<2x10x10x32xbf16, #tpu.memory_space<vmem>>, vector<2x8x8x32xbf16>
    %68 = vector.shape_cast %67 : vector<2x8x8x32xbf16> to vector<128x32xbf16>
    %c0_85 = arith.constant 0 : index
    %c1_86 = arith.constant 1 : index
    %c0_87 = arith.constant 0 : index
    %c0_88 = arith.constant 0 : index
    %69 = vector.load %arg11[%c0_85, %c1_86, %c0_87, %c0_88] : memref<2x10x10x32xbf16, #tpu.memory_space<vmem>>, vector<2x8x8x32xbf16>
    %70 = vector.shape_cast %69 : vector<2x8x8x32xbf16> to vector<128x32xbf16>
    %c0_89 = arith.constant 0 : index
    %c1_90 = arith.constant 1 : index
    %c1_91 = arith.constant 1 : index
    %c0_92 = arith.constant 0 : index
    %71 = vector.load %arg11[%c0_89, %c1_90, %c1_91, %c0_92] : memref<2x10x10x32xbf16, #tpu.memory_space<vmem>>, vector<2x8x8x32xbf16>
    %72 = vector.shape_cast %71 : vector<2x8x8x32xbf16> to vector<128x32xbf16>
    %c0_93 = arith.constant 0 : index
    %c1_94 = arith.constant 1 : index
    %c2_95 = arith.constant 2 : index
    %c0_96 = arith.constant 0 : index
    %73 = vector.load %arg11[%c0_93, %c1_94, %c2_95, %c0_96] : memref<2x10x10x32xbf16, #tpu.memory_space<vmem>>, vector<2x8x8x32xbf16>
    %74 = vector.shape_cast %73 : vector<2x8x8x32xbf16> to vector<128x32xbf16>
    %c0_97 = arith.constant 0 : index
    %c2_98 = arith.constant 2 : index
    %c0_99 = arith.constant 0 : index
    %c0_100 = arith.constant 0 : index
    %75 = vector.load %arg11[%c0_97, %c2_98, %c0_99, %c0_100] : memref<2x10x10x32xbf16, #tpu.memory_space<vmem>>, vector<2x8x8x32xbf16>
    %76 = vector.shape_cast %75 : vector<2x8x8x32xbf16> to vector<128x32xbf16>
    %c0_101 = arith.constant 0 : index
    %c2_102 = arith.constant 2 : index
    %c1_103 = arith.constant 1 : index
    %c0_104 = arith.constant 0 : index
    %77 = vector.load %arg11[%c0_101, %c2_102, %c1_103, %c0_104] : memref<2x10x10x32xbf16, #tpu.memory_space<vmem>>, vector<2x8x8x32xbf16>
    %78 = vector.shape_cast %77 : vector<2x8x8x32xbf16> to vector<128x32xbf16>
    %c0_105 = arith.constant 0 : index
    %c2_106 = arith.constant 2 : index
    %c2_107 = arith.constant 2 : index
    %c0_108 = arith.constant 0 : index
    %79 = vector.load %arg11[%c0_105, %c2_106, %c2_107, %c0_108] : memref<2x10x10x32xbf16, #tpu.memory_space<vmem>>, vector<2x8x8x32xbf16>
    %80 = vector.shape_cast %79 : vector<2x8x8x32xbf16> to vector<128x32xbf16>
    %81 = vector.extract_strided_slice %58 {offsets = [0, 32], sizes = [128, 96], strides = [1, 1]} : vector<128x128xf32> to vector<128x96xf32>
    %82 = arith.truncf %81 : vector<128x96xf32> to vector<128x96xbf16>
    %83 = tpu.concatenate %64, %66, %68, %70, %72, %74, %76, %78, %80, %82 in 1 : vector<128x32xbf16>, vector<128x32xbf16>, vector<128x32xbf16>, vector<128x32xbf16>, vector<128x32xbf16>, vector<128x32xbf16>, vector<128x32xbf16>, vector<128x32xbf16>, vector<128x32xbf16>, vector<128x96xbf16> -> vector<128x384xbf16>
    %c1_109 = arith.constant 1 : index
    %c0_110 = arith.constant 0 : index
    %c0_111 = arith.constant 0 : index
    %84 = vector.load %arg5[%c1_109, %c0_110, %c0_111] : memref<2x384x256xbf16, #tpu.memory_space<vmem>>, vector<1x384x256xbf16>
    %85 = vector.shape_cast %84 : vector<1x384x256xbf16> to vector<384x256xbf16>
    %cst_112 = arith.constant dense<0.000000e+00> : vector<128x256xf32>
    %86 = tpu.matmul %83, %85, %cst_112 {dimension_numbers = #tpu.dot_dimension_numbers<[1], [0], [0], [1], [0, 0, 1, 1], [], []>} : vector<128x384xbf16>, vector<384x256xbf16>, vector<128x256xf32> -> vector<128x256xf32>
    %c1_113 = arith.constant 1 : index
    %c0_114 = arith.constant 0 : index
    %c0_115 = arith.constant 0 : index
    %87 = vector.load %arg6[%c1_113, %c0_114, %c0_115] : memref<2x1x256xf32, #tpu.memory_space<vmem>>, vector<1x1x256xf32>
    %88 = vector.shape_cast %87 : vector<1x1x256xf32> to vector<1x256xf32>
    %89 = vector.broadcast %88 : vector<1x256xf32> to vector<128x256xf32>
    %90 = arith.mulf %86, %89 : vector<128x256xf32>
    %c1_116 = arith.constant 1 : index
    %c0_117 = arith.constant 0 : index
    %c0_118 = arith.constant 0 : index
    %91 = vector.load %arg7[%c1_116, %c0_117, %c0_118] : memref<2x1x256xf32, #tpu.memory_space<vmem>>, vector<1x1x256xf32>
    %92 = vector.shape_cast %91 : vector<1x1x256xf32> to vector<1x256xf32>
    %93 = vector.broadcast %92 : vector<1x256xf32> to vector<128x256xf32>
    %94 = arith.addf %90, %93 : vector<128x256xf32>
    %cst_119 = arith.constant 0.000000e+00 : f32
    %95 = vector.broadcast %cst_119 : f32 to vector<128x256xf32>
    %96 = arith.maximumf %94, %95 : vector<128x256xf32>
    %97 = arith.truncf %96 : vector<128x256xf32> to vector<128x256xbf16>
    %c1_120 = arith.constant 1 : index
    %c0_121 = arith.constant 0 : index
    %c0_122 = arith.constant 0 : index
    %98 = vector.load %arg8[%c1_120, %c0_121, %c0_122] : memref<2x256x128xbf16, #tpu.memory_space<vmem>>, vector<1x256x128xbf16>
    %99 = vector.shape_cast %98 : vector<1x256x128xbf16> to vector<256x128xbf16>
    %cst_123 = arith.constant dense<0.000000e+00> : vector<128x128xf32>
    %100 = tpu.matmul %97, %99, %cst_123 {dimension_numbers = #tpu.dot_dimension_numbers<[1], [0], [0], [1], [0, 0, 1, 1], [], []>} : vector<128x256xbf16>, vector<256x128xbf16>, vector<128x128xf32> -> vector<128x128xf32>
    %c1_124 = arith.constant 1 : index
    %c0_125 = arith.constant 0 : index
    %c0_126 = arith.constant 0 : index
    %101 = vector.load %arg9[%c1_124, %c0_125, %c0_126] : memref<2x1x128xf32, #tpu.memory_space<vmem>>, vector<1x1x128xf32>
    %102 = vector.shape_cast %101 : vector<1x1x128xf32> to vector<1x128xf32>
    %103 = vector.broadcast %102 : vector<1x128xf32> to vector<128x128xf32>
    %104 = arith.mulf %103, %100 : vector<128x128xf32>
    %105 = arith.addf %58, %104 : vector<128x128xf32>
    %106 = vector.shape_cast %105 : vector<128x128xf32> to vector<2x64x128xf32>
    %c0_127 = arith.constant 0 : index
    %c0_128 = arith.constant 0 : index
    %c0_129 = arith.constant 0 : index
    %107 = vector.load %arg10[%c0_127, %c0_128, %c0_129] : memref<2x64x128xf32, #tpu.memory_space<vmem>>, vector<2x64x128xf32>
    tpu.vector_store %arg10[%c0_127, %c0_128, %c0_129], %106 {strides = array<i32>} : memref<2x64x128xf32, #tpu.memory_space<vmem>>, vector<2x64x128xf32>,
    return
  }
  func.func @transform_0(%arg0: i32) -> (i32, i32, i32) {
    %c0_i32 = arith.constant 0 : i32
    %c0_i32_0 = arith.constant 0 : i32
    %c0_i32_1 = arith.constant 0 : i32
    return %arg0, %c0_i32, %c0_i32_0 : i32, i32, i32
  }
  func.func @transform_1(%arg0: i32) -> (i32, i32) {
    %c0_i32 = arith.constant 0 : i32
    %c0_i32_0 = arith.constant 0 : i32
    %c0_i32_1 = arith.constant 0 : i32
    return %c0_i32, %c0_i32_0 : i32, i32
  }
  func.func @transform_2(%arg0: i32) -> (i32, i32) {
    %c0_i32 = arith.constant 0 : i32
    %c0_i32_0 = arith.constant 0 : i32
    %c0_i32_1 = arith.constant 0 : i32
    return %c0_i32, %c0_i32_0 : i32, i32
  }
  func.func @transform_3(%arg0: i32) -> (i32, i32) {
    %c0_i32 = arith.constant 0 : i32
    %c0_i32_0 = arith.constant 0 : i32
    %c0_i32_1 = arith.constant 0 : i32
    return %c0_i32, %c0_i32_0 : i32, i32
  }
  func.func @transform_4(%arg0: i32) -> (i32, i32, i32) {
    %c0_i32 = arith.constant 0 : i32
    %c0_i32_0 = arith.constant 0 : i32
    %c0_i32_1 = arith.constant 0 : i32
    %c0_i32_2 = arith.constant 0 : i32
    return %c0_i32, %c0_i32_0, %c0_i32_1 : i32, i32, i32
  }
  func.func @transform_5(%arg0: i32) -> (i32, i32, i32) {
    %c0_i32 = arith.constant 0 : i32
    %c0_i32_0 = arith.constant 0 : i32
    %c0_i32_1 = arith.constant 0 : i32
    %c0_i32_2 = arith.constant 0 : i32
    return %c0_i32, %c0_i32_0, %c0_i32_1 : i32, i32, i32
  }
  func.func @transform_6(%arg0: i32) -> (i32, i32, i32) {
    %c0_i32 = arith.constant 0 : i32
    %c0_i32_0 = arith.constant 0 : i32
    %c0_i32_1 = arith.constant 0 : i32
    %c0_i32_2 = arith.constant 0 : i32
    return %c0_i32, %c0_i32_0, %c0_i32_1 : i32, i32, i32
  }
  func.func @transform_7(%arg0: i32) -> (i32, i32, i32) {
    %c0_i32 = arith.constant 0 : i32
    %c0_i32_0 = arith.constant 0 : i32
    %c0_i32_1 = arith.constant 0 : i32
    %c0_i32_2 = arith.constant 0 : i32
    return %c0_i32, %c0_i32_0, %c0_i32_1 : i32, i32, i32
  }
  func.func @transform_8(%arg0: i32) -> (i32, i32, i32) {
    %c0_i32 = arith.constant 0 : i32
    %c0_i32_0 = arith.constant 0 : i32
    %c0_i32_1 = arith.constant 0 : i32
    %c0_i32_2 = arith.constant 0 : i32
    return %c0_i32, %c0_i32_0, %c0_i32_1 : i32, i32, i32
  }
  func.func @transform_9(%arg0: i32) -> (i32, i32, i32) {
    %c0_i32 = arith.constant 0 : i32
    %c0_i32_0 = arith.constant 0 : i32
    %c0_i32_1 = arith.constant 0 : i32
    return %arg0, %c0_i32, %c0_i32_0 : i32, i32, i32
  }
}

</mosaic_0001>

<llo_original>
// kernel: _lambda_.1
$region0: #{_lambda_.1}
  #allocation0 [shape = 'u32[]', space=smem, size = 0x4, offset = 0x4, fixed_abs, tag = 'smem constant byte address 0x4 - core index']
  #allocation1 [shape = 'u32[144,128]{1,0:T(1,128)}', space=vmem, size = 0x12000, scoped, tag = 'internal scratch']
  #allocation2 [shape = 'bf16[2,10,10,32]{3,2,1,0:T(8,128)(2,1)}', space=vmem, size = 0x14000, scoped, tag = 'scratch operand']
  %s0 = inlined_call_operand.vmem [shape: bf16[4,64,256], index: 0, kind: input, shape index: {}]
  %s1 = inlined_call_operand.vmem [shape: bf16[256,128], index: 1, kind: input, shape index: {}]
  %s2 = inlined_call_operand.vmem [shape: f32[1,128], index: 2, kind: input, shape index: {}]
  %s3 = inlined_call_operand.vmem [shape: f32[1,128], index: 3, kind: input, shape index: {}]
  %s4 = inlined_call_operand.vmem [shape: bf16[2,384,256], index: 4, kind: input, shape index: {}]
  %s5 = inlined_call_operand.vmem [shape: f32[2,1,256], index: 5, kind: input, shape index: {}]
  %s6 = inlined_call_operand.vmem [shape: f32[2,1,256], index: 6, kind: input, shape index: {}]
  %s7 = inlined_call_operand.vmem [shape: bf16[2,256,128], index: 7, kind: input, shape index: {}]
  %s8 = inlined_call_operand.vmem [shape: f32[2,1,128], index: 8, kind: input, shape index: {}]
  %s9 = inlined_call_operand.hbm [shape: f32[4,64,128], index: 9, kind: output, shape index: {}]
  %s10 = sld [smem:[#allocation0]]
  $region69: #{_lambda_.1} parent=0
    _
  %s12 = ssub.s32 1, %s10
  %s13 = scalar_select 0, %s12, %s10
  $region1: #{_lambda_.1} parent=0
    #allocation3 [shape = 'u8[131072]{0}', space=vmem, size = 0x20000, scoped, tag = 'output window, operand 0']
    #allocation4 [shape = 's32[2]{0}', space=sflag, size = 0x8, scoped, tag = 'scoped memory for _lambda_.1']
    %14 = vsyncpa [#allocation4], 0
    %s15 = scalar_lea.sflag [#allocation4], 1
    %16 = vsyncpa %s15, 0
    loop: start=0, step=1, limit=4
    $region2: #{_lambda_.1} parent=1 // loop_pre_header
      _
    $region3: #{_lambda_.1} parent=1 // loop_header
      %s18 = sphi 0, %s22
      %p19 = scmp.ge.s32.totalorder %s18, 4
      %s28 = sphi 0, %s30
      %s31 = sphi 0, %s28
      %s32 = sphi 0, %s31
      %s48 = sphi 0, %s32
      %s52 = sphi 0, %s52
      %s54 = sphi 0, %s52
      %s55 = sphi 0, %s54
      %s69 = sphi 0, %s55
      %s73 = sphi 0, %s73
      %s75 = sphi 0, %s73
      %s76 = sphi 0, %s75
      %s90 = sphi 0, %s76
      %s94 = sphi 0, %s94
      %s96 = sphi 0, %s94
      %s97 = sphi 0, %s96
      %s111 = sphi 0, %s97
      %s115 = sphi 0, %s115
      %s117 = sphi 0, %s115
      %s118 = sphi 0, %s117
      %s132 = sphi 0, %s118
      %s136 = sphi 0, %s136
      %s138 = sphi 0, %s136
      %s139 = sphi 0, %s138
      %s153 = sphi 0, %s139
      %s157 = sphi 0, %s157
      %s159 = sphi 0, %s157
      %s160 = sphi 0, %s159
      %s174 = sphi 0, %s160
      %s178 = sphi 0, %s178
      %s180 = sphi 0, %s178
      %s181 = sphi 0, %s180
      %s195 = sphi 0, %s181
      %s199 = sphi 0, %s199
      %s201 = sphi 0, %s199
      %s202 = sphi 0, %s201
      %s216 = sphi 0, %s202
      %s222 = sphi 0, %s224
      %s225 = sphi 0, %s222
      %s226 = sphi 0, %s225
      %s242 = sphi 0, %s226
    $region4: #{_lambda_.1} parent=1 // loop_header_branch
      %21 = sbr.rel (%p19) target = $region8
    $region5: #{_lambda_.1} parent=1 // loop_body
      %s23 = ssub.s32 %s18, 1
      %s24 = ssub.s32 %s18, 2
      %s25 = sadd.s32 %s18, 1
      %s26 = ssub.s32 %s18, %s25
      %p27 = scmp.eq.s32.totalorder %s26, 0
      %s29 = sadd.s32 %s28, 1
      %s30 = scalar_select %p27, %s28, %s29
      %p33 = pneg %p27
      %p34 = scmp.eq.s32.totalorder %s18, 1
      %p35 = por %p33, %p34
      %p36 = scmp.ne.s32.totalorder %s28, %s31
      %p37 = scmp.eq.s32.totalorder %s18, 0
      %p38 = por %p36, %p37
      %p39 = scmp.ne.s32.totalorder %s28, %s31
      %p40 = scmp.eq.s32.totalorder %s23, 1
      %p41 = por %p39, %p40
      %p42 = scmp.ne.s32.totalorder %s31, %s32
      %p43 = scmp.eq.s32.totalorder %s23, 0
      %p44 = por %p42, %p43
      %p45 = scmp.ne.s32.totalorder %s31, %s32
      %p46 = scmp.eq.s32.totalorder %s24, 1
      %p47 = por %p45, %p46
      %p49 = scmp.ne.s32.totalorder %s32, %s48
      %p50 = scmp.eq.s32.totalorder %s24, 0
      %p51 = por %p49, %p50
      %s53 = sadd.s32 %s52, 1
      %p56 = scmp.eq.s32.totalorder %s18, 1
      %p57 = scmp.ne.s32.totalorder %s52, %s54
      %p58 = scmp.eq.s32.totalorder %s18, 0
      %p59 = por %p57, %p58
      %p60 = scmp.ne.s32.totalorder %s52, %s54
      %p61 = scmp.eq.s32.totalorder %s23, 1
      %p62 = por %p60, %p61
      %p63 = scmp.ne.s32.totalorder %s54, %s55
      %p64 = scmp.eq.s32.totalorder %s23, 0
      %p65 = por %p63, %p64
      %p66 = scmp.ne.s32.totalorder %s54, %s55
      %p67 = scmp.eq.s32.totalorder %s24, 1
      %p68 = por %p66, %p67
      %p70 = scmp.ne.s32.totalorder %s55, %s69
      %p71 = scmp.eq.s32.totalorder %s24, 0
      %p72 = por %p70, %p71
      %s74 = sadd.s32 %s73, 1
      %p77 = scmp.eq.s32.totalorder %s18, 1
      %p78 = scmp.ne.s32.totalorder %s73, %s75
      %p79 = scmp.eq.s32.totalorder %s18, 0
      %p80 = por %p78, %p79
      %p81 = scmp.ne.s32.totalorder %s73, %s75
      %p82 = scmp.eq.s32.totalorder %s23, 1
      %p83 = por %p81, %p82
      %p84 = scmp.ne.s32.totalorder %s75, %s76
      %p85 = scmp.eq.s32.totalorder %s23, 0
      %p86 = por %p84, %p85
      %p87 = scmp.ne.s32.totalorder %s75, %s76
      %p88 = scmp.eq.s32.totalorder %s24, 1
      %p89 = por %p87, %p88
      %p91 = scmp.ne.s32.totalorder %s76, %s90
      %p92 = scmp.eq.s32.totalorder %s24, 0
      %p93 = por %p91, %p92
      %s95 = sadd.s32 %s94, 1
      %p98 = scmp.eq.s32.totalorder %s18, 1
      %p99 = scmp.ne.s32.totalorder %s94, %s96
      %p100 = scmp.eq.s32.totalorder %s18, 0
      %p101 = por %p99, %p100
      %p102 = scmp.ne.s32.totalorder %s94, %s96
      %p103 = scmp.eq.s32.totalorder %s23, 1
      %p104 = por %p102, %p103
      %p105 = scmp.ne.s32.totalorder %s96, %s97
      %p106 = scmp.eq.s32.totalorder %s23, 0
      %p107 = por %p105, %p106
      %p108 = scmp.ne.s32.totalorder %s96, %s97
      %p109 = scmp.eq.s32.totalorder %s24, 1
      %p110 = por %p108, %p109
      %p112 = scmp.ne.s32.totalorder %s97, %s111
      %p113 = scmp.eq.s32.totalorder %s24, 0
      %p114 = por %p112, %p113
      %s116 = sadd.s32 %s115, 1
      %p119 = scmp.eq.s32.totalorder %s18, 1
      %p120 = scmp.ne.s32.totalorder %s115, %s117
      %p121 = scmp.eq.s32.totalorder %s18, 0
      %p122 = por %p120, %p121
      %p123 = scmp.ne.s32.totalorder %s115, %s117
      %p124 = scmp.eq.s32.totalorder %s23, 1
      %p125 = por %p123, %p124
      %p126 = scmp.ne.s32.totalorder %s117, %s118
      %p127 = scmp.eq.s32.totalorder %s23, 0
      %p128 = por %p126, %p127
      %p129 = scmp.ne.s32.totalorder %s117, %s118
      %p130 = scmp.eq.s32.totalorder %s24, 1
      %p131 = por %p129, %p130
      %p133 = scmp.ne.s32.totalorder %s118, %s132
      %p134 = scmp.eq.s32.totalorder %s24, 0
      %p135 = por %p133, %p134
      %s137 = sadd.s32 %s136, 1
      %p140 = scmp.eq.s32.totalorder %s18, 1
      %p141 = scmp.ne.s32.totalorder %s136, %s138
      %p142 = scmp.eq.s32.totalorder %s18, 0
      %p143 = por %p141, %p142
      %p144 = scmp.ne.s32.totalorder %s136, %s138
      %p145 = scmp.eq.s32.totalorder %s23, 1
      %p146 = por %p144, %p145
      %p147 = scmp.ne.s32.totalorder %s138, %s139
      %p148 = scmp.eq.s32.totalorder %s23, 0
      %p149 = por %p147, %p148
      %p150 = scmp.ne.s32.totalorder %s138, %s139
      %p151 = scmp.eq.s32.totalorder %s24, 1
      %p152 = por %p150, %p151
      %p154 = scmp.ne.s32.totalorder %s139, %s153
      %p155 = scmp.eq.s32.totalorder %s24, 0
      %p156 = por %p154, %p155
      %s158 = sadd.s32 %s157, 1
      %p161 = scmp.eq.s32.totalorder %s18, 1
      %p162 = scmp.ne.s32.totalorder %s157, %s159
      %p163 = scmp.eq.s32.totalorder %s18, 0
      %p164 = por %p162, %p163
      %p165 = scmp.ne.s32.totalorder %s157, %s159
      %p166 = scmp.eq.s32.totalorder %s23, 1
      %p167 = por %p165, %p166
      %p168 = scmp.ne.s32.totalorder %s159, %s160
      %p169 = scmp.eq.s32.totalorder %s23, 0
      %p170 = por %p168, %p169
      %p171 = scmp.ne.s32.totalorder %s159, %s160
      %p172 = scmp.eq.s32.totalorder %s24, 1
      %p173 = por %p171, %p172
      %p175 = scmp.ne.s32.totalorder %s160, %s174
      %p176 = scmp.eq.s32.totalorder %s24, 0
      %p177 = por %p175, %p176
      %s179 = sadd.s32 %s178, 1
      %p182 = scmp.eq.s32.totalorder %s18, 1
      %p183 = scmp.ne.s32.totalorder %s178, %s180
      %p184 = scmp.eq.s32.totalorder %s18, 0
      %p185 = por %p183, %p184
      %p186 = scmp.ne.s32.totalorder %s178, %s180
      %p187 = scmp.eq.s32.totalorder %s23, 1
      %p188 = por %p186, %p187
      %p189 = scmp.ne.s32.totalorder %s180, %s181
      %p190 = scmp.eq.s32.totalorder %s23, 0
      %p191 = por %p189, %p190
      %p192 = scmp.ne.s32.totalorder %s180, %s181
      %p193 = scmp.eq.s32.totalorder %s24, 1
      %p194 = por %p192, %p193
      %p196 = scmp.ne.s32.totalorder %s181, %s195
      %p197 = scmp.eq.s32.totalorder %s24, 0
      %p198 = por %p196, %p197
      %s200 = sadd.s32 %s199, 1
      %p203 = scmp.eq.s32.totalorder %s18, 1
      %p204 = scmp.ne.s32.totalorder %s199, %s201
      %p205 = scmp.eq.s32.totalorder %s18, 0
      %p206 = por %p204, %p205
      %p207 = scmp.ne.s32.totalorder %s199, %s201
      %p208 = scmp.eq.s32.totalorder %s23, 1
      %p209 = por %p207, %p208
      %p210 = scmp.ne.s32.totalorder %s201, %s202
      %p211 = scmp.eq.s32.totalorder %s23, 0
      %p212 = por %p210, %p211
      %p213 = scmp.ne.s32.totalorder %s201, %s202
      %p214 = scmp.eq.s32.totalorder %s24, 1
      %p215 = por %p213, %p214
      %p217 = scmp.ne.s32.totalorder %s202, %s216
      %p218 = scmp.eq.s32.totalorder %s24, 0
      %p219 = por %p217, %p218
      %s220 = ssub.s32 %s18, %s25
      %p221 = scmp.eq.s32.totalorder %s220, 0
      %s223 = sadd.s32 %s222, 1
      %s224 = scalar_select %p221, %s222, %s223
      %p227 = pneg %p221
      %p228 = scmp.eq.s32.totalorder %s18, 1
      %p229 = por %p227, %p228
      %p230 = scmp.ne.s32.totalorder %s222, %s225
      %p231 = scmp.eq.s32.totalorder %s18, 0
      %p232 = por %p230, %p231
      %p233 = scmp.ne.s32.totalorder %s222, %s225
      %p234 = scmp.eq.s32.totalorder %s23, 1
      %p235 = por %p233, %p234
      %p236 = scmp.ne.s32.totalorder %s225, %s226
      %p237 = scmp.eq.s32.totalorder %s23, 0
      %p238 = por %p236, %p237
      %p239 = scmp.ne.s32.totalorder %s225, %s226
      %p240 = scmp.eq.s32.totalorder %s24, 1
      %p241 = por %p239, %p240
      %p243 = scmp.ne.s32.totalorder %s226, %s242
      %p244 = scmp.eq.s32.totalorder %s24, 0
      %p245 = por %p243, %p244
      %p246 = scmp.le.s32.totalorder 1, %s18
      %p247 = scmp.lt.s32.totalorder %s18, 3
      %p248 = pnand %p246, %p247
      %p249 = pneg %p248
      // Predicated region
      $region9: #{_lambda_.1} parent=5 // pred_check
        _
      $region10: #{_lambda_.1} parent=5 // pred_check_branch
        %251 = sbr.rel (%p248) target = $region12
      $region11: #{_lambda_.1} parent=5 // pred_region
        %s252 = ssub.s32 %s18, 1
        // Predicated region
        $region13: #{_lambda_.1} parent=11 // pred_check
          %p253 = pneg %p65
        $region14: #{_lambda_.1} parent=11 // pred_check_branch
          %255 = sbr.rel (%p253) target = $region16
        $region15: #{_lambda_.1} parent=11 // pred_region
          _
        $region16: #{_lambda_.1} parent=11 // pred_fallthru
          _
        // Predicated region
        $region17: #{_lambda_.1} parent=11 // pred_check
          %p256 = pneg %p86
        $region18: #{_lambda_.1} parent=11 // pred_check_branch
          %258 = sbr.rel (%p256) target = $region20
        $region19: #{_lambda_.1} parent=11 // pred_region
          _
        $region20: #{_lambda_.1} parent=11 // pred_fallthru
          _
        // Predicated region
        $region21: #{_lambda_.1} parent=11 // pred_check
          %p259 = pneg %p107
        $region22: #{_lambda_.1} parent=11 // pred_check_branch
          %261 = sbr.rel (%p259) target = $region24
        $region23: #{_lambda_.1} parent=11 // pred_region
          _
        $region24: #{_lambda_.1} parent=11 // pred_fallthru
          _
        // Predicated region
        $region25: #{_lambda_.1} parent=11 // pred_check
          %p262 = pneg %p128
        $region26: #{_lambda_.1} parent=11 // pred_check_branch
          %264 = sbr.rel (%p262) target = $region28
        $region27: #{_lambda_.1} parent=11 // pred_region
          _
        $region28: #{_lambda_.1} parent=11 // pred_fallthru
          _
        // Predicated region
        $region29: #{_lambda_.1} parent=11 // pred_check
          %p265 = pneg %p149
        $region30: #{_lambda_.1} parent=11 // pred_check_branch
          %267 = sbr.rel (%p265) target = $region32
        $region31: #{_lambda_.1} parent=11 // pred_region
          _
        $region32: #{_lambda_.1} parent=11 // pred_fallthru
          _
        // Predicated region
        $region33: #{_lambda_.1} parent=11 // pred_check
          %p268 = pneg %p170
        $region34: #{_lambda_.1} parent=11 // pred_check_branch
          %270 = sbr.rel (%p268) target = $region36
        $region35: #{_lambda_.1} parent=11 // pred_region
          _
        $region36: #{_lambda_.1} parent=11 // pred_fallthru
          _
        // Predicated region
        $region37: #{_lambda_.1} parent=11 // pred_check
          %p271 = pneg %p191
        $region38: #{_lambda_.1} parent=11 // pred_check_branch
          %273 = sbr.rel (%p271) target = $region40
        $region39: #{_lambda_.1} parent=11 // pred_region
          _
        $region40: #{_lambda_.1} parent=11 // pred_fallthru
          _
        // Predicated region
        $region41: #{_lambda_.1} parent=11 // pred_check
          %p274 = pneg %p212
        $region42: #{_lambda_.1} parent=11 // pred_check_branch
          %276 = sbr.rel (%p274) target = $region44
        $region43: #{_lambda_.1} parent=11 // pred_region
          _
        $region44: #{_lambda_.1} parent=11 // pred_fallthru
          _
      $region12: #{_lambda_.1} parent=5 // pred_fallthru
        _
      %p277 = scmp.lt.s32.totalorder %s18, 2
      // Predicated region
      $region45: #{_lambda_.1} parent=5 // pred_check
        %p278 = pneg %p277
      $region46: #{_lambda_.1} parent=5 // pred_check_branch
        %280 = sbr.rel (%p278) target = $region48
      $region47: #{_lambda_.1} parent=5 // pred_region
        // Predicated region
        $region49: #{_lambda_.1} parent=47 // pred_check
          %p281 = pneg %p38
        $region50: #{_lambda_.1} parent=47 // pred_check_branch
          %283 = sbr.rel (%p281) target = $region52
        $region51: #{_lambda_.1} parent=47 // pred_region
          %s284 = smul.u32 2, %s18
          %p285 = scmp.lt.s32.totalorder %s284, 3
          %s286 = scalar_select %p285, %s284, 3
          %s287 = smul.addr %s286, 16
          %s288 = smul.addr %s287, 4
          %s289 = scalar_lea.vmem %s0, %s288
          %s290 = smul.u32 2, %s18
        $region52: #{_lambda_.1} parent=47 // pred_fallthru
          _
      $region48: #{_lambda_.1} parent=5 // pred_fallthru
        _
      %p291 = scmp.le.s32.totalorder 1, %s18
      %p292 = scmp.lt.s32.totalorder %s18, 3
      %p293 = pnand %p291, %p292
      %p294 = pneg %p293
      // Predicated region
      $region53: #{_lambda_.1} parent=5 // pred_check
        _
      $region54: #{_lambda_.1} parent=5 // pred_check_branch
        %296 = sbr.rel (%p293) target = $region56
      $region55: #{_lambda_.1} parent=5 // pred_region
        %s297 = ssub.s32 %s18, 1
        %s298 = smul.u32 2, %s23
        %p299 = scmp.lt.s32.totalorder %s298, 3
        %s300 = scalar_select %p299, %s298, 3
        %s301 = smul.addr %s300, 16
        %s302 = smul.addr %s301, 4
        %s303 = scalar_lea.vmem %s0, %s302
        %p304 = pneg %p44
        %p305 = pneg %p41
        %p306 = pneg %p65
        %p307 = pneg %p62
        %p308 = pneg %p86
        %p309 = pneg %p83
        %p310 = pneg %p107
        %p311 = pneg %p104
        %p312 = pneg %p128
        %p313 = pneg %p125
        %p314 = pneg %p149
        %p315 = pneg %p146
        %p316 = pneg %p170
        %p317 = pneg %p167
        %p318 = pneg %p191
        %p319 = pneg %p188
        %p320 = pneg %p212
        %p321 = pneg %p209
        %p322 = pneg %p238
        %p323 = pneg %p235
        %s324 = sand.u32 %s225, 1
        %s325 = scalar_lea.sflag [#allocation4], %s324
        %s326 = sand.u32 %s225, 1
        %s327 = smul.addr %s326, 128
        %s328 = scalar_lea.vmem [#allocation3], %s327
        %s329 = smul.u32 2, %s23
        %p330 = scmp.lt.s32.totalorder %s329, 3
        %s331 = scalar_select %p330, %s329, 3
        %s332 = smul.addr %s331, 16
        %s333 = smul.addr %s332, 4
        %s334 = scalar_lea.vmem %s0, %s333
        %s335 = smul.u32 2, %s23
        %s336 = smul.u32 2, %s23
        %v338 = vld [vmem:[%s334] sm:$0xff]
        %v339 = vld [vmem:[%s334 + $0x8] sm:$0xff]
        %v340 = vld [vmem:[%s334 + $0x10] sm:$0xff]
        %v341 = vld [vmem:[%s334 + $0x18] sm:$0xff]
        %v342 = vld [vmem:[%s334 + $0x20] sm:$0xff]
        %v343 = vld [vmem:[%s334 + $0x28] sm:$0xff]
        %v344 = vld [vmem:[%s334 + $0x30] sm:$0xff]
        %v345 = vld [vmem:[%s334 + $0x38] sm:$0xff]
        %v346 = vld [vmem:[%s334 + $0x40] sm:$0xff]
        %v347 = vld [vmem:[%s334 + $0x48] sm:$0xff]
        %v348 = vld [vmem:[%s334 + $0x50] sm:$0xff]
        %v349 = vld [vmem:[%s334 + $0x58] sm:$0xff]
        %v350 = vld [vmem:[%s334 + $0x60] sm:$0xff]
        %v351 = vld [vmem:[%s334 + $0x68] sm:$0xff]
        %v352 = vld [vmem:[%s334 + $0x70] sm:$0xff]
        %v353 = vld [vmem:[%s334 + $0x78] sm:$0xff]
        %v354 = vld [vmem:[%s1] sm:$0xf]
        %v355 = vld [vmem:[%s1 + $0x4] sm:$0xf]
        %v356 = vld [vmem:[%s1 + $0x8] sm:$0xf]
        %v357 = vld [vmem:[%s1 + $0xc] sm:$0xf]
        %v358 = vld [vmem:[%s1 + $0x10] sm:$0xf]
        %v359 = vld [vmem:[%s1 + $0x14] sm:$0xf]
        %v360 = vld [vmem:[%s1 + $0x18] sm:$0xf]
        %v361 = vld [vmem:[%s1 + $0x1c] sm:$0xf]
        %v362 = vld [vmem:[%s1 + $0x20] sm:$0xf]
        %v363 = vld [vmem:[%s1 + $0x24] sm:$0xf]
        %v364 = vld [vmem:[%s1 + $0x28] sm:$0xf]
        %v365 = vld [vmem:[%s1 + $0x2c] sm:$0xf]
        %v366 = vld [vmem:[%s1 + $0x30] sm:$0xf]
        %v367 = vld [vmem:[%s1 + $0x34] sm:$0xf]
        %v368 = vld [vmem:[%s1 + $0x38] sm:$0xf]
        %v369 = vld [vmem:[%s1 + $0x3c] sm:$0xf]
        %v370 = vld [vmem:[%s1 + $0x40] sm:$0xf]
        %v371 = vld [vmem:[%s1 + $0x44] sm:$0xf]
        %v372 = vld [vmem:[%s1 + $0x48] sm:$0xf]
        %v373 = vld [vmem:[%s1 + $0x4c] sm:$0xf]
        %v374 = vld [vmem:[%s1 + $0x50] sm:$0xf]
        %v375 = vld [vmem:[%s1 + $0x54] sm:$0xf]
        %v376 = vld [vmem:[%s1 + $0x58] sm:$0xf]
        %v377 = vld [vmem:[%s1 + $0x5c] sm:$0xf]
        %v378 = vld [vmem:[%s1 + $0x60] sm:$0xf]
        %v379 = vld [vmem:[%s1 + $0x64] sm:$0xf]
        %v380 = vld [vmem:[%s1 + $0x68] sm:$0xf]
        %v381 = vld [vmem:[%s1 + $0x6c] sm:$0xf]
        %v382 = vld [vmem:[%s1 + $0x70] sm:$0xf]
        %v383 = vld [vmem:[%s1 + $0x74] sm:$0xf]
        %v384 = vld [vmem:[%s1 + $0x78] sm:$0xf]
        %v385 = vld [vmem:[%s1 + $0x7c] sm:$0xf]
        %v402 = vunpack.c.l.b16 %v338
        %v403 = vunpack.c.h.b16 %v338
        %v404 = vunpack.c.l.b16 %v339
        %v405 = vunpack.c.h.b16 %v339
        %v406 = vunpack.c.l.b16 %v340
        %v407 = vunpack.c.h.b16 %v340
        %v408 = vunpack.c.l.b16 %v341
        %v409 = vunpack.c.h.b16 %v341
        %v410 = vunpack.c.l.b16 %v342
        %v411 = vunpack.c.h.b16 %v342
        %v412 = vunpack.c.l.b16 %v343
        %v413 = vunpack.c.h.b16 %v343
        %v414 = vunpack.c.l.b16 %v344
        %v415 = vunpack.c.h.b16 %v344
        %v416 = vunpack.c.l.b16 %v345
        %v417 = vunpack.c.h.b16 %v345
        %v418 = vunpack.c.l.b16 %v346
        %v419 = vunpack.c.h.b16 %v346
        %v420 = vunpack.c.l.b16 %v347
        %v421 = vunpack.c.h.b16 %v347
        %v422 = vunpack.c.l.b16 %v348
        %v423 = vunpack.c.h.b16 %v348
        %v424 = vunpack.c.l.b16 %v349
        %v425 = vunpack.c.h.b16 %v349
        %v426 = vunpack.c.l.b16 %v350
        %v427 = vunpack.c.h.b16 %v350
        %v428 = vunpack.c.l.b16 %v351
        %v429 = vunpack.c.h.b16 %v351
        %v430 = vunpack.c.l.b16 %v352
        %v431 = vunpack.c.h.b16 %v352
        %v432 = vunpack.c.l.b16 %v353
        %v433 = vunpack.c.h.b16 %v353
        %v434 = vpack.c.b16 %v404, %v402
        %v435 = vpack.c.b16 %v405, %v403
        %v436 = vpack.c.b16 %v408, %v406
        %v437 = vpack.c.b16 %v409, %v407
        %v438 = vpack.c.b16 %v412, %v410
        %v439 = vpack.c.b16 %v413, %v411
        %v440 = vpack.c.b16 %v416, %v414
        %v441 = vpack.c.b16 %v417, %v415
        %v442 = vpack.c.b16 %v420, %v418
        %v443 = vpack.c.b16 %v421, %v419
        %v444 = vpack.c.b16 %v424, %v422
        %v445 = vpack.c.b16 %v425, %v423
        %v446 = vpack.c.b16 %v428, %v426
        %v447 = vpack.c.b16 %v429, %v427
        %v448 = vpack.c.b16 %v432, %v430
        %v449 = vpack.c.b16 %v433, %v431
        %v498 = vunpack.c.l.b16 %v354
        %v499 = vunpack.c.l.b16 %v355
        %v500 = vunpack.c.l.b16 %v356
        %v501 = vunpack.c.l.b16 %v357
        %v502 = vunpack.c.l.b16 %v358
        %v503 = vunpack.c.l.b16 %v359
        %v504 = vunpack.c.l.b16 %v360
        %v505 = vunpack.c.l.b16 %v361
        %v506 = vunpack.c.l.b16 %v362
        %v507 = vunpack.c.l.b16 %v363
        %v508 = vunpack.c.l.b16 %v364
        %v509 = vunpack.c.l.b16 %v365
        %v510 = vunpack.c.l.b16 %v366
        %v511 = vunpack.c.l.b16 %v367
        %v512 = vunpack.c.l.b16 %v368
        %v513 = vunpack.c.l.b16 %v369
        %v514 = vunpack.c.l.b16 %v370
        %v515 = vunpack.c.l.b16 %v371
        %v516 = vunpack.c.l.b16 %v372
        %v517 = vunpack.c.l.b16 %v373
        %v518 = vunpack.c.l.b16 %v374
        %v519 = vunpack.c.l.b16 %v375
        %v520 = vunpack.c.l.b16 %v376
        %v521 = vunpack.c.l.b16 %v377
        %v522 = vunpack.c.l.b16 %v378
        %v523 = vunpack.c.l.b16 %v379
        %v524 = vunpack.c.l.b16 %v380
        %v525 = vunpack.c.l.b16 %v381
        %v526 = vunpack.c.l.b16 %v382
        %v527 = vunpack.c.l.b16 %v383
        %v528 = vunpack.c.l.b16 %v384
        %v529 = vunpack.c.l.b16 %v385
        %v530 = vpack.c.b16 %v499, %v498
        %v531 = vpack.c.b16 %v501, %v500
        %v532 = vpack.c.b16 %v503, %v502
        %v533 = vpack.c.b16 %v505, %v504
        %v534 = vpack.c.b16 %v507, %v506
        %v535 = vpack.c.b16 %v509, %v508
        %v536 = vpack.c.b16 %v511, %v510
        %v537 = vpack.c.b16 %v513, %v512
        %v538 = vpack.c.b16 %v515, %v514
        %v539 = vpack.c.b16 %v517, %v516
        %v540 = vpack.c.b16 %v519, %v518
        %v541 = vpack.c.b16 %v521, %v520
        %v542 = vpack.c.b16 %v523, %v522
        %v543 = vpack.c.b16 %v525, %v524
        %v544 = vpack.c.b16 %v527, %v526
        %v545 = vpack.c.b16 %v529, %v528
        %562 = vmatprep.subr.bf16.mxu0 0
        %563 = vmatpush1.bf16.msra.mxu0 %v530
        %564 = vmatprep.subr.bf16.mxu0 0
        %565 = vmatpush1.bf16.msra.mxu0 %v531
        %566 = vmatprep.subr.bf16.mxu0 0
        %567 = vmatpush1.bf16.msra.mxu0 %v532
        %568 = vmatprep.subr.bf16.mxu0 0
        %569 = vmatpush1.bf16.msra.mxu0 %v533
        %570 = vmatprep.subr.bf16.mxu0 0
        %571 = vmatpush1.bf16.msra.mxu0 %v534
        %572 = vmatprep.subr.bf16.mxu0 0
        %573 = vmatpush1.bf16.msra.mxu0 %v535
        %574 = vmatprep.subr.bf16.mxu0 0
        %575 = vmatpush1.bf16.msra.mxu0 %v536
        %576 = vmatprep.subr.bf16.mxu0 0
        %577 = vmatpush1.bf16.msra.mxu0 %v537
        %578 = vmatprep.subr.bf16.mxu0 0
        %579 = vmatpush1.bf16.msra.mxu0 %v538
        %580 = vmatprep.subr.bf16.mxu0 0
        %581 = vmatpush1.bf16.msra.mxu0 %v539
        %582 = vmatprep.subr.bf16.mxu0 0
        %583 = vmatpush1.bf16.msra.mxu0 %v540
        %584 = vmatprep.subr.bf16.mxu0 0
        %585 = vmatpush1.bf16.msra.mxu0 %v541
        %586 = vmatprep.subr.bf16.mxu0 0
        %587 = vmatpush1.bf16.msra.mxu0 %v542
        %588 = vmatprep.subr.bf16.mxu0 0
        %589 = vmatpush1.bf16.msra.mxu0 %v543
        %590 = vmatprep.subr.bf16.mxu0 0
        %591 = vmatpush1.bf16.msra.mxu0 %v544
        %592 = vmatprep.subr.bf16.mxu0 0
        %593 = vmatpush1.bf16.msra.mxu0 %v545
        %594 = vmatprep.mubr.bf16.mxu0 %v435
        %595 = vmatmul.mubr.bf16.gmra.mrb[0].mxu0 %v434
        %v596 = vpop.f32.mrb[0].mxu0
        %v597 = vadd.f32 0.0, %v596
        %v598 = vpop.f32.mrb[0].mxu0
        %v599 = vpop.f32.mrb[0].mxu0
        %v600 = vadd.f32 0.0, %v599
        %v601 = vpop.f32.mrb[0].mxu0
        %602 = vmatprep.mubr.bf16.mxu0 %v437
        %603 = vmatmul.mubr.bf16.gmra.mrb[0].mxu0 %v436
        %v604 = vpop.f32.mrb[0].mxu0
        %v605 = vadd.f32 0.0, %v604
        %v606 = vpop.f32.mrb[0].mxu0
        %v607 = vpop.f32.mrb[0].mxu0
        %v608 = vadd.f32 0.0, %v607
        %v609 = vpop.f32.mrb[0].mxu0
        %610 = vmatprep.mubr.bf16.mxu0 %v439
        %611 = vmatmul.mubr.bf16.gmra.mrb[0].mxu0 %v438
        %v612 = vpop.f32.mrb[0].mxu0
        %v613 = vadd.f32 0.0, %v612
        %v614 = vpop.f32.mrb[0].mxu0
        %v615 = vpop.f32.mrb[0].mxu0
        %v616 = vadd.f32 0.0, %v615
        %v617 = vpop.f32.mrb[0].mxu0
        %618 = vmatprep.mubr.bf16.mxu0 %v441
        %619 = vmatmul.mubr.bf16.gmra.mrb[0].mxu0 %v440
        %v620 = vpop.f32.mrb[0].mxu0
        %v621 = vadd.f32 0.0, %v620
        %v622 = vpop.f32.mrb[0].mxu0
        %v623 = vpop.f32.mrb[0].mxu0
        %v624 = vadd.f32 0.0, %v623
        %v625 = vpop.f32.mrb[0].mxu0
        %626 = vmatprep.mubr.bf16.mxu0 %v443
        %627 = vmatmul.mubr.bf16.gmra.mrb[0].mxu0 %v442
        %v628 = vpop.f32.mrb[0].mxu0
        %v629 = vadd.f32 0.0, %v628
        %v630 = vpop.f32.mrb[0].mxu0
        %v631 = vpop.f32.mrb[0].mxu0
        %v632 = vadd.f32 0.0, %v631
        %v633 = vpop.f32.mrb[0].mxu0
        %634 = vmatprep.mubr.bf16.mxu0 %v445
        %635 = vmatmul.mubr.bf16.gmra.mrb[0].mxu0 %v444
        %v636 = vpop.f32.mrb[0].mxu0
        %v637 = vadd.f32 0.0, %v636
        %v638 = vpop.f32.mrb[0].mxu0
        %v639 = vpop.f32.mrb[0].mxu0
        %v640 = vadd.f32 0.0, %v639
        %v641 = vpop.f32.mrb[0].mxu0
        %642 = vmatprep.mubr.bf16.mxu0 %v447
        %643 = vmatmul.mubr.bf16.gmra.mrb[0].mxu0 %v446
        %v644 = vpop.f32.mrb[0].mxu0
        %v645 = vadd.f32 0.0, %v644
        %v646 = vpop.f32.mrb[0].mxu0
        %v647 = vpop.f32.mrb[0].mxu0
        %v648 = vadd.f32 0.0, %v647
        %v649 = vpop.f32.mrb[0].mxu0
        %650 = vmatprep.mubr.bf16.mxu0 %v449
        %651 = vmatmul.mubr.bf16.gmra.mrb[0].mxu0 %v448
        %v652 = vpop.f32.mrb[0].mxu0
        %v653 = vadd.f32 0.0, %v652
        %v654 = vpop.f32.mrb[0].mxu0
        %v655 = vpop.f32.mrb[0].mxu0
        %v656 = vadd.f32 0.0, %v655
        %v657 = vpop.f32.mrb[0].mxu0
        %658 = vdwg.mxu0
        %v659 = vld [vmem:[%s2] sm:$0x1]
        %v661 = vlaneseq
        %v662 = vshrl.u32 %v661, 7
        %v663 = vsub.s32 0, %v662
        %v664 = vrot.slane %v659, %v663
        %v666 = vmul.f32 %v597, %v664
        %v667 = vmul.f32 %v600, %v664
        %v668 = vmul.f32 %v605, %v664
        %v669 = vmul.f32 %v608, %v664
        %v670 = vmul.f32 %v613, %v664
        %v671 = vmul.f32 %v616, %v664
        %v672 = vmul.f32 %v621, %v664
        %v673 = vmul.f32 %v624, %v664
        %v674 = vmul.f32 %v629, %v664
        %v675 = vmul.f32 %v632, %v664
        %v676 = vmul.f32 %v637, %v664
        %v677 = vmul.f32 %v640, %v664
        %v678 = vmul.f32 %v645, %v664
        %v679 = vmul.f32 %v648, %v664
        %v680 = vmul.f32 %v653, %v664
        %v681 = vmul.f32 %v656, %v664
        %v682 = vld [vmem:[%s3] sm:$0x1]
        %v684 = vlaneseq
        %v685 = vshrl.u32 %v684, 7
        %v686 = vsub.s32 0, %v685
        %v687 = vrot.slane %v682, %v686
        %v689 = vadd.f32 %v666, %v687
        %v690 = vadd.f32 %v667, %v687
        %v691 = vadd.f32 %v668, %v687
        %v692 = vadd.f32 %v669, %v687
        %v693 = vadd.f32 %v670, %v687
        %v694 = vadd.f32 %v671, %v687
        %v695 = vadd.f32 %v672, %v687
        %v696 = vadd.f32 %v673, %v687
        %v697 = vadd.f32 %v674, %v687
        %v698 = vadd.f32 %v675, %v687
        %v699 = vadd.f32 %v676, %v687
        %v700 = vadd.f32 %v677, %v687
        %v701 = vadd.f32 %v678, %v687
        %v702 = vadd.f32 %v679, %v687
        %v703 = vadd.f32 %v680, %v687
        %v704 = vadd.f32 %v681, %v687
        %vm705 = vcmask 257024
        %706 = vst.msk [vmem:[#allocation2] sm:$0xf] %vm705, 0
        %vm707 = vcmask 253952
        %708 = vst.msk [vmem:[#allocation2 + $0x4] sm:$0x1] %vm707, 0
        %709 = vst.msk [vmem:[#allocation2 + $0x8] sm:$0xf] %vm705, 0
        %710 = vst.msk [vmem:[#allocation2 + $0xc] sm:$0x1] %vm707, 0
        %711 = vst.msk [vmem:[#allocation2 + $0x10] sm:$0xf] %vm705, 0
        %712 = vst.msk [vmem:[#allocation2 + $0x14] sm:$0x1] %vm707, 0
        %713 = vst.msk [vmem:[#allocation2 + $0x18] sm:$0xf] %vm705, 0
        %714 = vst.msk [vmem:[#allocation2 + $0x1c] sm:$0x1] %vm707, 0
        %715 = vst.msk [vmem:[#allocation2 + $0x20] sm:$0xf] %vm705, 0
        %716 = vst.msk [vmem:[#allocation2 + $0x24] sm:$0x1] %vm707, 0
        %717 = vst.msk [vmem:[#allocation2 + $0x28] sm:$0xf] %vm705, 0
        %718 = vst.msk [vmem:[#allocation2 + $0x2c] sm:$0x1] %vm707, 0
        %719 = vst.msk [vmem:[#allocation2 + $0x30] sm:$0xf] %vm705, 0
        %720 = vst.msk [vmem:[#allocation2 + $0x34] sm:$0x1] %vm707, 0
        %721 = vst.msk [vmem:[#allocation2 + $0x38] sm:$0xf] %vm705, 0
        %722 = vst.msk [vmem:[#allocation2 + $0x3c] sm:$0x1] %vm707, 0
        %723 = vst.msk [vmem:[#allocation2 + $0x40] sm:$0xf] %vm705, 0
        %724 = vst.msk [vmem:[#allocation2 + $0x44] sm:$0x1] %vm707, 0
        %725 = vst.msk [vmem:[#allocation2 + $0x48] sm:$0xf] %vm705, 0
        %726 = vst.msk [vmem:[#allocation2 + $0x4c] sm:$0x1] %vm707, 0
        %727 = vst.msk [vmem:[#allocation2 + $0x50] sm:$0xf] %vm705, 0
        %728 = vst.msk [vmem:[#allocation2 + $0x54] sm:$0x1] %vm707, 0
        %729 = vst.msk [vmem:[#allocation2 + $0x58] sm:$0xf] %vm705, 0
        %730 = vst.msk [vmem:[#allocation2 + $0x5c] sm:$0x1] %vm707, 0
        %731 = vst.msk [vmem:[#allocation2 + $0x60] sm:$0xf] %vm705, 0
        %732 = vst.msk [vmem:[#allocation2 + $0x64] sm:$0x1] %vm707, 0
        %733 = vst.msk [vmem:[#allocation2 + $0x68] sm:$0xf] %vm705, 0
        %734 = vst.msk [vmem:[#allocation2 + $0x6c] sm:$0x1] %vm707, 0
        %735 = vst.msk [vmem:[#allocation2 + $0x70] sm:$0xf] %vm705, 0
        %736 = vst.msk [vmem:[#allocation2 + $0x74] sm:$0x1] %vm707, 0
        %737 = vst.msk [vmem:[#allocation2 + $0x78] sm:$0xf] %vm705, 0
        %738 = vst.msk [vmem:[#allocation2 + $0x7c] sm:$0x1] %vm707, 0
        %739 = vst.msk [vmem:[#allocation2 + $0x80] sm:$0xf] %vm705, 0
        %740 = vst.msk [vmem:[#allocation2 + $0x84] sm:$0x1] %vm707, 0
        %741 = vst.msk [vmem:[#allocation2 + $0x88] sm:$0xf] %vm705, 0
        %742 = vst.msk [vmem:[#allocation2 + $0x8c] sm:$0x1] %vm707, 0
        %743 = vst.msk [vmem:[#allocation2 + $0x90] sm:$0xf] %vm705, 0
        %744 = vst.msk [vmem:[#allocation2 + $0x94] sm:$0x1] %vm707, 0
        %745 = vst.msk [vmem:[#allocation2 + $0x98] sm:$0xf] %vm705, 0
        %746 = vst.msk [vmem:[#allocation2 + $0x9c] sm:$0x1] %vm707, 0
        %v747 = vpack.c.bf16 %v690, %v689
        %v748 = vpack.c.bf16 %v692, %v691
        %v749 = vpack.c.bf16 %v694, %v693
        %v750 = vpack.c.bf16 %v696, %v695
        %v751 = vpack.c.bf16 %v698, %v697
        %v752 = vpack.c.bf16 %v700, %v699
        %v753 = vpack.c.bf16 %v702, %v701
        %v754 = vpack.c.bf16 %v704, %v703
        %v763 = vunpack.c.l.b16 %v747
        %v764 = vunpack.c.h.b16 %v747
        %v765 = vunpack.c.l.b16 %v748
        %v766 = vunpack.c.h.b16 %v748
        %v767 = vunpack.c.l.b16 %v749
        %v768 = vunpack.c.h.b16 %v749
        %v769 = vunpack.c.l.b16 %v750
        %v770 = vunpack.c.h.b16 %v750
        %v771 = vunpack.c.l.b16 %v751
        %v772 = vunpack.c.h.b16 %v751
        %v773 = vunpack.c.l.b16 %v752
        %v774 = vunpack.c.h.b16 %v752
        %v775 = vunpack.c.l.b16 %v753
        %v776 = vunpack.c.h.b16 %v753
        %v777 = vunpack.c.l.b16 %v754
        %v778 = vunpack.c.h.b16 %v754
        %v779 = vpack.c.b16 %v763, %v763
        %v780 = vpack.c.b16 %v764, %v764
        %v781 = vpack.c.b16 %v765, %v765
        %v782 = vpack.c.b16 %v766, %v766
        %v783 = vpack.c.b16 %v767, %v767
        %v784 = vpack.c.b16 %v768, %v768
        %v785 = vpack.c.b16 %v769, %v769
        %v786 = vpack.c.b16 %v770, %v770
        %v787 = vpack.c.b16 %v771, %v771
        %v788 = vpack.c.b16 %v772, %v772
        %v789 = vpack.c.b16 %v773, %v773
        %v790 = vpack.c.b16 %v774, %v774
        %v791 = vpack.c.b16 %v775, %v775
        %v792 = vpack.c.b16 %v776, %v776
        %v793 = vpack.c.b16 %v777, %v777
        %v794 = vpack.c.b16 %v778, %v778
        %v796 = vshrl.u32 %v779, 16
        %v798 = vrot.slane %v796, 7
        %v799 = vshll.u32 %v779, 16
        %v801 = vor.u32 %v798, %v799
        %v802 = vrot.slane %v798, 4
        %v804 = vshrl.u32 %v780, 16
        %v806 = vrot.slane %v804, 7
        %v807 = vshll.u32 %v780, 16
        %v809 = vor.u32 %v806, %v807
        %v810 = vrot.slane %v806, 4
        %v812 = vshrl.u32 %v781, 16
        %v814 = vrot.slane %v812, 7
        %v815 = vshll.u32 %v781, 16
        %v817 = vor.u32 %v814, %v815
        %v818 = vrot.slane %v814, 4
        %v820 = vshrl.u32 %v782, 16
        %v822 = vrot.slane %v820, 7
        %v823 = vshll.u32 %v782, 16
        %v825 = vor.u32 %v822, %v823
        %v826 = vrot.slane %v822, 4
        %v828 = vshrl.u32 %v783, 16
        %v830 = vrot.slane %v828, 7
        %v831 = vshll.u32 %v783, 16
        %v833 = vor.u32 %v830, %v831
        %v834 = vrot.slane %v830, 4
        %v836 = vshrl.u32 %v784, 16
        %v838 = vrot.slane %v836, 7
        %v839 = vshll.u32 %v784, 16
        %v841 = vor.u32 %v838, %v839
        %v842 = vrot.slane %v838, 4
        %v844 = vshrl.u32 %v785, 16
        %v846 = vrot.slane %v844, 7
        %v847 = vshll.u32 %v785, 16
        %v849 = vor.u32 %v846, %v847
        %v850 = vrot.slane %v846, 4
        %v852 = vshrl.u32 %v786, 16
        %v854 = vrot.slane %v852, 7
        %v855 = vshll.u32 %v786, 16
        %v857 = vor.u32 %v854, %v855
        %v858 = vrot.slane %v854, 4
        %v860 = vshrl.u32 %v787, 16
        %v862 = vrot.slane %v860, 7
        %v863 = vshll.u32 %v787, 16
        %v865 = vor.u32 %v862, %v863
        %v866 = vrot.slane %v862, 4
        %v868 = vshrl.u32 %v788, 16
        %v870 = vrot.slane %v868, 7
        %v871 = vshll.u32 %v788, 16
        %v873 = vor.u32 %v870, %v871
        %v874 = vrot.slane %v870, 4
        %v876 = vshrl.u32 %v789, 16
        %v878 = vrot.slane %v876, 7
        %v879 = vshll.u32 %v789, 16
        %v881 = vor.u32 %v878, %v879
        %v882 = vrot.slane %v878, 4
        %v884 = vshrl.u32 %v790, 16
        %v886 = vrot.slane %v884, 7
        %v887 = vshll.u32 %v790, 16
        %v889 = vor.u32 %v886, %v887
        %v890 = vrot.slane %v886, 4
        %v892 = vshrl.u32 %v791, 16
        %v894 = vrot.slane %v892, 7
        %v895 = vshll.u32 %v791, 16
        %v897 = vor.u32 %v894, %v895
        %v898 = vrot.slane %v894, 4
        %v900 = vshrl.u32 %v792, 16
        %v902 = vrot.slane %v900, 7
        %v903 = vshll.u32 %v792, 16
        %v905 = vor.u32 %v902, %v903
        %v906 = vrot.slane %v902, 4
        %v908 = vshrl.u32 %v793, 16
        %v910 = vrot.slane %v908, 7
        %v911 = vshll.u32 %v793, 16
        %v913 = vor.u32 %v910, %v911
        %v914 = vrot.slane %v910, 4
        %v916 = vshrl.u32 %v794, 16
        %v918 = vrot.slane %v916, 7
        %v919 = vshll.u32 %v794, 16
        %v921 = vor.u32 %v918, %v919
        %v922 = vrot.slane %v918, 4
        %s955 = scalar_lea.vmem [#allocation2], 8
        %vm956 = vcmask 257024
        %vm957 = vsmask.f32 7938
        %vm958 = vmand %vm956, %vm957
        %v959 = vld [vmem:[%s955] sm:$0xf]
        %v960 = vsel %vm958, %v801, %v959
        %961 = vst [vmem:[%s955] sm:$0xf] %v960
        %vm962 = vcmask 253952
        %vm963 = vsmask.f32 256
        %vm964 = vmand %vm962, %vm963
        %v965 = vld [vmem:[%s955 + $0x4] sm:$0x1]
        %v966 = vsel %vm964, %v802, %v965
        %967 = vst [vmem:[%s955 + $0x4] sm:$0x1] %v966
        %v968 = vld [vmem:[%s955 + $0x8] sm:$0xf]
        %v969 = vsel %vm958, %v809, %v968
        %970 = vst [vmem:[%s955 + $0x8] sm:$0xf] %v969
        %v971 = vld [vmem:[%s955 + $0xc] sm:$0x1]
        %v972 = vsel %vm964, %v810, %v971
        %973 = vst [vmem:[%s955 + $0xc] sm:$0x1] %v972
        %v974 = vld [vmem:[%s955 + $0x10] sm:$0xf]
        %v975 = vsel %vm958, %v817, %v974
        %976 = vst [vmem:[%s955 + $0x10] sm:$0xf] %v975
        %v977 = vld [vmem:[%s955 + $0x14] sm:$0x1]
        %v978 = vsel %vm964, %v818, %v977
        %979 = vst [vmem:[%s955 + $0x14] sm:$0x1] %v978
        %v980 = vld [vmem:[%s955 + $0x18] sm:$0xf]
        %v981 = vsel %vm958, %v825, %v980
        %982 = vst [vmem:[%s955 + $0x18] sm:$0xf] %v981
        %v983 = vld [vmem:[%s955 + $0x1c] sm:$0x1]
        %v984 = vsel %vm964, %v826, %v983
        %985 = vst [vmem:[%s955 + $0x1c] sm:$0x1] %v984
        %v986 = vld [vmem:[%s955 + $0x20] sm:$0xf]
        %v987 = vsel %vm958, %v833, %v986
        %988 = vst [vmem:[%s955 + $0x20] sm:$0xf] %v987
        %v989 = vld [vmem:[%s955 + $0x24] sm:$0x1]
        %v990 = vsel %vm964, %v834, %v989
        %991 = vst [vmem:[%s955 + $0x24] sm:$0x1] %v990
        %v992 = vld [vmem:[%s955 + $0x28] sm:$0xf]
        %v993 = vsel %vm958, %v841, %v992
        %994 = vst [vmem:[%s955 + $0x28] sm:$0xf] %v993
        %v995 = vld [vmem:[%s955 + $0x2c] sm:$0x1]
        %v996 = vsel %vm964, %v842, %v995
        %997 = vst [vmem:[%s955 + $0x2c] sm:$0x1] %v996
        %v998 = vld [vmem:[%s955 + $0x30] sm:$0xf]
        %v999 = vsel %vm958, %v849, %v998
        %1000 = vst [vmem:[%s955 + $0x30] sm:$0xf] %v999
        %v1001 = vld [vmem:[%s955 + $0x34] sm:$0x1]
        %v1002 = vsel %vm964, %v850, %v1001
        %1003 = vst [vmem:[%s955 + $0x34] sm:$0x1] %v1002
        %v1004 = vld [vmem:[%s955 + $0x38] sm:$0xf]
        %v1005 = vsel %vm958, %v857, %v1004
        %1006 = vst [vmem:[%s955 + $0x38] sm:$0xf] %v1005
        %v1007 = vld [vmem:[%s955 + $0x3c] sm:$0x1]
        %v1008 = vsel %vm964, %v858, %v1007
        %1009 = vst [vmem:[%s955 + $0x3c] sm:$0x1] %v1008
        %v1010 = vld [vmem:[%s955 + $0x50] sm:$0xf]
        %v1011 = vsel %vm958, %v865, %v1010
        %1012 = vst [vmem:[%s955 + $0x50] sm:$0xf] %v1011
        %v1013 = vld [vmem:[%s955 + $0x54] sm:$0x1]
        %v1014 = vsel %vm964, %v866, %v1013
        %1015 = vst [vmem:[%s955 + $0x54] sm:$0x1] %v1014
        %v1016 = vld [vmem:[%s955 + $0x58] sm:$0xf]
        %v1017 = vsel %vm958, %v873, %v1016
        %1018 = vst [vmem:[%s955 + $0x58] sm:$0xf] %v1017
        %v1019 = vld [vmem:[%s955 + $0x5c] sm:$0x1]
        %v1020 = vsel %vm964, %v874, %v1019
        %1021 = vst [vmem:[%s955 + $0x5c] sm:$0x1] %v1020
        %v1022 = vld [vmem:[%s955 + $0x60] sm:$0xf]
        %v1023 = vsel %vm958, %v881, %v1022
        %1024 = vst [vmem:[%s955 + $0x60] sm:$0xf] %v1023
        %v1025 = vld [vmem:[%s955 + $0x64] sm:$0x1]
        %v1026 = vsel %vm964, %v882, %v1025
        %1027 = vst [vmem:[%s955 + $0x64] sm:$0x1] %v1026
        %v1028 = vld [vmem:[%s955 + $0x68] sm:$0xf]
        %v1029 = vsel %vm958, %v889, %v1028
        %1030 = vst [vmem:[%s955 + $0x68] sm:$0xf] %v1029
        %v1031 = vld [vmem:[%s955 + $0x6c] sm:$0x1]
        %v1032 = vsel %vm964, %v890, %v1031
        %1033 = vst [vmem:[%s955 + $0x6c] sm:$0x1] %v1032
        %v1034 = vld [vmem:[%s955 + $0x70] sm:$0xf]
        %v1035 = vsel %vm958, %v897, %v1034
        %1036 = vst [vmem:[%s955 + $0x70] sm:$0xf] %v1035
        %v1037 = vld [vmem:[%s955 + $0x74] sm:$0x1]
        %v1038 = vsel %vm964, %v898, %v1037
        %1039 = vst [vmem:[%s955 + $0x74] sm:$0x1] %v1038
        %v1040 = vld [vmem:[%s955 + $0x78] sm:$0xf]
        %v1041 = vsel %vm958, %v905, %v1040
        %1042 = vst [vmem:[%s955 + $0x78] sm:$0xf] %v1041
        %v1043 = vld [vmem:[%s955 + $0x7c] sm:$0x1]
        %v1044 = vsel %vm964, %v906, %v1043
        %1045 = vst [vmem:[%s955 + $0x7c] sm:$0x1] %v1044
        %v1046 = vld [vmem:[%s955 + $0x80] sm:$0xf]
        %v1047 = vsel %vm958, %v913, %v1046
        %1048 = vst [vmem:[%s955 + $0x80] sm:$0xf] %v1047
        %v1049 = vld [vmem:[%s955 + $0x84] sm:$0x1]
        %v1050 = vsel %vm964, %v914, %v1049
        %1051 = vst [vmem:[%s955 + $0x84] sm:$0x1] %v1050
        %v1052 = vld [vmem:[%s955 + $0x88] sm:$0xf]
        %v1053 = vsel %vm958, %v921, %v1052
        %1054 = vst [vmem:[%s955 + $0x88] sm:$0xf] %v1053
        %v1055 = vld [vmem:[%s955 + $0x8c] sm:$0x1]
        %v1056 = vsel %vm964, %v922, %v1055
        %1057 = vst [vmem:[%s955 + $0x8c] sm:$0x1] %v1056
        %v1058 = vld [vmem:[#allocation2] sm:$0xf]
        %v1059 = vld [vmem:[#allocation2 + $0x8] sm:$0xf]
        %v1060 = vld [vmem:[#allocation2 + $0x10] sm:$0xf]
        %v1061 = vld [vmem:[#allocation2 + $0x18] sm:$0xf]
        %v1062 = vld [vmem:[#allocation2 + $0x20] sm:$0xf]
        %v1063 = vld [vmem:[#allocation2 + $0x28] sm:$0xf]
        %v1064 = vld [vmem:[#allocation2 + $0x30] sm:$0xf]
        %v1065 = vld [vmem:[#allocation2 + $0x38] sm:$0xf]
        %v1066 = vld [vmem:[#allocation2 + $0x50] sm:$0xf]
        %v1067 = vld [vmem:[#allocation2 + $0x58] sm:$0xf]
        %v1068 = vld [vmem:[#allocation2 + $0x60] sm:$0xf]
        %v1069 = vld [vmem:[#allocation2 + $0x68] sm:$0xf]
        %v1070 = vld [vmem:[#allocation2 + $0x70] sm:$0xf]
        %v1071 = vld [vmem:[#allocation2 + $0x78] sm:$0xf]
        %v1072 = vld [vmem:[#allocation2 + $0x80] sm:$0xf]
        %v1073 = vld [vmem:[#allocation2 + $0x88] sm:$0xf]
        %v1074 = vld [vmem:[#allocation2 + $0x4] sm:$0x1]
        %v1075 = vld [vmem:[#allocation2 + $0xc] sm:$0x1]
        %v1076 = vld [vmem:[#allocation2 + $0x14] sm:$0x1]
        %v1077 = vld [vmem:[#allocation2 + $0x1c] sm:$0x1]
        %v1078 = vld [vmem:[#allocation2 + $0x24] sm:$0x1]
        %v1079 = vld [vmem:[#allocation2 + $0x2c] sm:$0x1]
        %v1080 = vld [vmem:[#allocation2 + $0x34] sm:$0x1]
        %v1081 = vld [vmem:[#allocation2 + $0x3c] sm:$0x1]
        %v1082 = vld [vmem:[#allocation2 + $0x54] sm:$0x1]
        %v1083 = vld [vmem:[#allocation2 + $0x5c] sm:$0x1]
        %v1084 = vld [vmem:[#allocation2 + $0x64] sm:$0x1]
        %v1085 = vld [vmem:[#allocation2 + $0x6c] sm:$0x1]
        %v1086 = vld [vmem:[#allocation2 + $0x74] sm:$0x1]
        %v1087 = vld [vmem:[#allocation2 + $0x7c] sm:$0x1]
        %v1088 = vld [vmem:[#allocation2 + $0x84] sm:$0x1]
        %v1089 = vld [vmem:[#allocation2 + $0x8c] sm:$0x1]
        %vm1090 = vsmask.f32 3328
        %vm1091 = vsmask.f32 7440
        %vm1092 = vmor %vm1090, %vm1091
        %v1094 = vshrl.u32 %v1058, 16
        %v1096 = vrot.slane %v1094, 4
        %v1097 = vshll.u32 %v1058, 16
        %v1099 = vrot.slane %v1097, 5
        %v1100 = vor.u32 %v1096, %v1099
        %v1101 = vrot.slane %v1100, 4
        %v1103 = vshll.u32 %v1074, 16
        %v1105 = vrot.slane %v1103, 5
        %v1106 = vsel %vm1092, %v1101, %v1105
        %v1108 = vshrl.u32 %v1059, 16
        %v1110 = vrot.slane %v1108, 4
        %v1111 = vshll.u32 %v1059, 16
        %v1113 = vrot.slane %v1111, 5
        %v1114 = vor.u32 %v1110, %v1113
        %v1115 = vrot.slane %v1114, 4
        %v1117 = vshll.u32 %v1075, 16
        %v1119 = vrot.slane %v1117, 5
        %v1120 = vsel %vm1092, %v1115, %v1119
        %v1122 = vshrl.u32 %v1060, 16
        %v1124 = vrot.slane %v1122, 4
        %v1125 = vshll.u32 %v1060, 16
        %v1127 = vrot.slane %v1125, 5
        %v1128 = vor.u32 %v1124, %v1127
        %v1129 = vrot.slane %v1128, 4
        %v1131 = vshll.u32 %v1076, 16
        %v1133 = vrot.slane %v1131, 5
        %v1134 = vsel %vm1092, %v1129, %v1133
        %v1136 = vshrl.u32 %v1061, 16
        %v1138 = vrot.slane %v1136, 4
        %v1139 = vshll.u32 %v1061, 16
        %v1141 = vrot.slane %v1139, 5
        %v1142 = vor.u32 %v1138, %v1141
        %v1143 = vrot.slane %v1142, 4
        %v1145 = vshll.u32 %v1077, 16
        %v1147 = vrot.slane %v1145, 5
        %v1148 = vsel %vm1092, %v1143, %v1147
        %v1150 = vshrl.u32 %v1062, 16
        %v1152 = vrot.slane %v1150, 4
        %v1153 = vshll.u32 %v1062, 16
        %v1155 = vrot.slane %v1153, 5
        %v1156 = vor.u32 %v1152, %v1155
        %v1157 = vrot.slane %v1156, 4
        %v1159 = vshll.u32 %v1078, 16
        %v1161 = vrot.slane %v1159, 5
        %v1162 = vsel %vm1092, %v1157, %v1161
        %v1164 = vshrl.u32 %v1063, 16
        %v1166 = vrot.slane %v1164, 4
        %v1167 = vshll.u32 %v1063, 16
        %v1169 = vrot.slane %v1167, 5
        %v1170 = vor.u32 %v1166, %v1169
        %v1171 = vrot.slane %v1170, 4
        %v1173 = vshll.u32 %v1079, 16
        %v1175 = vrot.slane %v1173, 5
        %v1176 = vsel %vm1092, %v1171, %v1175
        %v1178 = vshrl.u32 %v1064, 16
        %v1180 = vrot.slane %v1178, 4
        %v1181 = vshll.u32 %v1064, 16
        %v1183 = vrot.slane %v1181, 5
        %v1184 = vor.u32 %v1180, %v1183
        %v1185 = vrot.slane %v1184, 4
        %v1187 = vshll.u32 %v1080, 16
        %v1189 = vrot.slane %v1187, 5
        %v1190 = vsel %vm1092, %v1185, %v1189
        %v1192 = vshrl.u32 %v1065, 16
        %v1194 = vrot.slane %v1192, 4
        %v1195 = vshll.u32 %v1065, 16
        %v1197 = vrot.slane %v1195, 5
        %v1198 = vor.u32 %v1194, %v1197
        %v1199 = vrot.slane %v1198, 4
        %v1201 = vshll.u32 %v1081, 16
        %v1203 = vrot.slane %v1201, 5
        %v1204 = vsel %vm1092, %v1199, %v1203
        %v1206 = vshrl.u32 %v1066, 16
        %v1208 = vrot.slane %v1206, 4
        %v1209 = vshll.u32 %v1066, 16
        %v1211 = vrot.slane %v1209, 5
        %v1212 = vor.u32 %v1208, %v1211
        %v1213 = vrot.slane %v1212, 4
        %v1215 = vshll.u32 %v1082, 16
        %v1217 = vrot.slane %v1215, 5
        %v1218 = vsel %vm1092, %v1213, %v1217
        %v1220 = vshrl.u32 %v1067, 16
        %v1222 = vrot.slane %v1220, 4
        %v1223 = vshll.u32 %v1067, 16
        %v1225 = vrot.slane %v1223, 5
        %v1226 = vor.u32 %v1222, %v1225
        %v1227 = vrot.slane %v1226, 4
        %v1229 = vshll.u32 %v1083, 16
        %v1231 = vrot.slane %v1229, 5
        %v1232 = vsel %vm1092, %v1227, %v1231
        %v1234 = vshrl.u32 %v1068, 16
        %v1236 = vrot.slane %v1234, 4
        %v1237 = vshll.u32 %v1068, 16
        %v1239 = vrot.slane %v1237, 5
        %v1240 = vor.u32 %v1236, %v1239
        %v1241 = vrot.slane %v1240, 4
        %v1243 = vshll.u32 %v1084, 16
        %v1245 = vrot.slane %v1243, 5
        %v1246 = vsel %vm1092, %v1241, %v1245
        %v1248 = vshrl.u32 %v1069, 16
        %v1250 = vrot.slane %v1248, 4
        %v1251 = vshll.u32 %v1069, 16
        %v1253 = vrot.slane %v1251, 5
        %v1254 = vor.u32 %v1250, %v1253
        %v1255 = vrot.slane %v1254, 4
        %v1257 = vshll.u32 %v1085, 16
        %v1259 = vrot.slane %v1257, 5
        %v1260 = vsel %vm1092, %v1255, %v1259
        %v1262 = vshrl.u32 %v1070, 16
        %v1264 = vrot.slane %v1262, 4
        %v1265 = vshll.u32 %v1070, 16
        %v1267 = vrot.slane %v1265, 5
        %v1268 = vor.u32 %v1264, %v1267
        %v1269 = vrot.slane %v1268, 4
        %v1271 = vshll.u32 %v1086, 16
        %v1273 = vrot.slane %v1271, 5
        %v1274 = vsel %vm1092, %v1269, %v1273
        %v1276 = vshrl.u32 %v1071, 16
        %v1278 = vrot.slane %v1276, 4
        %v1279 = vshll.u32 %v1071, 16
        %v1281 = vrot.slane %v1279, 5
        %v1282 = vor.u32 %v1278, %v1281
        %v1283 = vrot.slane %v1282, 4
        %v1285 = vshll.u32 %v1087, 16
        %v1287 = vrot.slane %v1285, 5
        %v1288 = vsel %vm1092, %v1283, %v1287
        %v1290 = vshrl.u32 %v1072, 16
        %v1292 = vrot.slane %v1290, 4
        %v1293 = vshll.u32 %v1072, 16
        %v1295 = vrot.slane %v1293, 5
        %v1296 = vor.u32 %v1292, %v1295
        %v1297 = vrot.slane %v1296, 4
        %v1299 = vshll.u32 %v1088, 16
        %v1301 = vrot.slane %v1299, 5
        %v1302 = vsel %vm1092, %v1297, %v1301
        %v1304 = vshrl.u32 %v1073, 16
        %v1306 = vrot.slane %v1304, 4
        %v1307 = vshll.u32 %v1073, 16
        %v1309 = vrot.slane %v1307, 5
        %v1310 = vor.u32 %v1306, %v1309
        %v1311 = vrot.slane %v1310, 4
        %v1313 = vshll.u32 %v1089, 16
        %v1315 = vrot.slane %v1313, 5
        %v1316 = vsel %vm1092, %v1311, %v1315
        %v1317 = vld [vmem:[#allocation2] sm:$0xe]
        %v1318 = vld [vmem:[#allocation2 + $0x8] sm:$0xe]
        %v1319 = vld [vmem:[#allocation2 + $0x10] sm:$0xe]
        %v1320 = vld [vmem:[#allocation2 + $0x18] sm:$0xe]
        %v1321 = vld [vmem:[#allocation2 + $0x20] sm:$0xe]
        %v1322 = vld [vmem:[#allocation2 + $0x28] sm:$0xe]
        %v1323 = vld [vmem:[#allocation2 + $0x30] sm:$0xe]
        %v1324 = vld [vmem:[#allocation2 + $0x38] sm:$0xe]
        %v1325 = vld [vmem:[#allocation2 + $0x50] sm:$0xe]
        %v1326 = vld [vmem:[#allocation2 + $0x58] sm:$0xe]
        %v1327 = vld [vmem:[#allocation2 + $0x60] sm:$0xe]
        %v1328 = vld [vmem:[#allocation2 + $0x68] sm:$0xe]
        %v1329 = vld [vmem:[#allocation2 + $0x70] sm:$0xe]
        %v1330 = vld [vmem:[#allocation2 + $0x78] sm:$0xe]
        %v1331 = vld [vmem:[#allocation2 + $0x80] sm:$0xe]
        %v1332 = vld [vmem:[#allocation2 + $0x88] sm:$0xe]
        %vm1365 = vcmask 1042432
        %vm1366 = vcmask 1046532
        %vm1367 = vmor %vm1365, %vm1366
        %v1368 = vrot.slane %v1317, 5
        %v1369 = vrot.slane %v1368, 4
        %v1370 = vrot.slane %v1074, 5
        %v1371 = vsel %vm1367, %v1369, %v1370
        %v1372 = vrot.slane %v1318, 5
        %v1373 = vrot.slane %v1372, 4
        %v1374 = vrot.slane %v1075, 5
        %v1375 = vsel %vm1367, %v1373, %v1374
        %v1376 = vrot.slane %v1319, 5
        %v1377 = vrot.slane %v1376, 4
        %v1378 = vrot.slane %v1076, 5
        %v1379 = vsel %vm1367, %v1377, %v1378
        %v1380 = vrot.slane %v1320, 5
        %v1381 = vrot.slane %v1380, 4
        %v1382 = vrot.slane %v1077, 5
        %v1383 = vsel %vm1367, %v1381, %v1382
        %v1384 = vrot.slane %v1321, 5
        %v1385 = vrot.slane %v1384, 4
        %v1386 = vrot.slane %v1078, 5
        %v1387 = vsel %vm1367, %v1385, %v1386
        %v1388 = vrot.slane %v1322, 5
        %v1389 = vrot.slane %v1388, 4
        %v1390 = vrot.slane %v1079, 5
        %v1391 = vsel %vm1367, %v1389, %v1390
        %v1392 = vrot.slane %v1323, 5
        %v1393 = vrot.slane %v1392, 4
        %v1394 = vrot.slane %v1080, 5
        %v1395 = vsel %vm1367, %v1393, %v1394
        %v1396 = vrot.slane %v1324, 5
        %v1397 = vrot.slane %v1396, 4
        %v1398 = vrot.slane %v1081, 5
        %v1399 = vsel %vm1367, %v1397, %v1398
        %v1400 = vrot.slane %v1325, 5
        %v1401 = vrot.slane %v1400, 4
        %v1402 = vrot.slane %v1082, 5
        %v1403 = vsel %vm1367, %v1401, %v1402
        %v1404 = vrot.slane %v1326, 5
        %v1405 = vrot.slane %v1404, 4
        %v1406 = vrot.slane %v1083, 5
        %v1407 = vsel %vm1367, %v1405, %v1406
        %v1408 = vrot.slane %v1327, 5
        %v1409 = vrot.slane %v1408, 4
        %v1410 = vrot.slane %v1084, 5
        %v1411 = vsel %vm1367, %v1409, %v1410
        %v1412 = vrot.slane %v1328, 5
        %v1413 = vrot.slane %v1412, 4
        %v1414 = vrot.slane %v1085, 5
        %v1415 = vsel %vm1367, %v1413, %v1414
        %v1416 = vrot.slane %v1329, 5
        %v1417 = vrot.slane %v1416, 4
        %v1418 = vrot.slane %v1086, 5
        %v1419 = vsel %vm1367, %v1417, %v1418
        %v1420 = vrot.slane %v1330, 5
        %v1421 = vrot.slane %v1420, 4
        %v1422 = vrot.slane %v1087, 5
        %v1423 = vsel %vm1367, %v1421, %v1422
        %v1424 = vrot.slane %v1331, 5
        %v1425 = vrot.slane %v1424, 4
        %v1426 = vrot.slane %v1088, 5
        %v1427 = vsel %vm1367, %v1425, %v1426
        %v1428 = vrot.slane %v1332, 5
        %v1429 = vrot.slane %v1428, 4
        %v1430 = vrot.slane %v1089, 5
        %v1431 = vsel %vm1367, %v1429, %v1430
        %v1432 = vld [vmem:[%s955] sm:$0xf]
        %v1433 = vld [vmem:[%s955 + $0x8] sm:$0xf]
        %v1434 = vld [vmem:[%s955 + $0x10] sm:$0xf]
        %v1435 = vld [vmem:[%s955 + $0x18] sm:$0xf]
        %v1436 = vld [vmem:[%s955 + $0x20] sm:$0xf]
        %v1437 = vld [vmem:[%s955 + $0x28] sm:$0xf]
        %v1438 = vld [vmem:[%s955 + $0x30] sm:$0xf]
        %v1439 = vld [vmem:[%s955 + $0x38] sm:$0xf]
        %v1440 = vld [vmem:[%s955 + $0x50] sm:$0xf]
        %v1441 = vld [vmem:[%s955 + $0x58] sm:$0xf]
        %v1442 = vld [vmem:[%s955 + $0x60] sm:$0xf]
        %v1443 = vld [vmem:[%s955 + $0x68] sm:$0xf]
        %v1444 = vld [vmem:[%s955 + $0x70] sm:$0xf]
        %v1445 = vld [vmem:[%s955 + $0x78] sm:$0xf]
        %v1446 = vld [vmem:[%s955 + $0x80] sm:$0xf]
        %v1447 = vld [vmem:[%s955 + $0x88] sm:$0xf]
        %v1448 = vld [vmem:[%s955 + $0x4] sm:$0x1]
        %v1449 = vld [vmem:[%s955 + $0xc] sm:$0x1]
        %v1450 = vld [vmem:[%s955 + $0x14] sm:$0x1]
        %v1451 = vld [vmem:[%s955 + $0x1c] sm:$0x1]
        %v1452 = vld [vmem:[%s955 + $0x24] sm:$0x1]
        %v1453 = vld [vmem:[%s955 + $0x2c] sm:$0x1]
        %v1454 = vld [vmem:[%s955 + $0x34] sm:$0x1]
        %v1455 = vld [vmem:[%s955 + $0x3c] sm:$0x1]
        %v1456 = vld [vmem:[%s955 + $0x54] sm:$0x1]
        %v1457 = vld [vmem:[%s955 + $0x5c] sm:$0x1]
        %v1458 = vld [vmem:[%s955 + $0x64] sm:$0x1]
        %v1459 = vld [vmem:[%s955 + $0x6c] sm:$0x1]
        %v1460 = vld [vmem:[%s955 + $0x74] sm:$0x1]
        %v1461 = vld [vmem:[%s955 + $0x7c] sm:$0x1]
        %v1462 = vld [vmem:[%s955 + $0x84] sm:$0x1]
        %v1463 = vld [vmem:[%s955 + $0x8c] sm:$0x1]
        %v1465 = vshrl.u32 %v1432, 16
        %v1467 = vrot.slane %v1465, 4
        %v1468 = vshll.u32 %v1432, 16
        %v1470 = vrot.slane %v1468, 5
        %v1471 = vor.u32 %v1467, %v1470
        %v1472 = vrot.slane %v1471, 4
        %v1474 = vshll.u32 %v1448, 16
        %v1476 = vrot.slane %v1474, 5
        %v1477 = vsel %vm1092, %v1472, %v1476
        %v1479 = vshrl.u32 %v1433, 16
        %v1481 = vrot.slane %v1479, 4
        %v1482 = vshll.u32 %v1433, 16
        %v1484 = vrot.slane %v1482, 5
        %v1485 = vor.u32 %v1481, %v1484
        %v1486 = vrot.slane %v1485, 4
        %v1488 = vshll.u32 %v1449, 16
        %v1490 = vrot.slane %v1488, 5
        %v1491 = vsel %vm1092, %v1486, %v1490
        %v1493 = vshrl.u32 %v1434, 16
        %v1495 = vrot.slane %v1493, 4
        %v1496 = vshll.u32 %v1434, 16
        %v1498 = vrot.slane %v1496, 5
        %v1499 = vor.u32 %v1495, %v1498
        %v1500 = vrot.slane %v1499, 4
        %v1502 = vshll.u32 %v1450, 16
        %v1504 = vrot.slane %v1502, 5
        %v1505 = vsel %vm1092, %v1500, %v1504
        %v1507 = vshrl.u32 %v1435, 16
        %v1509 = vrot.slane %v1507, 4
        %v1510 = vshll.u32 %v1435, 16
        %v1512 = vrot.slane %v1510, 5
        %v1513 = vor.u32 %v1509, %v1512
        %v1514 = vrot.slane %v1513, 4
        %v1516 = vshll.u32 %v1451, 16
        %v1518 = vrot.slane %v1516, 5
        %v1519 = vsel %vm1092, %v1514, %v1518
        %v1521 = vshrl.u32 %v1436, 16
        %v1523 = vrot.slane %v1521, 4
        %v1524 = vshll.u32 %v1436, 16
        %v1526 = vrot.slane %v1524, 5
        %v1527 = vor.u32 %v1523, %v1526
        %v1528 = vrot.slane %v1527, 4
        %v1530 = vshll.u32 %v1452, 16
        %v1532 = vrot.slane %v1530, 5
        %v1533 = vsel %vm1092, %v1528, %v1532
        %v1535 = vshrl.u32 %v1437, 16
        %v1537 = vrot.slane %v1535, 4
        %v1538 = vshll.u32 %v1437, 16
        %v1540 = vrot.slane %v1538, 5
        %v1541 = vor.u32 %v1537, %v1540
        %v1542 = vrot.slane %v1541, 4
        %v1544 = vshll.u32 %v1453, 16
        %v1546 = vrot.slane %v1544, 5
        %v1547 = vsel %vm1092, %v1542, %v1546
        %v1549 = vshrl.u32 %v1438, 16
        %v1551 = vrot.slane %v1549, 4
        %v1552 = vshll.u32 %v1438, 16
        %v1554 = vrot.slane %v1552, 5
        %v1555 = vor.u32 %v1551, %v1554
        %v1556 = vrot.slane %v1555, 4
        %v1558 = vshll.u32 %v1454, 16
        %v1560 = vrot.slane %v1558, 5
        %v1561 = vsel %vm1092, %v1556, %v1560
        %v1563 = vshrl.u32 %v1439, 16
        %v1565 = vrot.slane %v1563, 4
        %v1566 = vshll.u32 %v1439, 16
        %v1568 = vrot.slane %v1566, 5
        %v1569 = vor.u32 %v1565, %v1568
        %v1570 = vrot.slane %v1569, 4
        %v1572 = vshll.u32 %v1455, 16
        %v1574 = vrot.slane %v1572, 5
        %v1575 = vsel %vm1092, %v1570, %v1574
        %v1577 = vshrl.u32 %v1440, 16
        %v1579 = vrot.slane %v1577, 4
        %v1580 = vshll.u32 %v1440, 16
        %v1582 = vrot.slane %v1580, 5
        %v1583 = vor.u32 %v1579, %v1582
        %v1584 = vrot.slane %v1583, 4
        %v1586 = vshll.u32 %v1456, 16
        %v1588 = vrot.slane %v1586, 5
        %v1589 = vsel %vm1092, %v1584, %v1588
        %v1591 = vshrl.u32 %v1441, 16
        %v1593 = vrot.slane %v1591, 4
        %v1594 = vshll.u32 %v1441, 16
        %v1596 = vrot.slane %v1594, 5
        %v1597 = vor.u32 %v1593, %v1596
        %v1598 = vrot.slane %v1597, 4
        %v1600 = vshll.u32 %v1457, 16
        %v1602 = vrot.slane %v1600, 5
        %v1603 = vsel %vm1092, %v1598, %v1602
        %v1605 = vshrl.u32 %v1442, 16
        %v1607 = vrot.slane %v1605, 4
        %v1608 = vshll.u32 %v1442, 16
        %v1610 = vrot.slane %v1608, 5
        %v1611 = vor.u32 %v1607, %v1610
        %v1612 = vrot.slane %v1611, 4
        %v1614 = vshll.u32 %v1458, 16
        %v1616 = vrot.slane %v1614, 5
        %v1617 = vsel %vm1092, %v1612, %v1616
        %v1619 = vshrl.u32 %v1443, 16
        %v1621 = vrot.slane %v1619, 4
        %v1622 = vshll.u32 %v1443, 16
        %v1624 = vrot.slane %v1622, 5
        %v1625 = vor.u32 %v1621, %v1624
        %v1626 = vrot.slane %v1625, 4
        %v1628 = vshll.u32 %v1459, 16
        %v1630 = vrot.slane %v1628, 5
        %v1631 = vsel %vm1092, %v1626, %v1630
        %v1633 = vshrl.u32 %v1444, 16
        %v1635 = vrot.slane %v1633, 4
        %v1636 = vshll.u32 %v1444, 16
        %v1638 = vrot.slane %v1636, 5
        %v1639 = vor.u32 %v1635, %v1638
        %v1640 = vrot.slane %v1639, 4
        %v1642 = vshll.u32 %v1460, 16
        %v1644 = vrot.slane %v1642, 5
        %v1645 = vsel %vm1092, %v1640, %v1644
        %v1647 = vshrl.u32 %v1445, 16
        %v1649 = vrot.slane %v1647, 4
        %v1650 = vshll.u32 %v1445, 16
        %v1652 = vrot.slane %v1650, 5
        %v1653 = vor.u32 %v1649, %v1652
        %v1654 = vrot.slane %v1653, 4
        %v1656 = vshll.u32 %v1461, 16
        %v1658 = vrot.slane %v1656, 5
        %v1659 = vsel %vm1092, %v1654, %v1658
        %v1661 = vshrl.u32 %v1446, 16
        %v1663 = vrot.slane %v1661, 4
        %v1664 = vshll.u32 %v1446, 16
        %v1666 = vrot.slane %v1664, 5
        %v1667 = vor.u32 %v1663, %v1666
        %v1668 = vrot.slane %v1667, 4
        %v1670 = vshll.u32 %v1462, 16
        %v1672 = vrot.slane %v1670, 5
        %v1673 = vsel %vm1092, %v1668, %v1672
        %v1675 = vshrl.u32 %v1447, 16
        %v1677 = vrot.slane %v1675, 4
        %v1678 = vshll.u32 %v1447, 16
        %v1680 = vrot.slane %v1678, 5
        %v1681 = vor.u32 %v1677, %v1680
        %v1682 = vrot.slane %v1681, 4
        %v1684 = vshll.u32 %v1463, 16
        %v1686 = vrot.slane %v1684, 5
        %v1687 = vsel %vm1092, %v1682, %v1686
        %v1688 = vld [vmem:[%s955] sm:$0xe]
        %v1689 = vld [vmem:[%s955 + $0x8] sm:$0xe]
        %v1690 = vld [vmem:[%s955 + $0x10] sm:$0xe]
        %v1691 = vld [vmem:[%s955 + $0x18] sm:$0xe]
        %v1692 = vld [vmem:[%s955 + $0x20] sm:$0xe]
        %v1693 = vld [vmem:[%s955 + $0x28] sm:$0xe]
        %v1694 = vld [vmem:[%s955 + $0x30] sm:$0xe]
        %v1695 = vld [vmem:[%s955 + $0x38] sm:$0xe]
        %v1696 = vld [vmem:[%s955 + $0x50] sm:$0xe]
        %v1697 = vld [vmem:[%s955 + $0x58] sm:$0xe]
        %v1698 = vld [vmem:[%s955 + $0x60] sm:$0xe]
        %v1699 = vld [vmem:[%s955 + $0x68] sm:$0xe]
        %v1700 = vld [vmem:[%s955 + $0x70] sm:$0xe]
        %v1701 = vld [vmem:[%s955 + $0x78] sm:$0xe]
        %v1702 = vld [vmem:[%s955 + $0x80] sm:$0xe]
        %v1703 = vld [vmem:[%s955 + $0x88] sm:$0xe]
        %v1736 = vrot.slane %v1688, 5
        %v1737 = vrot.slane %v1736, 4
        %v1738 = vrot.slane %v1448, 5
        %v1739 = vsel %vm1367, %v1737, %v1738
        %v1740 = vrot.slane %v1689, 5
        %v1741 = vrot.slane %v1740, 4
        %v1742 = vrot.slane %v1449, 5
        %v1743 = vsel %vm1367, %v1741, %v1742
        %v1744 = vrot.slane %v1690, 5
        %v1745 = vrot.slane %v1744, 4
        %v1746 = vrot.slane %v1450, 5
        %v1747 = vsel %vm1367, %v1745, %v1746
        %v1748 = vrot.slane %v1691, 5
        %v1749 = vrot.slane %v1748, 4
        %v1750 = vrot.slane %v1451, 5
        %v1751 = vsel %vm1367, %v1749, %v1750
        %v1752 = vrot.slane %v1692, 5
        %v1753 = vrot.slane %v1752, 4
        %v1754 = vrot.slane %v1452, 5
        %v1755 = vsel %vm1367, %v1753, %v1754
        %v1756 = vrot.slane %v1693, 5
        %v1757 = vrot.slane %v1756, 4
        %v1758 = vrot.slane %v1453, 5
        %v1759 = vsel %vm1367, %v1757, %v1758
        %v1760 = vrot.slane %v1694, 5
        %v1761 = vrot.slane %v1760, 4
        %v1762 = vrot.slane %v1454, 5
        %v1763 = vsel %vm1367, %v1761, %v1762
        %v1764 = vrot.slane %v1695, 5
        %v1765 = vrot.slane %v1764, 4
        %v1766 = vrot.slane %v1455, 5
        %v1767 = vsel %vm1367, %v1765, %v1766
        %v1768 = vrot.slane %v1696, 5
        %v1769 = vrot.slane %v1768, 4
        %v1770 = vrot.slane %v1456, 5
        %v1771 = vsel %vm1367, %v1769, %v1770
        %v1772 = vrot.slane %v1697, 5
        %v1773 = vrot.slane %v1772, 4
        %v1774 = vrot.slane %v1457, 5
        %v1775 = vsel %vm1367, %v1773, %v1774
        %v1776 = vrot.slane %v1698, 5
        %v1777 = vrot.slane %v1776, 4
        %v1778 = vrot.slane %v1458, 5
        %v1779 = vsel %vm1367, %v1777, %v1778
        %v1780 = vrot.slane %v1699, 5
        %v1781 = vrot.slane %v1780, 4
        %v1782 = vrot.slane %v1459, 5
        %v1783 = vsel %vm1367, %v1781, %v1782
        %v1784 = vrot.slane %v1700, 5
        %v1785 = vrot.slane %v1784, 4
        %v1786 = vrot.slane %v1460, 5
        %v1787 = vsel %vm1367, %v1785, %v1786
        %v1788 = vrot.slane %v1701, 5
        %v1789 = vrot.slane %v1788, 4
        %v1790 = vrot.slane %v1461, 5
        %v1791 = vsel %vm1367, %v1789, %v1790
        %v1792 = vrot.slane %v1702, 5
        %v1793 = vrot.slane %v1792, 4
        %v1794 = vrot.slane %v1462, 5
        %v1795 = vsel %vm1367, %v1793, %v1794
        %v1796 = vrot.slane %v1703, 5
        %v1797 = vrot.slane %v1796, 4
        %v1798 = vrot.slane %v1463, 5
        %v1799 = vsel %vm1367, %v1797, %v1798
        %s1800 = scalar_lea.vmem [#allocation2], 16
        %v1801 = vld [vmem:[%s1800] sm:$0xf]
        %v1802 = vld [vmem:[%s1800 + $0x8] sm:$0xf]
        %v1803 = vld [vmem:[%s1800 + $0x10] sm:$0xf]
        %v1804 = vld [vmem:[%s1800 + $0x18] sm:$0xf]
        %v1805 = vld [vmem:[%s1800 + $0x20] sm:$0xf]
        %v1806 = vld [vmem:[%s1800 + $0x28] sm:$0xf]
        %v1807 = vld [vmem:[%s1800 + $0x30] sm:$0xf]
        %v1808 = vld [vmem:[%s1800 + $0x38] sm:$0xf]
        %v1809 = vld [vmem:[%s1800 + $0x50] sm:$0xf]
        %v1810 = vld [vmem:[%s1800 + $0x58] sm:$0xf]
        %v1811 = vld [vmem:[%s1800 + $0x60] sm:$0xf]
        %v1812 = vld [vmem:[%s1800 + $0x68] sm:$0xf]
        %v1813 = vld [vmem:[%s1800 + $0x70] sm:$0xf]
        %v1814 = vld [vmem:[%s1800 + $0x78] sm:$0xf]
        %v1815 = vld [vmem:[%s1800 + $0x80] sm:$0xf]
        %v1816 = vld [vmem:[%s1800 + $0x88] sm:$0xf]
        %v1817 = vld [vmem:[%s1800 + $0x4] sm:$0x1]
        %v1818 = vld [vmem:[%s1800 + $0xc] sm:$0x1]
        %v1819 = vld [vmem:[%s1800 + $0x14] sm:$0x1]
        %v1820 = vld [vmem:[%s1800 + $0x1c] sm:$0x1]
        %v1821 = vld [vmem:[%s1800 + $0x24] sm:$0x1]
        %v1822 = vld [vmem:[%s1800 + $0x2c] sm:$0x1]
        %v1823 = vld [vmem:[%s1800 + $0x34] sm:$0x1]
        %v1824 = vld [vmem:[%s1800 + $0x3c] sm:$0x1]
        %v1825 = vld [vmem:[%s1800 + $0x54] sm:$0x1]
        %v1826 = vld [vmem:[%s1800 + $0x5c] sm:$0x1]
        %v1827 = vld [vmem:[%s1800 + $0x64] sm:$0x1]
        %v1828 = vld [vmem:[%s1800 + $0x6c] sm:$0x1]
        %v1829 = vld [vmem:[%s1800 + $0x74] sm:$0x1]
        %v1830 = vld [vmem:[%s1800 + $0x7c] sm:$0x1]
        %v1831 = vld [vmem:[%s1800 + $0x84] sm:$0x1]
        %v1832 = vld [vmem:[%s1800 + $0x8c] sm:$0x1]
        %v1834 = vshrl.u32 %v1801, 16
        %v1836 = vrot.slane %v1834, 4
        %v1837 = vshll.u32 %v1801, 16
        %v1839 = vrot.slane %v1837, 5
        %v1840 = vor.u32 %v1836, %v1839
        %v1841 = vrot.slane %v1840, 4
        %v1843 = vshll.u32 %v1817, 16
        %v1845 = vrot.slane %v1843, 5
        %v1846 = vsel %vm1092, %v1841, %v1845
        %v1848 = vshrl.u32 %v1802, 16
        %v1850 = vrot.slane %v1848, 4
        %v1851 = vshll.u32 %v1802, 16
        %v1853 = vrot.slane %v1851, 5
        %v1854 = vor.u32 %v1850, %v1853
        %v1855 = vrot.slane %v1854, 4
        %v1857 = vshll.u32 %v1818, 16
        %v1859 = vrot.slane %v1857, 5
        %v1860 = vsel %vm1092, %v1855, %v1859
        %v1862 = vshrl.u32 %v1803, 16
        %v1864 = vrot.slane %v1862, 4
        %v1865 = vshll.u32 %v1803, 16
        %v1867 = vrot.slane %v1865, 5
        %v1868 = vor.u32 %v1864, %v1867
        %v1869 = vrot.slane %v1868, 4
        %v1871 = vshll.u32 %v1819, 16
        %v1873 = vrot.slane %v1871, 5
        %v1874 = vsel %vm1092, %v1869, %v1873
        %v1876 = vshrl.u32 %v1804, 16
        %v1878 = vrot.slane %v1876, 4
        %v1879 = vshll.u32 %v1804, 16
        %v1881 = vrot.slane %v1879, 5
        %v1882 = vor.u32 %v1878, %v1881
        %v1883 = vrot.slane %v1882, 4
        %v1885 = vshll.u32 %v1820, 16
        %v1887 = vrot.slane %v1885, 5
        %v1888 = vsel %vm1092, %v1883, %v1887
        %v1890 = vshrl.u32 %v1805, 16
        %v1892 = vrot.slane %v1890, 4
        %v1893 = vshll.u32 %v1805, 16
        %v1895 = vrot.slane %v1893, 5
        %v1896 = vor.u32 %v1892, %v1895
        %v1897 = vrot.slane %v1896, 4
        %v1899 = vshll.u32 %v1821, 16
        %v1901 = vrot.slane %v1899, 5
        %v1902 = vsel %vm1092, %v1897, %v1901
        %v1904 = vshrl.u32 %v1806, 16
        %v1906 = vrot.slane %v1904, 4
        %v1907 = vshll.u32 %v1806, 16
        %v1909 = vrot.slane %v1907, 5
        %v1910 = vor.u32 %v1906, %v1909
        %v1911 = vrot.slane %v1910, 4
        %v1913 = vshll.u32 %v1822, 16
        %v1915 = vrot.slane %v1913, 5
        %v1916 = vsel %vm1092, %v1911, %v1915
        %v1918 = vshrl.u32 %v1807, 16
        %v1920 = vrot.slane %v1918, 4
        %v1921 = vshll.u32 %v1807, 16
        %v1923 = vrot.slane %v1921, 5
        %v1924 = vor.u32 %v1920, %v1923
        %v1925 = vrot.slane %v1924, 4
        %v1927 = vshll.u32 %v1823, 16
        %v1929 = vrot.slane %v1927, 5
        %v1930 = vsel %vm1092, %v1925, %v1929
        %v1932 = vshrl.u32 %v1808, 16
        %v1934 = vrot.slane %v1932, 4
        %v1935 = vshll.u32 %v1808, 16
        %v1937 = vrot.slane %v1935, 5
        %v1938 = vor.u32 %v1934, %v1937
        %v1939 = vrot.slane %v1938, 4
        %v1941 = vshll.u32 %v1824, 16
        %v1943 = vrot.slane %v1941, 5
        %v1944 = vsel %vm1092, %v1939, %v1943
        %v1946 = vshrl.u32 %v1809, 16
        %v1948 = vrot.slane %v1946, 4
        %v1949 = vshll.u32 %v1809, 16
        %v1951 = vrot.slane %v1949, 5
        %v1952 = vor.u32 %v1948, %v1951
        %v1953 = vrot.slane %v1952, 4
        %v1955 = vshll.u32 %v1825, 16
        %v1957 = vrot.slane %v1955, 5
        %v1958 = vsel %vm1092, %v1953, %v1957
        %v1960 = vshrl.u32 %v1810, 16
        %v1962 = vrot.slane %v1960, 4
        %v1963 = vshll.u32 %v1810, 16
        %v1965 = vrot.slane %v1963, 5
        %v1966 = vor.u32 %v1962, %v1965
        %v1967 = vrot.slane %v1966, 4
        %v1969 = vshll.u32 %v1826, 16
        %v1971 = vrot.slane %v1969, 5
        %v1972 = vsel %vm1092, %v1967, %v1971
        %v1974 = vshrl.u32 %v1811, 16
        %v1976 = vrot.slane %v1974, 4
        %v1977 = vshll.u32 %v1811, 16
        %v1979 = vrot.slane %v1977, 5
        %v1980 = vor.u32 %v1976, %v1979
        %v1981 = vrot.slane %v1980, 4
        %v1983 = vshll.u32 %v1827, 16
        %v1985 = vrot.slane %v1983, 5
        %v1986 = vsel %vm1092, %v1981, %v1985
        %v1988 = vshrl.u32 %v1812, 16
        %v1990 = vrot.slane %v1988, 4
        %v1991 = vshll.u32 %v1812, 16
        %v1993 = vrot.slane %v1991, 5
        %v1994 = vor.u32 %v1990, %v1993
        %v1995 = vrot.slane %v1994, 4
        %v1997 = vshll.u32 %v1828, 16
        %v1999 = vrot.slane %v1997, 5
        %v2000 = vsel %vm1092, %v1995, %v1999
        %v2002 = vshrl.u32 %v1813, 16
        %v2004 = vrot.slane %v2002, 4
        %v2005 = vshll.u32 %v1813, 16
        %v2007 = vrot.slane %v2005, 5
        %v2008 = vor.u32 %v2004, %v2007
        %v2009 = vrot.slane %v2008, 4
        %v2011 = vshll.u32 %v1829, 16
        %v2013 = vrot.slane %v2011, 5
        %v2014 = vsel %vm1092, %v2009, %v2013
        %v2016 = vshrl.u32 %v1814, 16
        %v2018 = vrot.slane %v2016, 4
        %v2019 = vshll.u32 %v1814, 16
        %v2021 = vrot.slane %v2019, 5
        %v2022 = vor.u32 %v2018, %v2021
        %v2023 = vrot.slane %v2022, 4
        %v2025 = vshll.u32 %v1830, 16
        %v2027 = vrot.slane %v2025, 5
        %v2028 = vsel %vm1092, %v2023, %v2027
        %v2030 = vshrl.u32 %v1815, 16
        %v2032 = vrot.slane %v2030, 4
        %v2033 = vshll.u32 %v1815, 16
        %v2035 = vrot.slane %v2033, 5
        %v2036 = vor.u32 %v2032, %v2035
        %v2037 = vrot.slane %v2036, 4
        %v2039 = vshll.u32 %v1831, 16
        %v2041 = vrot.slane %v2039, 5
        %v2042 = vsel %vm1092, %v2037, %v2041
        %v2044 = vshrl.u32 %v1816, 16
        %v2046 = vrot.slane %v2044, 4
        %v2047 = vshll.u32 %v1816, 16
        %v2049 = vrot.slane %v2047, 5
        %v2050 = vor.u32 %v2046, %v2049
        %v2051 = vrot.slane %v2050, 4
        %v2053 = vshll.u32 %v1832, 16
        %v2055 = vrot.slane %v2053, 5
        %v2056 = vsel %vm1092, %v2051, %v2055
        %v2057 = vld [vmem:[%s1800] sm:$0xe]
        %v2058 = vld [vmem:[%s1800 + $0x8] sm:$0xe]
        %v2059 = vld [vmem:[%s1800 + $0x10] sm:$0xe]
        %v2060 = vld [vmem:[%s1800 + $0x18] sm:$0xe]
        %v2061 = vld [vmem:[%s1800 + $0x20] sm:$0xe]
        %v2062 = vld [vmem:[%s1800 + $0x28] sm:$0xe]
        %v2063 = vld [vmem:[%s1800 + $0x30] sm:$0xe]
        %v2064 = vld [vmem:[%s1800 + $0x38] sm:$0xe]
        %v2065 = vld [vmem:[%s1800 + $0x50] sm:$0xe]
        %v2066 = vld [vmem:[%s1800 + $0x58] sm:$0xe]
        %v2067 = vld [vmem:[%s1800 + $0x60] sm:$0xe]
        %v2068 = vld [vmem:[%s1800 + $0x68] sm:$0xe]
        %v2069 = vld [vmem:[%s1800 + $0x70] sm:$0xe]
        %v2070 = vld [vmem:[%s1800 + $0x78] sm:$0xe]
        %v2071 = vld [vmem:[%s1800 + $0x80] sm:$0xe]
        %v2072 = vld [vmem:[%s1800 + $0x88] sm:$0xe]
        %v2105 = vrot.slane %v2057, 5
        %v2106 = vrot.slane %v2105, 4
        %v2107 = vrot.slane %v1817, 5
        %v2108 = vsel %vm1367, %v2106, %v2107
        %v2109 = vrot.slane %v2058, 5
        %v2110 = vrot.slane %v2109, 4
        %v2111 = vrot.slane %v1818, 5
        %v2112 = vsel %vm1367, %v2110, %v2111
        %v2113 = vrot.slane %v2059, 5
        %v2114 = vrot.slane %v2113, 4
        %v2115 = vrot.slane %v1819, 5
        %v2116 = vsel %vm1367, %v2114, %v2115
        %v2117 = vrot.slane %v2060, 5
        %v2118 = vrot.slane %v2117, 4
        %v2119 = vrot.slane %v1820, 5
        %v2120 = vsel %vm1367, %v2118, %v2119
        %v2121 = vrot.slane %v2061, 5
        %v2122 = vrot.slane %v2121, 4
        %v2123 = vrot.slane %v1821, 5
        %v2124 = vsel %vm1367, %v2122, %v2123
        %v2125 = vrot.slane %v2062, 5
        %v2126 = vrot.slane %v2125, 4
        %v2127 = vrot.slane %v1822, 5
        %v2128 = vsel %vm1367, %v2126, %v2127
        %v2129 = vrot.slane %v2063, 5
        %v2130 = vrot.slane %v2129, 4
        %v2131 = vrot.slane %v1823, 5
        %v2132 = vsel %vm1367, %v2130, %v2131
        %v2133 = vrot.slane %v2064, 5
        %v2134 = vrot.slane %v2133, 4
        %v2135 = vrot.slane %v1824, 5
        %v2136 = vsel %vm1367, %v2134, %v2135
        %v2137 = vrot.slane %v2065, 5
        %v2138 = vrot.slane %v2137, 4
        %v2139 = vrot.slane %v1825, 5
        %v2140 = vsel %vm1367, %v2138, %v2139
        %v2141 = vrot.slane %v2066, 5
        %v2142 = vrot.slane %v2141, 4
        %v2143 = vrot.slane %v1826, 5
        %v2144 = vsel %vm1367, %v2142, %v2143
        %v2145 = vrot.slane %v2067, 5
        %v2146 = vrot.slane %v2145, 4
        %v2147 = vrot.slane %v1827, 5
        %v2148 = vsel %vm1367, %v2146, %v2147
        %v2149 = vrot.slane %v2068, 5
        %v2150 = vrot.slane %v2149, 4
        %v2151 = vrot.slane %v1828, 5
        %v2152 = vsel %vm1367, %v2150, %v2151
        %v2153 = vrot.slane %v2069, 5
        %v2154 = vrot.slane %v2153, 4
        %v2155 = vrot.slane %v1829, 5
        %v2156 = vsel %vm1367, %v2154, %v2155
        %v2157 = vrot.slane %v2070, 5
        %v2158 = vrot.slane %v2157, 4
        %v2159 = vrot.slane %v1830, 5
        %v2160 = vsel %vm1367, %v2158, %v2159
        %v2161 = vrot.slane %v2071, 5
        %v2162 = vrot.slane %v2161, 4
        %v2163 = vrot.slane %v1831, 5
        %v2164 = vsel %vm1367, %v2162, %v2163
        %v2165 = vrot.slane %v2072, 5
        %v2166 = vrot.slane %v2165, 4
        %v2167 = vrot.slane %v1832, 5
        %v2168 = vsel %vm1367, %v2166, %v2167
        %v2185 = vunpack.c.l.b16 %v1058
        %v2186 = vunpack.c.l.b16 %v1059
        %v2187 = vunpack.c.l.b16 %v1060
        %v2188 = vunpack.c.l.b16 %v1061
        %v2189 = vunpack.c.l.b16 %v1062
        %v2190 = vunpack.c.l.b16 %v1063
        %v2191 = vunpack.c.l.b16 %v1064
        %v2192 = vunpack.c.l.b16 %v1065
        %v2193 = vunpack.c.l.b16 %v1066
        %v2194 = vunpack.c.l.b16 %v1067
        %v2195 = vunpack.c.l.b16 %v1068
        %v2196 = vunpack.c.l.b16 %v1069
        %v2197 = vunpack.c.l.b16 %v1070
        %v2198 = vunpack.c.l.b16 %v1071
        %v2199 = vunpack.c.l.b16 %v1072
        %v2200 = vunpack.c.l.b16 %v1073
        %v2201 = vpack.c.b16 %v2186, %v2185
        %v2202 = vpack.c.b16 %v2188, %v2187
        %v2203 = vpack.c.b16 %v2190, %v2189
        %v2204 = vpack.c.b16 %v2192, %v2191
        %v2205 = vpack.c.b16 %v2194, %v2193
        %v2206 = vpack.c.b16 %v2196, %v2195
        %v2207 = vpack.c.b16 %v2198, %v2197
        %v2208 = vpack.c.b16 %v2200, %v2199
        %v2209 = vunpack.c.l.b16 %v1106
        %v2210 = vunpack.c.l.b16 %v1120
        %v2211 = vunpack.c.l.b16 %v1134
        %v2212 = vunpack.c.l.b16 %v1148
        %v2213 = vunpack.c.l.b16 %v1162
        %v2214 = vunpack.c.l.b16 %v1176
        %v2215 = vunpack.c.l.b16 %v1190
        %v2216 = vunpack.c.l.b16 %v1204
        %v2217 = vunpack.c.l.b16 %v1218
        %v2218 = vunpack.c.l.b16 %v1232
        %v2219 = vunpack.c.l.b16 %v1246
        %v2220 = vunpack.c.l.b16 %v1260
        %v2221 = vunpack.c.l.b16 %v1274
        %v2222 = vunpack.c.l.b16 %v1288
        %v2223 = vunpack.c.l.b16 %v1302
        %v2224 = vunpack.c.l.b16 %v1316
        %v2225 = vpack.c.b16 %v2210, %v2209
        %v2226 = vpack.c.b16 %v2212, %v2211
        %v2227 = vpack.c.b16 %v2214, %v2213
        %v2228 = vpack.c.b16 %v2216, %v2215
        %v2229 = vpack.c.b16 %v2218, %v2217
        %v2230 = vpack.c.b16 %v2220, %v2219
        %v2231 = vpack.c.b16 %v2222, %v2221
        %v2232 = vpack.c.b16 %v2224, %v2223
        %2233 = vrot.lane.b32.xlu0 %v2225, 32
        %v2234 = vpop.permute.xlu0 %2233
        %2235 = vrot.lane.b32.xlu0 %v2226, 32
        %v2236 = vpop.permute.xlu0 %2235
        %2237 = vrot.lane.b32.xlu0 %v2227, 32
        %v2238 = vpop.permute.xlu0 %2237
        %2239 = vrot.lane.b32.xlu0 %v2228, 32
        %v2240 = vpop.permute.xlu0 %2239
        %2241 = vrot.lane.b32.xlu0 %v2229, 32
        %v2242 = vpop.permute.xlu0 %2241
        %2243 = vrot.lane.b32.xlu0 %v2230, 32
        %v2244 = vpop.permute.xlu0 %2243
        %2245 = vrot.lane.b32.xlu0 %v2231, 32
        %v2246 = vpop.permute.xlu0 %2245
        %2247 = vrot.lane.b32.xlu0 %v2232, 32
        %v2248 = vpop.permute.xlu0 %2247
        %v2249 = vunpack.c.l.b16 %v1371
        %v2250 = vunpack.c.l.b16 %v1375
        %v2251 = vunpack.c.l.b16 %v1379
        %v2252 = vunpack.c.l.b16 %v1383
        %v2253 = vunpack.c.l.b16 %v1387
        %v2254 = vunpack.c.l.b16 %v1391
        %v2255 = vunpack.c.l.b16 %v1395
        %v2256 = vunpack.c.l.b16 %v1399
        %v2257 = vunpack.c.l.b16 %v1403
        %v2258 = vunpack.c.l.b16 %v1407
        %v2259 = vunpack.c.l.b16 %v1411
        %v2260 = vunpack.c.l.b16 %v1415
        %v2261 = vunpack.c.l.b16 %v1419
        %v2262 = vunpack.c.l.b16 %v1423
        %v2263 = vunpack.c.l.b16 %v1427
        %v2264 = vunpack.c.l.b16 %v1431
        %v2265 = vpack.c.b16 %v2250, %v2249
        %v2266 = vpack.c.b16 %v2252, %v2251
        %v2267 = vpack.c.b16 %v2254, %v2253
        %v2268 = vpack.c.b16 %v2256, %v2255
        %v2269 = vpack.c.b16 %v2258, %v2257
        %v2270 = vpack.c.b16 %v2260, %v2259
        %v2271 = vpack.c.b16 %v2262, %v2261
        %v2272 = vpack.c.b16 %v2264, %v2263
        %2273 = vrot.lane.b32.xlu0 %v2265, 64
        %v2274 = vpop.permute.xlu0 %2273
        %2275 = vrot.lane.b32.xlu0 %v2266, 64
        %v2276 = vpop.permute.xlu0 %2275
        %2277 = vrot.lane.b32.xlu0 %v2267, 64
        %v2278 = vpop.permute.xlu0 %2277
        %2279 = vrot.lane.b32.xlu0 %v2268, 64
        %v2280 = vpop.permute.xlu0 %2279
        %2281 = vrot.lane.b32.xlu0 %v2269, 64
        %v2282 = vpop.permute.xlu0 %2281
        %2283 = vrot.lane.b32.xlu0 %v2270, 64
        %v2284 = vpop.permute.xlu0 %2283
        %2285 = vrot.lane.b32.xlu0 %v2271, 64
        %v2286 = vpop.permute.xlu0 %2285
        %2287 = vrot.lane.b32.xlu0 %v2272, 64
        %v2288 = vpop.permute.xlu0 %2287
        %v2305 = vunpack.c.l.b16 %v1432
        %v2306 = vunpack.c.l.b16 %v1433
        %v2307 = vunpack.c.l.b16 %v1434
        %v2308 = vunpack.c.l.b16 %v1435
        %v2309 = vunpack.c.l.b16 %v1436
        %v2310 = vunpack.c.l.b16 %v1437
        %v2311 = vunpack.c.l.b16 %v1438
        %v2312 = vunpack.c.l.b16 %v1439
        %v2313 = vunpack.c.l.b16 %v1440
        %v2314 = vunpack.c.l.b16 %v1441
        %v2315 = vunpack.c.l.b16 %v1442
        %v2316 = vunpack.c.l.b16 %v1443
        %v2317 = vunpack.c.l.b16 %v1444
        %v2318 = vunpack.c.l.b16 %v1445
        %v2319 = vunpack.c.l.b16 %v1446
        %v2320 = vunpack.c.l.b16 %v1447
        %v2321 = vpack.c.b16 %v2306, %v2305
        %v2322 = vpack.c.b16 %v2308, %v2307
        %v2323 = vpack.c.b16 %v2310, %v2309
        %v2324 = vpack.c.b16 %v2312, %v2311
        %v2325 = vpack.c.b16 %v2314, %v2313
        %v2326 = vpack.c.b16 %v2316, %v2315
        %v2327 = vpack.c.b16 %v2318, %v2317
        %v2328 = vpack.c.b16 %v2320, %v2319
        %2329 = vrot.lane.b32.xlu0 %v2321, 96
        %v2330 = vpop.permute.xlu0 %2329
        %2331 = vrot.lane.b32.xlu0 %v2322, 96
        %v2332 = vpop.permute.xlu0 %2331
        %2333 = vrot.lane.b32.xlu0 %v2323, 96
        %v2334 = vpop.permute.xlu0 %2333
        %2335 = vrot.lane.b32.xlu0 %v2324, 96
        %v2336 = vpop.permute.xlu0 %2335
        %2337 = vrot.lane.b32.xlu0 %v2325, 96
        %v2338 = vpop.permute.xlu0 %2337
        %2339 = vrot.lane.b32.xlu0 %v2326, 96
        %v2340 = vpop.permute.xlu0 %2339
        %2341 = vrot.lane.b32.xlu0 %v2327, 96
        %v2342 = vpop.permute.xlu0 %2341
        %2343 = vrot.lane.b32.xlu0 %v2328, 96
        %v2344 = vpop.permute.xlu0 %2343
        %v2345 = vunpack.c.l.b16 %v1477
        %v2346 = vunpack.c.l.b16 %v1491
        %v2347 = vunpack.c.l.b16 %v1505
        %v2348 = vunpack.c.l.b16 %v1519
        %v2349 = vunpack.c.l.b16 %v1533
        %v2350 = vunpack.c.l.b16 %v1547
        %v2351 = vunpack.c.l.b16 %v1561
        %v2352 = vunpack.c.l.b16 %v1575
        %v2353 = vunpack.c.l.b16 %v1589
        %v2354 = vunpack.c.l.b16 %v1603
        %v2355 = vunpack.c.l.b16 %v1617
        %v2356 = vunpack.c.l.b16 %v1631
        %v2357 = vunpack.c.l.b16 %v1645
        %v2358 = vunpack.c.l.b16 %v1659
        %v2359 = vunpack.c.l.b16 %v1673
        %v2360 = vunpack.c.l.b16 %v1687
        %v2361 = vpack.c.b16 %v2346, %v2345
        %v2362 = vpack.c.b16 %v2348, %v2347
        %v2363 = vpack.c.b16 %v2350, %v2349
        %v2364 = vpack.c.b16 %v2352, %v2351
        %v2365 = vpack.c.b16 %v2354, %v2353
        %v2366 = vpack.c.b16 %v2356, %v2355
        %v2367 = vpack.c.b16 %v2358, %v2357
        %v2368 = vpack.c.b16 %v2360, %v2359
        %v2369 = vunpack.c.l.b16 %v1739
        %v2370 = vunpack.c.l.b16 %v1743
        %v2371 = vunpack.c.l.b16 %v1747
        %v2372 = vunpack.c.l.b16 %v1751
        %v2373 = vunpack.c.l.b16 %v1755
        %v2374 = vunpack.c.l.b16 %v1759
        %v2375 = vunpack.c.l.b16 %v1763
        %v2376 = vunpack.c.l.b16 %v1767
        %v2377 = vunpack.c.l.b16 %v1771
        %v2378 = vunpack.c.l.b16 %v1775
        %v2379 = vunpack.c.l.b16 %v1779
        %v2380 = vunpack.c.l.b16 %v1783
        %v2381 = vunpack.c.l.b16 %v1787
        %v2382 = vunpack.c.l.b16 %v1791
        %v2383 = vunpack.c.l.b16 %v1795
        %v2384 = vunpack.c.l.b16 %v1799
        %v2385 = vpack.c.b16 %v2370, %v2369
        %v2386 = vpack.c.b16 %v2372, %v2371
        %v2387 = vpack.c.b16 %v2374, %v2373
        %v2388 = vpack.c.b16 %v2376, %v2375
        %v2389 = vpack.c.b16 %v2378, %v2377
        %v2390 = vpack.c.b16 %v2380, %v2379
        %v2391 = vpack.c.b16 %v2382, %v2381
        %v2392 = vpack.c.b16 %v2384, %v2383
        %2393 = vrot.lane.b32.xlu0 %v2385, 32
        %v2394 = vpop.permute.xlu0 %2393
        %2395 = vrot.lane.b32.xlu0 %v2386, 32
        %v2396 = vpop.permute.xlu0 %2395
        %2397 = vrot.lane.b32.xlu0 %v2387, 32
        %v2398 = vpop.permute.xlu0 %2397
        %2399 = vrot.lane.b32.xlu0 %v2388, 32
        %v2400 = vpop.permute.xlu0 %2399
        %2401 = vrot.lane.b32.xlu0 %v2389, 32
        %v2402 = vpop.permute.xlu0 %2401
        %2403 = vrot.lane.b32.xlu0 %v2390, 32
        %v2404 = vpop.permute.xlu0 %2403
        %2405 = vrot.lane.b32.xlu0 %v2391, 32
        %v2406 = vpop.permute.xlu0 %2405
        %2407 = vrot.lane.b32.xlu0 %v2392, 32
        %v2408 = vpop.permute.xlu0 %2407
        %v2425 = vunpack.c.l.b16 %v1801
        %v2426 = vunpack.c.l.b16 %v1802
        %v2427 = vunpack.c.l.b16 %v1803
        %v2428 = vunpack.c.l.b16 %v1804
        %v2429 = vunpack.c.l.b16 %v1805
        %v2430 = vunpack.c.l.b16 %v1806
        %v2431 = vunpack.c.l.b16 %v1807
        %v2432 = vunpack.c.l.b16 %v1808
        %v2433 = vunpack.c.l.b16 %v1809
        %v2434 = vunpack.c.l.b16 %v1810
        %v2435 = vunpack.c.l.b16 %v1811
        %v2436 = vunpack.c.l.b16 %v1812
        %v2437 = vunpack.c.l.b16 %v1813
        %v2438 = vunpack.c.l.b16 %v1814
        %v2439 = vunpack.c.l.b16 %v1815
        %v2440 = vunpack.c.l.b16 %v1816
        %v2441 = vpack.c.b16 %v2426, %v2425
        %v2442 = vpack.c.b16 %v2428, %v2427
        %v2443 = vpack.c.b16 %v2430, %v2429
        %v2444 = vpack.c.b16 %v2432, %v2431
        %v2445 = vpack.c.b16 %v2434, %v2433
        %v2446 = vpack.c.b16 %v2436, %v2435
        %v2447 = vpack.c.b16 %v2438, %v2437
        %v2448 = vpack.c.b16 %v2440, %v2439
        %2449 = vrot.lane.b32.xlu0 %v2441, 64
        %v2450 = vpop.permute.xlu0 %2449
        %2451 = vrot.lane.b32.xlu0 %v2442, 64
        %v2452 = vpop.permute.xlu0 %2451
        %2453 = vrot.lane.b32.xlu0 %v2443, 64
        %v2454 = vpop.permute.xlu0 %2453
        %2455 = vrot.lane.b32.xlu0 %v2444, 64
        %v2456 = vpop.permute.xlu0 %2455
        %2457 = vrot.lane.b32.xlu0 %v2445, 64
        %v2458 = vpop.permute.xlu0 %2457
        %2459 = vrot.lane.b32.xlu0 %v2446, 64
        %v2460 = vpop.permute.xlu0 %2459
        %2461 = vrot.lane.b32.xlu0 %v2447, 64
        %v2462 = vpop.permute.xlu0 %2461
        %2463 = vrot.lane.b32.xlu0 %v2448, 64
        %v2464 = vpop.permute.xlu0 %2463
        %v2465 = vunpack.c.l.b16 %v1846
        %v2466 = vunpack.c.l.b16 %v1860
        %v2467 = vunpack.c.l.b16 %v1874
        %v2468 = vunpack.c.l.b16 %v1888
        %v2469 = vunpack.c.l.b16 %v1902
        %v2470 = vunpack.c.l.b16 %v1916
        %v2471 = vunpack.c.l.b16 %v1930
        %v2472 = vunpack.c.l.b16 %v1944
        %v2473 = vunpack.c.l.b16 %v1958
        %v2474 = vunpack.c.l.b16 %v1972
        %v2475 = vunpack.c.l.b16 %v1986
        %v2476 = vunpack.c.l.b16 %v2000
        %v2477 = vunpack.c.l.b16 %v2014
        %v2478 = vunpack.c.l.b16 %v2028
        %v2479 = vunpack.c.l.b16 %v2042
        %v2480 = vunpack.c.l.b16 %v2056
        %v2481 = vpack.c.b16 %v2466, %v2465
        %v2482 = vpack.c.b16 %v2468, %v2467
        %v2483 = vpack.c.b16 %v2470, %v2469
        %v2484 = vpack.c.b16 %v2472, %v2471
        %v2485 = vpack.c.b16 %v2474, %v2473
        %v2486 = vpack.c.b16 %v2476, %v2475
        %v2487 = vpack.c.b16 %v2478, %v2477
        %v2488 = vpack.c.b16 %v2480, %v2479
        %2489 = vrot.lane.b32.xlu0 %v2481, 96
        %v2490 = vpop.permute.xlu0 %2489
        %2491 = vrot.lane.b32.xlu0 %v2482, 96
        %v2492 = vpop.permute.xlu0 %2491
        %2493 = vrot.lane.b32.xlu0 %v2483, 96
        %v2494 = vpop.permute.xlu0 %2493
        %2495 = vrot.lane.b32.xlu0 %v2484, 96
        %v2496 = vpop.permute.xlu0 %2495
        %2497 = vrot.lane.b32.xlu0 %v2485, 96
        %v2498 = vpop.permute.xlu0 %2497
        %2499 = vrot.lane.b32.xlu0 %v2486, 96
        %v2500 = vpop.permute.xlu0 %2499
        %2501 = vrot.lane.b32.xlu0 %v2487, 96
        %v2502 = vpop.permute.xlu0 %2501
        %2503 = vrot.lane.b32.xlu0 %v2488, 96
        %v2504 = vpop.permute.xlu0 %2503
        %v2505 = vunpack.c.l.b16 %v2108
        %v2506 = vunpack.c.l.b16 %v2112
        %v2507 = vunpack.c.l.b16 %v2116
        %v2508 = vunpack.c.l.b16 %v2120
        %v2509 = vunpack.c.l.b16 %v2124
        %v2510 = vunpack.c.l.b16 %v2128
        %v2511 = vunpack.c.l.b16 %v2132
        %v2512 = vunpack.c.l.b16 %v2136
        %v2513 = vunpack.c.l.b16 %v2140
        %v2514 = vunpack.c.l.b16 %v2144
        %v2515 = vunpack.c.l.b16 %v2148
        %v2516 = vunpack.c.l.b16 %v2152
        %v2517 = vunpack.c.l.b16 %v2156
        %v2518 = vunpack.c.l.b16 %v2160
        %v2519 = vunpack.c.l.b16 %v2164
        %v2520 = vunpack.c.l.b16 %v2168
        %v2521 = vpack.c.b16 %v2506, %v2505
        %v2522 = vpack.c.b16 %v2508, %v2507
        %v2523 = vpack.c.b16 %v2510, %v2509
        %v2524 = vpack.c.b16 %v2512, %v2511
        %v2525 = vpack.c.b16 %v2514, %v2513
        %v2526 = vpack.c.b16 %v2516, %v2515
        %v2527 = vpack.c.b16 %v2518, %v2517
        %v2528 = vpack.c.b16 %v2520, %v2519
        %vm2529 = vcmask 261120
        %v2532 = vsel %vm2529, %v2201, %v2234
        %v2535 = vsel %vm2529, %v2202, %v2236
        %v2538 = vsel %vm2529, %v2203, %v2238
        %v2541 = vsel %vm2529, %v2204, %v2240
        %v2544 = vsel %vm2529, %v2205, %v2242
        %v2547 = vsel %vm2529, %v2206, %v2244
        %v2550 = vsel %vm2529, %v2207, %v2246
        %v2553 = vsel %vm2529, %v2208, %v2248
        %vm2554 = vcmask 523264
        %v2556 = vsel %vm2554, %v2532, %v2274
        %v2558 = vsel %vm2554, %v2535, %v2276
        %v2560 = vsel %vm2554, %v2538, %v2278
        %v2562 = vsel %vm2554, %v2541, %v2280
        %v2564 = vsel %vm2554, %v2544, %v2282
        %v2566 = vsel %vm2554, %v2547, %v2284
        %v2568 = vsel %vm2554, %v2550, %v2286
        %v2570 = vsel %vm2554, %v2553, %v2288
        %vm2571 = vcmask 785408
        %v2573 = vsel %vm2571, %v2556, %v2330
        %v2576 = vsel %vm2571, %v2558, %v2332
        %v2579 = vsel %vm2571, %v2560, %v2334
        %v2582 = vsel %vm2571, %v2562, %v2336
        %v2585 = vsel %vm2571, %v2564, %v2338
        %v2588 = vsel %vm2571, %v2566, %v2340
        %v2591 = vsel %vm2571, %v2568, %v2342
        %v2594 = vsel %vm2571, %v2570, %v2344
        %v2598 = vsel %vm2529, %v2361, %v2394
        %v2601 = vsel %vm2529, %v2362, %v2396
        %v2604 = vsel %vm2529, %v2363, %v2398
        %v2607 = vsel %vm2529, %v2364, %v2400
        %v2610 = vsel %vm2529, %v2365, %v2402
        %v2613 = vsel %vm2529, %v2366, %v2404
        %v2616 = vsel %vm2529, %v2367, %v2406
        %v2619 = vsel %vm2529, %v2368, %v2408
        %v2621 = vsel %vm2554, %v2598, %v2450
        %v2623 = vsel %vm2554, %v2601, %v2452
        %v2625 = vsel %vm2554, %v2604, %v2454
        %v2627 = vsel %vm2554, %v2607, %v2456
        %v2629 = vsel %vm2554, %v2610, %v2458
        %v2631 = vsel %vm2554, %v2613, %v2460
        %v2633 = vsel %vm2554, %v2616, %v2462
        %v2635 = vsel %vm2554, %v2619, %v2464
        %v2637 = vsel %vm2571, %v2621, %v2490
        %v2640 = vsel %vm2571, %v2623, %v2492
        %v2643 = vsel %vm2571, %v2625, %v2494
        %v2646 = vsel %vm2571, %v2627, %v2496
        %v2649 = vsel %vm2571, %v2629, %v2498
        %v2652 = vsel %vm2571, %v2631, %v2500
        %v2655 = vsel %vm2571, %v2633, %v2502
        %v2658 = vsel %vm2571, %v2635, %v2504
        %v2662 = vsel %vm2529, %v2521, %v747
        %v2666 = vsel %vm2529, %v2522, %v748
        %v2670 = vsel %vm2529, %v2523, %v749
        %v2674 = vsel %vm2529, %v2524, %v750
        %v2678 = vsel %vm2529, %v2525, %v751
        %v2682 = vsel %vm2529, %v2526, %v752
        %v2686 = vsel %vm2529, %v2527, %v753
        %v2690 = vsel %vm2529, %v2528, %v754
        %v2692 = vld [vmem:[%s4] sm:$0xff]
        %v2693 = vld [vmem:[%s4 + $0x8] sm:$0xff]
        %v2694 = vld [vmem:[%s4 + $0x10] sm:$0xff]
        %v2695 = vld [vmem:[%s4 + $0x18] sm:$0xff]
        %v2696 = vld [vmem:[%s4 + $0x20] sm:$0xff]
        %v2697 = vld [vmem:[%s4 + $0x28] sm:$0xff]
        %v2698 = vld [vmem:[%s4 + $0x30] sm:$0xff]
        %v2699 = vld [vmem:[%s4 + $0x38] sm:$0xff]
        %v2700 = vld [vmem:[%s4 + $0x40] sm:$0xff]
        %v2701 = vld [vmem:[%s4 + $0x48] sm:$0xff]
        %v2702 = vld [vmem:[%s4 + $0x50] sm:$0xff]
        %v2703 = vld [vmem:[%s4 + $0x58] sm:$0xff]
        %v2704 = vld [vmem:[%s4 + $0x60] sm:$0xff]
        %v2705 = vld [vmem:[%s4 + $0x68] sm:$0xff]
        %v2706 = vld [vmem:[%s4 + $0x70] sm:$0xff]
        %v2707 = vld [vmem:[%s4 + $0x78] sm:$0xff]
        %v2708 = vld [vmem:[%s4 + $0x80] sm:$0xff]
        %v2709 = vld [vmem:[%s4 + $0x88] sm:$0xff]
        %v2710 = vld [vmem:[%s4 + $0x90] sm:$0xff]
        %v2711 = vld [vmem:[%s4 + $0x98] sm:$0xff]
        %v2712 = vld [vmem:[%s4 + $0xa0] sm:$0xff]
        %v2713 = vld [vmem:[%s4 + $0xa8] sm:$0xff]
        %v2714 = vld [vmem:[%s4 + $0xb0] sm:$0xff]
        %v2715 = vld [vmem:[%s4 + $0xb8] sm:$0xff]
        %v2716 = vld [vmem:[%s4 + $0xc0] sm:$0xff]
        %v2717 = vld [vmem:[%s4 + $0xc8] sm:$0xff]
        %v2718 = vld [vmem:[%s4 + $0xd0] sm:$0xff]
        %v2719 = vld [vmem:[%s4 + $0xd8] sm:$0xff]
        %v2720 = vld [vmem:[%s4 + $0xe0] sm:$0xff]
        %v2721 = vld [vmem:[%s4 + $0xe8] sm:$0xff]
        %v2722 = vld [vmem:[%s4 + $0xf0] sm:$0xff]
        %v2723 = vld [vmem:[%s4 + $0xf8] sm:$0xff]
        %v2724 = vld [vmem:[%s4 + $0x100] sm:$0xff]
        %v2725 = vld [vmem:[%s4 + $0x108] sm:$0xff]
        %v2726 = vld [vmem:[%s4 + $0x110] sm:$0xff]
        %v2727 = vld [vmem:[%s4 + $0x118] sm:$0xff]
        %v2728 = vld [vmem:[%s4 + $0x120] sm:$0xff]
        %v2729 = vld [vmem:[%s4 + $0x128] sm:$0xff]
        %v2730 = vld [vmem:[%s4 + $0x130] sm:$0xff]
        %v2731 = vld [vmem:[%s4 + $0x138] sm:$0xff]
        %v2732 = vld [vmem:[%s4 + $0x140] sm:$0xff]
        %v2733 = vld [vmem:[%s4 + $0x148] sm:$0xff]
        %v2734 = vld [vmem:[%s4 + $0x150] sm:$0xff]
        %v2735 = vld [vmem:[%s4 + $0x158] sm:$0xff]
        %v2736 = vld [vmem:[%s4 + $0x160] sm:$0xff]
        %v2737 = vld [vmem:[%s4 + $0x168] sm:$0xff]
        %v2738 = vld [vmem:[%s4 + $0x170] sm:$0xff]
        %v2739 = vld [vmem:[%s4 + $0x178] sm:$0xff]
        %v2788 = vunpack.c.l.b16 %v2692
        %v2789 = vunpack.c.h.b16 %v2692
        %v2790 = vunpack.c.l.b16 %v2693
        %v2791 = vunpack.c.h.b16 %v2693
        %v2792 = vunpack.c.l.b16 %v2694
        %v2793 = vunpack.c.h.b16 %v2694
        %v2794 = vunpack.c.l.b16 %v2695
        %v2795 = vunpack.c.h.b16 %v2695
        %v2796 = vunpack.c.l.b16 %v2696
        %v2797 = vunpack.c.h.b16 %v2696
        %v2798 = vunpack.c.l.b16 %v2697
        %v2799 = vunpack.c.h.b16 %v2697
        %v2800 = vunpack.c.l.b16 %v2698
        %v2801 = vunpack.c.h.b16 %v2698
        %v2802 = vunpack.c.l.b16 %v2699
        %v2803 = vunpack.c.h.b16 %v2699
        %v2804 = vunpack.c.l.b16 %v2700
        %v2805 = vunpack.c.h.b16 %v2700
        %v2806 = vunpack.c.l.b16 %v2701
        %v2807 = vunpack.c.h.b16 %v2701
        %v2808 = vunpack.c.l.b16 %v2702
        %v2809 = vunpack.c.h.b16 %v2702
        %v2810 = vunpack.c.l.b16 %v2703
        %v2811 = vunpack.c.h.b16 %v2703
        %v2812 = vunpack.c.l.b16 %v2704
        %v2813 = vunpack.c.h.b16 %v2704
        %v2814 = vunpack.c.l.b16 %v2705
        %v2815 = vunpack.c.h.b16 %v2705
        %v2816 = vunpack.c.l.b16 %v2706
        %v2817 = vunpack.c.h.b16 %v2706
        %v2818 = vunpack.c.l.b16 %v2707
        %v2819 = vunpack.c.h.b16 %v2707
        %v2820 = vunpack.c.l.b16 %v2708
        %v2821 = vunpack.c.h.b16 %v2708
        %v2822 = vunpack.c.l.b16 %v2709
        %v2823 = vunpack.c.h.b16 %v2709
        %v2824 = vunpack.c.l.b16 %v2710
        %v2825 = vunpack.c.h.b16 %v2710
        %v2826 = vunpack.c.l.b16 %v2711
        %v2827 = vunpack.c.h.b16 %v2711
        %v2828 = vunpack.c.l.b16 %v2712
        %v2829 = vunpack.c.h.b16 %v2712
        %v2830 = vunpack.c.l.b16 %v2713
        %v2831 = vunpack.c.h.b16 %v2713
        %v2832 = vunpack.c.l.b16 %v2714
        %v2833 = vunpack.c.h.b16 %v2714
        %v2834 = vunpack.c.l.b16 %v2715
        %v2835 = vunpack.c.h.b16 %v2715
        %v2836 = vunpack.c.l.b16 %v2716
        %v2837 = vunpack.c.h.b16 %v2716
        %v2838 = vunpack.c.l.b16 %v2717
        %v2839 = vunpack.c.h.b16 %v2717
        %v2840 = vunpack.c.l.b16 %v2718
        %v2841 = vunpack.c.h.b16 %v2718
        %v2842 = vunpack.c.l.b16 %v2719
        %v2843 = vunpack.c.h.b16 %v2719
        %v2844 = vunpack.c.l.b16 %v2720
        %v2845 = vunpack.c.h.b16 %v2720
        %v2846 = vunpack.c.l.b16 %v2721
        %v2847 = vunpack.c.h.b16 %v2721
        %v2848 = vunpack.c.l.b16 %v2722
        %v2849 = vunpack.c.h.b16 %v2722
        %v2850 = vunpack.c.l.b16 %v2723
        %v2851 = vunpack.c.h.b16 %v2723
        %v2852 = vunpack.c.l.b16 %v2724
        %v2853 = vunpack.c.h.b16 %v2724
        %v2854 = vunpack.c.l.b16 %v2725
        %v2855 = vunpack.c.h.b16 %v2725
        %v2856 = vunpack.c.l.b16 %v2726
        %v2857 = vunpack.c.h.b16 %v2726
        %v2858 = vunpack.c.l.b16 %v2727
        %v2859 = vunpack.c.h.b16 %v2727
        %v2860 = vunpack.c.l.b16 %v2728
        %v2861 = vunpack.c.h.b16 %v2728
        %v2862 = vunpack.c.l.b16 %v2729
        %v2863 = vunpack.c.h.b16 %v2729
        %v2864 = vunpack.c.l.b16 %v2730
        %v2865 = vunpack.c.h.b16 %v2730
        %v2866 = vunpack.c.l.b16 %v2731
        %v2867 = vunpack.c.h.b16 %v2731
        %v2868 = vunpack.c.l.b16 %v2732
        %v2869 = vunpack.c.h.b16 %v2732
        %v2870 = vunpack.c.l.b16 %v2733
        %v2871 = vunpack.c.h.b16 %v2733
        %v2872 = vunpack.c.l.b16 %v2734
        %v2873 = vunpack.c.h.b16 %v2734
        %v2874 = vunpack.c.l.b16 %v2735
        %v2875 = vunpack.c.h.b16 %v2735
        %v2876 = vunpack.c.l.b16 %v2736
        %v2877 = vunpack.c.h.b16 %v2736
        %v2878 = vunpack.c.l.b16 %v2737
        %v2879 = vunpack.c.h.b16 %v2737
        %v2880 = vunpack.c.l.b16 %v2738
        %v2881 = vunpack.c.h.b16 %v2738
        %v2882 = vunpack.c.l.b16 %v2739
        %v2883 = vunpack.c.h.b16 %v2739
        %v2884 = vpack.c.b16 %v2790, %v2788
        %v2885 = vpack.c.b16 %v2791, %v2789
        %v2886 = vpack.c.b16 %v2794, %v2792
        %v2887 = vpack.c.b16 %v2795, %v2793
        %v2888 = vpack.c.b16 %v2798, %v2796
        %v2889 = vpack.c.b16 %v2799, %v2797
        %v2890 = vpack.c.b16 %v2802, %v2800
        %v2891 = vpack.c.b16 %v2803, %v2801
        %v2892 = vpack.c.b16 %v2806, %v2804
        %v2893 = vpack.c.b16 %v2807, %v2805
        %v2894 = vpack.c.b16 %v2810, %v2808
        %v2895 = vpack.c.b16 %v2811, %v2809
        %v2896 = vpack.c.b16 %v2814, %v2812
        %v2897 = vpack.c.b16 %v2815, %v2813
        %v2898 = vpack.c.b16 %v2818, %v2816
        %v2899 = vpack.c.b16 %v2819, %v2817
        %v2900 = vpack.c.b16 %v2822, %v2820
        %v2901 = vpack.c.b16 %v2823, %v2821
        %v2902 = vpack.c.b16 %v2826, %v2824
        %v2903 = vpack.c.b16 %v2827, %v2825
        %v2904 = vpack.c.b16 %v2830, %v2828
        %v2905 = vpack.c.b16 %v2831, %v2829
        %v2906 = vpack.c.b16 %v2834, %v2832
        %v2907 = vpack.c.b16 %v2835, %v2833
        %v2908 = vpack.c.b16 %v2838, %v2836
        %v2909 = vpack.c.b16 %v2839, %v2837
        %v2910 = vpack.c.b16 %v2842, %v2840
        %v2911 = vpack.c.b16 %v2843, %v2841
        %v2912 = vpack.c.b16 %v2846, %v2844
        %v2913 = vpack.c.b16 %v2847, %v2845
        %v2914 = vpack.c.b16 %v2850, %v2848
        %v2915 = vpack.c.b16 %v2851, %v2849
        %v2916 = vpack.c.b16 %v2854, %v2852
        %v2917 = vpack.c.b16 %v2855, %v2853
        %v2918 = vpack.c.b16 %v2858, %v2856
        %v2919 = vpack.c.b16 %v2859, %v2857
        %v2920 = vpack.c.b16 %v2862, %v2860
        %v2921 = vpack.c.b16 %v2863, %v2861
        %v2922 = vpack.c.b16 %v2866, %v2864
        %v2923 = vpack.c.b16 %v2867, %v2865
        %v2924 = vpack.c.b16 %v2870, %v2868
        %v2925 = vpack.c.b16 %v2871, %v2869
        %v2926 = vpack.c.b16 %v2874, %v2872
        %v2927 = vpack.c.b16 %v2875, %v2873
        %v2928 = vpack.c.b16 %v2878, %v2876
        %v2929 = vpack.c.b16 %v2879, %v2877
        %v2930 = vpack.c.b16 %v2882, %v2880
        %v2931 = vpack.c.b16 %v2883, %v2881
        %2980 = vmatprep.subr.bf16.mxu0 %v2885
        %2981 = vmatpush1.bf16.msra.mxu0 %v2884
        %2982 = vmatprep.subr.bf16.mxu0 %v2887
        %2983 = vmatpush1.bf16.msra.mxu0 %v2886
        %2984 = vmatprep.subr.bf16.mxu0 %v2889
        %2985 = vmatpush1.bf16.msra.mxu0 %v2888
        %2986 = vmatprep.subr.bf16.mxu0 %v2891
        %2987 = vmatpush1.bf16.msra.mxu0 %v2890
        %2988 = vmatprep.subr.bf16.mxu0 %v2893
        %2989 = vmatpush1.bf16.msra.mxu0 %v2892
        %2990 = vmatprep.subr.bf16.mxu0 %v2895
        %2991 = vmatpush1.bf16.msra.mxu0 %v2894
        %2992 = vmatprep.subr.bf16.mxu0 %v2897
        %2993 = vmatpush1.bf16.msra.mxu0 %v2896
        %2994 = vmatprep.subr.bf16.mxu0 %v2899
        %2995 = vmatpush1.bf16.msra.mxu0 %v2898
        %2996 = vmatprep.subr.bf16.mxu0 %v2901
        %2997 = vmatpush1.bf16.msra.mxu0 %v2900
        %2998 = vmatprep.subr.bf16.mxu0 %v2903
        %2999 = vmatpush1.bf16.msra.mxu0 %v2902
        %3000 = vmatprep.subr.bf16.mxu0 %v2905
        %3001 = vmatpush1.bf16.msra.mxu0 %v2904
        %3002 = vmatprep.subr.bf16.mxu0 %v2907
        %3003 = vmatpush1.bf16.msra.mxu0 %v2906
        %3004 = vmatprep.subr.bf16.mxu0 %v2909
        %3005 = vmatpush1.bf16.msra.mxu0 %v2908
        %3006 = vmatprep.subr.bf16.mxu0 %v2911
        %3007 = vmatpush1.bf16.msra.mxu0 %v2910
        %3008 = vmatprep.subr.bf16.mxu0 %v2913
        %3009 = vmatpush1.bf16.msra.mxu0 %v2912
        %3010 = vmatprep.subr.bf16.mxu0 %v2915
        %3011 = vmatpush1.bf16.msra.mxu0 %v2914
        %3012 = vmatprep.mubr.bf16.mxu0 %v2637
        %3013 = vmatmul.mubr.bf16.gmra.mrb[0].mxu0 %v2573
        %v3014 = vpop.f32.mrb[0].mxu0
        %v3015 = vadd.f32 0.0, %v3014
        %v3016 = vpop.f32.mrb[0].mxu0
        %v3017 = vadd.f32 0.0, %v3016
        %v3018 = vpop.f32.mrb[0].mxu0
        %v3019 = vadd.f32 0.0, %v3018
        %v3020 = vpop.f32.mrb[0].mxu0
        %v3021 = vadd.f32 0.0, %v3020
        %3022 = vmatprep.mubr.bf16.mxu0 %v2640
        %3023 = vmatmul.mubr.bf16.gmra.mrb[0].mxu0 %v2576
        %v3024 = vpop.f32.mrb[0].mxu0
        %v3025 = vadd.f32 0.0, %v3024
        %v3026 = vpop.f32.mrb[0].mxu0
        %v3027 = vadd.f32 0.0, %v3026
        %v3028 = vpop.f32.mrb[0].mxu0
        %v3029 = vadd.f32 0.0, %v3028
        %v3030 = vpop.f32.mrb[0].mxu0
        %v3031 = vadd.f32 0.0, %v3030
        %3032 = vmatprep.mubr.bf16.mxu0 %v2643
        %3033 = vmatmul.mubr.bf16.gmra.mrb[0].mxu0 %v2579
        %v3034 = vpop.f32.mrb[0].mxu0
        %v3035 = vadd.f32 0.0, %v3034
        %v3036 = vpop.f32.mrb[0].mxu0
        %v3037 = vadd.f32 0.0, %v3036
        %v3038 = vpop.f32.mrb[0].mxu0
        %v3039 = vadd.f32 0.0, %v3038
        %v3040 = vpop.f32.mrb[0].mxu0
        %v3041 = vadd.f32 0.0, %v3040
        %3042 = vmatprep.mubr.bf16.mxu0 %v2646
        %3043 = vmatmul.mubr.bf16.gmra.mrb[0].mxu0 %v2582
        %v3044 = vpop.f32.mrb[0].mxu0
        %v3045 = vadd.f32 0.0, %v3044
        %v3046 = vpop.f32.mrb[0].mxu0
        %v3047 = vadd.f32 0.0, %v3046
        %v3048 = vpop.f32.mrb[0].mxu0
        %v3049 = vadd.f32 0.0, %v3048
        %v3050 = vpop.f32.mrb[0].mxu0
        %v3051 = vadd.f32 0.0, %v3050
        %3052 = vmatprep.mubr.bf16.mxu0 %v2649
        %3053 = vmatmul.mubr.bf16.gmra.mrb[0].mxu0 %v2585
        %v3054 = vpop.f32.mrb[0].mxu0
        %v3055 = vadd.f32 0.0, %v3054
        %v3056 = vpop.f32.mrb[0].mxu0
        %v3057 = vadd.f32 0.0, %v3056
        %v3058 = vpop.f32.mrb[0].mxu0
        %v3059 = vadd.f32 0.0, %v3058
        %v3060 = vpop.f32.mrb[0].mxu0
        %v3061 = vadd.f32 0.0, %v3060
        %3062 = vmatprep.mubr.bf16.mxu0 %v2652
        %3063 = vmatmul.mubr.bf16.gmra.mrb[0].mxu0 %v2588
        %v3064 = vpop.f32.mrb[0].mxu0
        %v3065 = vadd.f32 0.0, %v3064
        %v3066 = vpop.f32.mrb[0].mxu0
        %v3067 = vadd.f32 0.0, %v3066
        %v3068 = vpop.f32.mrb[0].mxu0
        %v3069 = vadd.f32 0.0, %v3068
        %v3070 = vpop.f32.mrb[0].mxu0
        %v3071 = vadd.f32 0.0, %v3070
        %3072 = vmatprep.mubr.bf16.mxu0 %v2655
        %3073 = vmatmul.mubr.bf16.gmra.mrb[0].mxu0 %v2591
        %v3074 = vpop.f32.mrb[0].mxu0
        %v3075 = vadd.f32 0.0, %v3074
        %v3076 = vpop.f32.mrb[0].mxu0
        %v3077 = vadd.f32 0.0, %v3076
        %v3078 = vpop.f32.mrb[0].mxu0
        %v3079 = vadd.f32 0.0, %v3078
        %v3080 = vpop.f32.mrb[0].mxu0
        %v3081 = vadd.f32 0.0, %v3080
        %3082 = vmatprep.mubr.bf16.mxu0 %v2658
        %3083 = vmatmul.mubr.bf16.gmra.mrb[0].mxu0 %v2594
        %v3084 = vpop.f32.mrb[0].mxu0
        %v3085 = vadd.f32 0.0, %v3084
        %v3086 = vpop.f32.mrb[0].mxu0
        %v3087 = vadd.f32 0.0, %v3086
        %v3088 = vpop.f32.mrb[0].mxu0
        %v3089 = vadd.f32 0.0, %v3088
        %v3090 = vpop.f32.mrb[0].mxu0
        %v3091 = vadd.f32 0.0, %v3090
        %3092 = vdwg.mxu0
        %3093 = vmatprep.subr.bf16.mxu0 %v2917
        %3094 = vmatpush1.bf16.msra.mxu0 %v2916
        %3095 = vmatprep.subr.bf16.mxu0 %v2919
        %3096 = vmatpush1.bf16.msra.mxu0 %v2918
        %3097 = vmatprep.subr.bf16.mxu0 %v2921
        %3098 = vmatpush1.bf16.msra.mxu0 %v2920
        %3099 = vmatprep.subr.bf16.mxu0 %v2923
        %3100 = vmatpush1.bf16.msra.mxu0 %v2922
        %3101 = vmatprep.subr.bf16.mxu0 %v2925
        %3102 = vmatpush1.bf16.msra.mxu0 %v2924
        %3103 = vmatprep.subr.bf16.mxu0 %v2927
        %3104 = vmatpush1.bf16.msra.mxu0 %v2926
        %3105 = vmatprep.subr.bf16.mxu0 %v2929
        %3106 = vmatpush1.bf16.msra.mxu0 %v2928
        %3107 = vmatprep.subr.bf16.mxu0 %v2931
        %3108 = vmatpush1.bf16.msra.mxu0 %v2930
        %3109 = vmatprep.subr.bf16.mxu0 0
        %3110 = vmatpush1.bf16.msra.mxu0 0
        %3111 = vmatprep.subr.bf16.mxu0 0
        %3112 = vmatpush1.bf16.msra.mxu0 0
        %3113 = vmatprep.subr.bf16.mxu0 0
        %3114 = vmatpush1.bf16.msra.mxu0 0
        %3115 = vmatprep.subr.bf16.mxu0 0
        %3116 = vmatpush1.bf16.msra.mxu0 0
        %3117 = vmatprep.subr.bf16.mxu0 0
        %3118 = vmatpush1.bf16.msra.mxu0 0
        %3119 = vmatprep.subr.bf16.mxu0 0
        %3120 = vmatpush1.bf16.msra.mxu0 0
        %3121 = vmatprep.subr.bf16.mxu0 0
        %3122 = vmatpush1.bf16.msra.mxu0 0
        %3123 = vmatprep.subr.bf16.mxu0 0
        %3124 = vmatpush1.bf16.msra.mxu0 0
        %3125 = vmatprep.mubr.bf16.mxu0 0
        %3126 = vmatmul.mubr.bf16.gmra.mrb[0].mxu0 %v2662
        %v3127 = vpop.f32.mrb[0].mxu0
        %v3128 = vadd.f32 %v3015, %v3127
        %v3129 = vpop.f32.mrb[0].mxu0
        %v3130 = vadd.f32 %v3017, %v3129
        %v3131 = vpop.f32.mrb[0].mxu0
        %v3132 = vadd.f32 %v3019, %v3131
        %v3133 = vpop.f32.mrb[0].mxu0
        %v3134 = vadd.f32 %v3021, %v3133
        %3135 = vmatprep.mubr.bf16.mxu0 0
        %3136 = vmatmul.mubr.bf16.gmra.mrb[0].mxu0 %v2666
        %v3137 = vpop.f32.mrb[0].mxu0
        %v3138 = vadd.f32 %v3025, %v3137
        %v3139 = vpop.f32.mrb[0].mxu0
        %v3140 = vadd.f32 %v3027, %v3139
        %v3141 = vpop.f32.mrb[0].mxu0
        %v3142 = vadd.f32 %v3029, %v3141
        %v3143 = vpop.f32.mrb[0].mxu0
        %v3144 = vadd.f32 %v3031, %v3143
        %3145 = vmatprep.mubr.bf16.mxu0 0
        %3146 = vmatmul.mubr.bf16.gmra.mrb[0].mxu0 %v2670
        %v3147 = vpop.f32.mrb[0].mxu0
        %v3148 = vadd.f32 %v3035, %v3147
        %v3149 = vpop.f32.mrb[0].mxu0
        %v3150 = vadd.f32 %v3037, %v3149
        %v3151 = vpop.f32.mrb[0].mxu0
        %v3152 = vadd.f32 %v3039, %v3151
        %v3153 = vpop.f32.mrb[0].mxu0
        %v3154 = vadd.f32 %v3041, %v3153
        %3155 = vmatprep.mubr.bf16.mxu0 0
        %3156 = vmatmul.mubr.bf16.gmra.mrb[0].mxu0 %v2674
        %v3157 = vpop.f32.mrb[0].mxu0
        %v3158 = vadd.f32 %v3045, %v3157
        %v3159 = vpop.f32.mrb[0].mxu0
        %v3160 = vadd.f32 %v3047, %v3159
        %v3161 = vpop.f32.mrb[0].mxu0
        %v3162 = vadd.f32 %v3049, %v3161
        %v3163 = vpop.f32.mrb[0].mxu0
        %v3164 = vadd.f32 %v3051, %v3163
        %3165 = vmatprep.mubr.bf16.mxu0 0
        %3166 = vmatmul.mubr.bf16.gmra.mrb[0].mxu0 %v2678
        %v3167 = vpop.f32.mrb[0].mxu0
        %v3168 = vadd.f32 %v3055, %v3167
        %v3169 = vpop.f32.mrb[0].mxu0
        %v3170 = vadd.f32 %v3057, %v3169
        %v3171 = vpop.f32.mrb[0].mxu0
        %v3172 = vadd.f32 %v3059, %v3171
        %v3173 = vpop.f32.mrb[0].mxu0
        %v3174 = vadd.f32 %v3061, %v3173
        %3175 = vmatprep.mubr.bf16.mxu0 0
        %3176 = vmatmul.mubr.bf16.gmra.mrb[0].mxu0 %v2682
        %v3177 = vpop.f32.mrb[0].mxu0
        %v3178 = vadd.f32 %v3065, %v3177
        %v3179 = vpop.f32.mrb[0].mxu0
        %v3180 = vadd.f32 %v3067, %v3179
        %v3181 = vpop.f32.mrb[0].mxu0
        %v3182 = vadd.f32 %v3069, %v3181
        %v3183 = vpop.f32.mrb[0].mxu0
        %v3184 = vadd.f32 %v3071, %v3183
        %3185 = vmatprep.mubr.bf16.mxu0 0
        %3186 = vmatmul.mubr.bf16.gmra.mrb[0].mxu0 %v2686
        %v3187 = vpop.f32.mrb[0].mxu0
        %v3188 = vadd.f32 %v3075, %v3187
        %v3189 = vpop.f32.mrb[0].mxu0
        %v3190 = vadd.f32 %v3077, %v3189
        %v3191 = vpop.f32.mrb[0].mxu0
        %v3192 = vadd.f32 %v3079, %v3191
        %v3193 = vpop.f32.mrb[0].mxu0
        %v3194 = vadd.f32 %v3081, %v3193
        %3195 = vmatprep.mubr.bf16.mxu0 0
        %3196 = vmatmul.mubr.bf16.gmra.mrb[0].mxu0 %v2690
        %v3197 = vpop.f32.mrb[0].mxu0
        %v3198 = vadd.f32 %v3085, %v3197
        %v3199 = vpop.f32.mrb[0].mxu0
        %v3200 = vadd.f32 %v3087, %v3199
        %v3201 = vpop.f32.mrb[0].mxu0
        %v3202 = vadd.f32 %v3089, %v3201
        %v3203 = vpop.f32.mrb[0].mxu0
        %v3204 = vadd.f32 %v3091, %v3203
        %3205 = vdwg.mxu0
        %v3206 = vld [vmem:[%s5] sm:$0x3]
        %v3208 = vlaneseq
        %v3209 = vshrl.u32 %v3208, 7
        %v3210 = vsub.s32 0, %v3209
        %v3211 = vrot.slane %v3206, %v3210
        %v3212 = vlaneseq
        %v3213 = vshrl.u32 %v3212, 7
        %v3214 = vsub.s32 1, %v3213
        %v3215 = vrot.slane %v3206, %v3214
        %v3218 = vmul.f32 %v3128, %v3211
        %v3219 = vmul.f32 %v3130, %v3215
        %v3220 = vmul.f32 %v3132, %v3211
        %v3221 = vmul.f32 %v3134, %v3215
        %v3222 = vmul.f32 %v3138, %v3211
        %v3223 = vmul.f32 %v3140, %v3215
        %v3224 = vmul.f32 %v3142, %v3211
        %v3225 = vmul.f32 %v3144, %v3215
        %v3226 = vmul.f32 %v3148, %v3211
        %v3227 = vmul.f32 %v3150, %v3215
        %v3228 = vmul.f32 %v3152, %v3211
        %v3229 = vmul.f32 %v3154, %v3215
        %v3230 = vmul.f32 %v3158, %v3211
        %v3231 = vmul.f32 %v3160, %v3215
        %v3232 = vmul.f32 %v3162, %v3211
        %v3233 = vmul.f32 %v3164, %v3215
        %v3234 = vmul.f32 %v3168, %v3211
        %v3235 = vmul.f32 %v3170, %v3215
        %v3236 = vmul.f32 %v3172, %v3211
        %v3237 = vmul.f32 %v3174, %v3215
        %v3238 = vmul.f32 %v3178, %v3211
        %v3239 = vmul.f32 %v3180, %v3215
        %v3240 = vmul.f32 %v3182, %v3211
        %v3241 = vmul.f32 %v3184, %v3215
        %v3242 = vmul.f32 %v3188, %v3211
        %v3243 = vmul.f32 %v3190, %v3215
        %v3244 = vmul.f32 %v3192, %v3211
        %v3245 = vmul.f32 %v3194, %v3215
        %v3246 = vmul.f32 %v3198, %v3211
        %v3247 = vmul.f32 %v3200, %v3215
        %v3248 = vmul.f32 %v3202, %v3211
        %v3249 = vmul.f32 %v3204, %v3215
        %v3250 = vld [vmem:[%s6] sm:$0x3]
        %v3252 = vlaneseq
        %v3253 = vshrl.u32 %v3252, 7
        %v3254 = vsub.s32 0, %v3253
        %v3255 = vrot.slane %v3250, %v3254
        %v3256 = vlaneseq
        %v3257 = vshrl.u32 %v3256, 7
        %v3258 = vsub.s32 1, %v3257
        %v3259 = vrot.slane %v3250, %v3258
        %v3262 = vadd.f32 %v3218, %v3255
        %v3263 = vadd.f32 %v3219, %v3259
        %v3264 = vadd.f32 %v3220, %v3255
        %v3265 = vadd.f32 %v3221, %v3259
        %v3266 = vadd.f32 %v3222, %v3255
        %v3267 = vadd.f32 %v3223, %v3259
        %v3268 = vadd.f32 %v3224, %v3255
        %v3269 = vadd.f32 %v3225, %v3259
        %v3270 = vadd.f32 %v3226, %v3255
        %v3271 = vadd.f32 %v3227, %v3259
        %v3272 = vadd.f32 %v3228, %v3255
        %v3273 = vadd.f32 %v3229, %v3259
        %v3274 = vadd.f32 %v3230, %v3255
        %v3275 = vadd.f32 %v3231, %v3259
        %v3276 = vadd.f32 %v3232, %v3255
        %v3277 = vadd.f32 %v3233, %v3259
        %v3278 = vadd.f32 %v3234, %v3255
        %v3279 = vadd.f32 %v3235, %v3259
        %v3280 = vadd.f32 %v3236, %v3255
        %v3281 = vadd.f32 %v3237, %v3259
        %v3282 = vadd.f32 %v3238, %v3255
        %v3283 = vadd.f32 %v3239, %v3259
        %v3284 = vadd.f32 %v3240, %v3255
        %v3285 = vadd.f32 %v3241, %v3259
        %v3286 = vadd.f32 %v3242, %v3255
        %v3287 = vadd.f32 %v3243, %v3259
        %v3288 = vadd.f32 %v3244, %v3255
        %v3289 = vadd.f32 %v3245, %v3259
        %v3290 = vadd.f32 %v3246, %v3255
        %v3291 = vadd.f32 %v3247, %v3259
        %v3292 = vadd.f32 %v3248, %v3255
        %v3293 = vadd.f32 %v3249, %v3259
        %v3294 = vmax.f32 %v3262, 0.0
        %v3295 = vmax.f32 %v3263, 0.0
        %v3296 = vmax.f32 %v3264, 0.0
        %v3297 = vmax.f32 %v3265, 0.0
        %v3298 = vmax.f32 %v3266, 0.0
        %v3299 = vmax.f32 %v3267, 0.0
        %v3300 = vmax.f32 %v3268, 0.0
        %v3301 = vmax.f32 %v3269, 0.0
        %v3302 = vmax.f32 %v3270, 0.0
        %v3303 = vmax.f32 %v3271, 0.0
        %v3304 = vmax.f32 %v3272, 0.0
        %v3305 = vmax.f32 %v3273, 0.0
        %v3306 = vmax.f32 %v3274, 0.0
        %v3307 = vmax.f32 %v3275, 0.0
        %v3308 = vmax.f32 %v3276, 0.0
        %v3309 = vmax.f32 %v3277, 0.0
        %v3310 = vmax.f32 %v3278, 0.0
        %v3311 = vmax.f32 %v3279, 0.0
        %v3312 = vmax.f32 %v3280, 0.0
        %v3313 = vmax.f32 %v3281, 0.0
        %v3314 = vmax.f32 %v3282, 0.0
        %v3315 = vmax.f32 %v3283, 0.0
        %v3316 = vmax.f32 %v3284, 0.0
        %v3317 = vmax.f32 %v3285, 0.0
        %v3318 = vmax.f32 %v3286, 0.0
        %v3319 = vmax.f32 %v3287, 0.0
        %v3320 = vmax.f32 %v3288, 0.0
        %v3321 = vmax.f32 %v3289, 0.0
        %v3322 = vmax.f32 %v3290, 0.0
        %v3323 = vmax.f32 %v3291, 0.0
        %v3324 = vmax.f32 %v3292, 0.0
        %v3325 = vmax.f32 %v3293, 0.0
        %v3326 = vpack.c.bf16 %v3296, %v3294
        %v3327 = vpack.c.bf16 %v3297, %v3295
        %v3328 = vpack.c.bf16 %v3300, %v3298
        %v3329 = vpack.c.bf16 %v3301, %v3299
        %v3330 = vpack.c.bf16 %v3304, %v3302
        %v3331 = vpack.c.bf16 %v3305, %v3303
        %v3332 = vpack.c.bf16 %v3308, %v3306
        %v3333 = vpack.c.bf16 %v3309, %v3307
        %v3334 = vpack.c.bf16 %v3312, %v3310
        %v3335 = vpack.c.bf16 %v3313, %v3311
        %v3336 = vpack.c.bf16 %v3316, %v3314
        %v3337 = vpack.c.bf16 %v3317, %v3315
        %v3338 = vpack.c.bf16 %v3320, %v3318
        %v3339 = vpack.c.bf16 %v3321, %v3319
        %v3340 = vpack.c.bf16 %v3324, %v3322
        %v3341 = vpack.c.bf16 %v3325, %v3323
        %v3342 = vld [vmem:[%s7] sm:$0xf]
        %v3343 = vld [vmem:[%s7 + $0x4] sm:$0xf]
        %v3344 = vld [vmem:[%s7 + $0x8] sm:$0xf]
        %v3345 = vld [vmem:[%s7 + $0xc] sm:$0xf]
        %v3346 = vld [vmem:[%s7 + $0x10] sm:$0xf]
        %v3347 = vld [vmem:[%s7 + $0x14] sm:$0xf]
        %v3348 = vld [vmem:[%s7 + $0x18] sm:$0xf]
        %v3349 = vld [vmem:[%s7 + $0x1c] sm:$0xf]
        %v3350 = vld [vmem:[%s7 + $0x20] sm:$0xf]
        %v3351 = vld [vmem:[%s7 + $0x24] sm:$0xf]
        %v3352 = vld [vmem:[%s7 + $0x28] sm:$0xf]
        %v3353 = vld [vmem:[%s7 + $0x2c] sm:$0xf]
        %v3354 = vld [vmem:[%s7 + $0x30] sm:$0xf]
        %v3355 = vld [vmem:[%s7 + $0x34] sm:$0xf]
        %v3356 = vld [vmem:[%s7 + $0x38] sm:$0xf]
        %v3357 = vld [vmem:[%s7 + $0x3c] sm:$0xf]
        %v3358 = vld [vmem:[%s7 + $0x40] sm:$0xf]
        %v3359 = vld [vmem:[%s7 + $0x44] sm:$0xf]
        %v3360 = vld [vmem:[%s7 + $0x48] sm:$0xf]
        %v3361 = vld [vmem:[%s7 + $0x4c] sm:$0xf]
        %v3362 = vld [vmem:[%s7 + $0x50] sm:$0xf]
        %v3363 = vld [vmem:[%s7 + $0x54] sm:$0xf]
        %v3364 = vld [vmem:[%s7 + $0x58] sm:$0xf]
        %v3365 = vld [vmem:[%s7 + $0x5c] sm:$0xf]
        %v3366 = vld [vmem:[%s7 + $0x60] sm:$0xf]
        %v3367 = vld [vmem:[%s7 + $0x64] sm:$0xf]
        %v3368 = vld [vmem:[%s7 + $0x68] sm:$0xf]
        %v3369 = vld [vmem:[%s7 + $0x6c] sm:$0xf]
        %v3370 = vld [vmem:[%s7 + $0x70] sm:$0xf]
        %v3371 = vld [vmem:[%s7 + $0x74] sm:$0xf]
        %v3372 = vld [vmem:[%s7 + $0x78] sm:$0xf]
        %v3373 = vld [vmem:[%s7 + $0x7c] sm:$0xf]
        %v3406 = vunpack.c.l.b16 %v3342
        %v3407 = vunpack.c.l.b16 %v3343
        %v3408 = vunpack.c.l.b16 %v3344
        %v3409 = vunpack.c.l.b16 %v3345
        %v3410 = vunpack.c.l.b16 %v3346
        %v3411 = vunpack.c.l.b16 %v3347
        %v3412 = vunpack.c.l.b16 %v3348
        %v3413 = vunpack.c.l.b16 %v3349
        %v3414 = vunpack.c.l.b16 %v3350
        %v3415 = vunpack.c.l.b16 %v3351
        %v3416 = vunpack.c.l.b16 %v3352
        %v3417 = vunpack.c.l.b16 %v3353
        %v3418 = vunpack.c.l.b16 %v3354
        %v3419 = vunpack.c.l.b16 %v3355
        %v3420 = vunpack.c.l.b16 %v3356
        %v3421 = vunpack.c.l.b16 %v3357
        %v3422 = vunpack.c.l.b16 %v3358
        %v3423 = vunpack.c.l.b16 %v3359
        %v3424 = vunpack.c.l.b16 %v3360
        %v3425 = vunpack.c.l.b16 %v3361
        %v3426 = vunpack.c.l.b16 %v3362
        %v3427 = vunpack.c.l.b16 %v3363
        %v3428 = vunpack.c.l.b16 %v3364
        %v3429 = vunpack.c.l.b16 %v3365
        %v3430 = vunpack.c.l.b16 %v3366
        %v3431 = vunpack.c.l.b16 %v3367
        %v3432 = vunpack.c.l.b16 %v3368
        %v3433 = vunpack.c.l.b16 %v3369
        %v3434 = vunpack.c.l.b16 %v3370
        %v3435 = vunpack.c.l.b16 %v3371
        %v3436 = vunpack.c.l.b16 %v3372
        %v3437 = vunpack.c.l.b16 %v3373
        %v3438 = vpack.c.b16 %v3407, %v3406
        %v3439 = vpack.c.b16 %v3409, %v3408
        %v3440 = vpack.c.b16 %v3411, %v3410
        %v3441 = vpack.c.b16 %v3413, %v3412
        %v3442 = vpack.c.b16 %v3415, %v3414
        %v3443 = vpack.c.b16 %v3417, %v3416
        %v3444 = vpack.c.b16 %v3419, %v3418
        %v3445 = vpack.c.b16 %v3421, %v3420
        %v3446 = vpack.c.b16 %v3423, %v3422
        %v3447 = vpack.c.b16 %v3425, %v3424
        %v3448 = vpack.c.b16 %v3427, %v3426
        %v3449 = vpack.c.b16 %v3429, %v3428
        %v3450 = vpack.c.b16 %v3431, %v3430
        %v3451 = vpack.c.b16 %v3433, %v3432
        %v3452 = vpack.c.b16 %v3435, %v3434
        %v3453 = vpack.c.b16 %v3437, %v3436
        %3470 = vmatprep.subr.bf16.mxu0 0
        %3471 = vmatpush1.bf16.msra.mxu0 %v3438
        %3472 = vmatprep.subr.bf16.mxu0 0
        %3473 = vmatpush1.bf16.msra.mxu0 %v3439
        %3474 = vmatprep.subr.bf16.mxu0 0
        %3475 = vmatpush1.bf16.msra.mxu0 %v3440
        %3476 = vmatprep.subr.bf16.mxu0 0
        %3477 = vmatpush1.bf16.msra.mxu0 %v3441
        %3478 = vmatprep.subr.bf16.mxu0 0
        %3479 = vmatpush1.bf16.msra.mxu0 %v3442
        %3480 = vmatprep.subr.bf16.mxu0 0
        %3481 = vmatpush1.bf16.msra.mxu0 %v3443
        %3482 = vmatprep.subr.bf16.mxu0 0
        %3483 = vmatpush1.bf16.msra.mxu0 %v3444
        %3484 = vmatprep.subr.bf16.mxu0 0
        %3485 = vmatpush1.bf16.msra.mxu0 %v3445
        %3486 = vmatprep.subr.bf16.mxu0 0
        %3487 = vmatpush1.bf16.msra.mxu0 %v3446
        %3488 = vmatprep.subr.bf16.mxu0 0
        %3489 = vmatpush1.bf16.msra.mxu0 %v3447
        %3490 = vmatprep.subr.bf16.mxu0 0
        %3491 = vmatpush1.bf16.msra.mxu0 %v3448
        %3492 = vmatprep.subr.bf16.mxu0 0
        %3493 = vmatpush1.bf16.msra.mxu0 %v3449
        %3494 = vmatprep.subr.bf16.mxu0 0
        %3495 = vmatpush1.bf16.msra.mxu0 %v3450
        %3496 = vmatprep.subr.bf16.mxu0 0
        %3497 = vmatpush1.bf16.msra.mxu0 %v3451
        %3498 = vmatprep.subr.bf16.mxu0 0
        %3499 = vmatpush1.bf16.msra.mxu0 %v3452
        %3500 = vmatprep.subr.bf16.mxu0 0
        %3501 = vmatpush1.bf16.msra.mxu0 %v3453
        %3502 = vmatprep.mubr.bf16.mxu0 %v3327
        %3503 = vmatmul.mubr.bf16.gmra.mrb[0].mxu0 %v3326
        %v3504 = vpop.f32.mrb[0].mxu0
        %v3505 = vadd.f32 0.0, %v3504
        %v3506 = vpop.f32.mrb[0].mxu0
        %v3507 = vpop.f32.mrb[0].mxu0
        %v3508 = vadd.f32 0.0, %v3507
        %v3509 = vpop.f32.mrb[0].mxu0
        %3510 = vmatprep.mubr.bf16.mxu0 %v3329
        %3511 = vmatmul.mubr.bf16.gmra.mrb[0].mxu0 %v3328
        %v3512 = vpop.f32.mrb[0].mxu0
        %v3513 = vadd.f32 0.0, %v3512
        %v3514 = vpop.f32.mrb[0].mxu0
        %v3515 = vpop.f32.mrb[0].mxu0
        %v3516 = vadd.f32 0.0, %v3515
        %v3517 = vpop.f32.mrb[0].mxu0
        %3518 = vmatprep.mubr.bf16.mxu0 %v3331
        %3519 = vmatmul.mubr.bf16.gmra.mrb[0].mxu0 %v3330
        %v3520 = vpop.f32.mrb[0].mxu0
        %v3521 = vadd.f32 0.0, %v3520
        %v3522 = vpop.f32.mrb[0].mxu0
        %v3523 = vpop.f32.mrb[0].mxu0
        %v3524 = vadd.f32 0.0, %v3523
        %v3525 = vpop.f32.mrb[0].mxu0
        %3526 = vmatprep.mubr.bf16.mxu0 %v3333
        %3527 = vmatmul.mubr.bf16.gmra.mrb[0].mxu0 %v3332
        %v3528 = vpop.f32.mrb[0].mxu0
        %v3529 = vadd.f32 0.0, %v3528
        %v3530 = vpop.f32.mrb[0].mxu0
        %v3531 = vpop.f32.mrb[0].mxu0
        %v3532 = vadd.f32 0.0, %v3531
        %v3533 = vpop.f32.mrb[0].mxu0
        %3534 = vmatprep.mubr.bf16.mxu0 %v3335
        %3535 = vmatmul.mubr.bf16.gmra.mrb[0].mxu0 %v3334
        %v3536 = vpop.f32.mrb[0].mxu0
        %v3537 = vadd.f32 0.0, %v3536
        %v3538 = vpop.f32.mrb[0].mxu0
        %v3539 = vpop.f32.mrb[0].mxu0
        %v3540 = vadd.f32 0.0, %v3539
        %v3541 = vpop.f32.mrb[0].mxu0
        %3542 = vmatprep.mubr.bf16.mxu0 %v3337
        %3543 = vmatmul.mubr.bf16.gmra.mrb[0].mxu0 %v3336
        %v3544 = vpop.f32.mrb[0].mxu0
        %v3545 = vadd.f32 0.0, %v3544
        %v3546 = vpop.f32.mrb[0].mxu0
        %v3547 = vpop.f32.mrb[0].mxu0
        %v3548 = vadd.f32 0.0, %v3547
        %v3549 = vpop.f32.mrb[0].mxu0
        %3550 = vmatprep.mubr.bf16.mxu0 %v3339
        %3551 = vmatmul.mubr.bf16.gmra.mrb[0].mxu0 %v3338
        %v3552 = vpop.f32.mrb[0].mxu0
        %v3553 = vadd.f32 0.0, %v3552
        %v3554 = vpop.f32.mrb[0].mxu0
        %v3555 = vpop.f32.mrb[0].mxu0
        %v3556 = vadd.f32 0.0, %v3555
        %v3557 = vpop.f32.mrb[0].mxu0
        %3558 = vmatprep.mubr.bf16.mxu0 %v3341
        %3559 = vmatmul.mubr.bf16.gmra.mrb[0].mxu0 %v3340
        %v3560 = vpop.f32.mrb[0].mxu0
        %v3561 = vadd.f32 0.0, %v3560
        %v3562 = vpop.f32.mrb[0].mxu0
        %v3563 = vpop.f32.mrb[0].mxu0
        %v3564 = vadd.f32 0.0, %v3563
        %v3565 = vpop.f32.mrb[0].mxu0
        %3566 = vdwg.mxu0
        %v3567 = vld [vmem:[%s8] sm:$0x1]
        %v3569 = vlaneseq
        %v3570 = vshrl.u32 %v3569, 7
        %v3571 = vsub.s32 0, %v3570
        %v3572 = vrot.slane %v3567, %v3571
        %v3574 = vmul.f32 %v3572, %v3505
        %v3575 = vmul.f32 %v3572, %v3508
        %v3576 = vmul.f32 %v3572, %v3513
        %v3577 = vmul.f32 %v3572, %v3516
        %v3578 = vmul.f32 %v3572, %v3521
        %v3579 = vmul.f32 %v3572, %v3524
        %v3580 = vmul.f32 %v3572, %v3529
        %v3581 = vmul.f32 %v3572, %v3532
        %v3582 = vmul.f32 %v3572, %v3537
        %v3583 = vmul.f32 %v3572, %v3540
        %v3584 = vmul.f32 %v3572, %v3545
        %v3585 = vmul.f32 %v3572, %v3548
        %v3586 = vmul.f32 %v3572, %v3553
        %v3587 = vmul.f32 %v3572, %v3556
        %v3588 = vmul.f32 %v3572, %v3561
        %v3589 = vmul.f32 %v3572, %v3564
        %v3590 = vadd.f32 %v689, %v3574
        %v3591 = vadd.f32 %v690, %v3575
        %v3592 = vadd.f32 %v691, %v3576
        %v3593 = vadd.f32 %v692, %v3577
        %v3594 = vadd.f32 %v693, %v3578
        %v3595 = vadd.f32 %v694, %v3579
        %v3596 = vadd.f32 %v695, %v3580
        %v3597 = vadd.f32 %v696, %v3581
        %v3598 = vadd.f32 %v697, %v3582
        %v3599 = vadd.f32 %v698, %v3583
        %v3600 = vadd.f32 %v699, %v3584
        %v3601 = vadd.f32 %v700, %v3585
        %v3602 = vadd.f32 %v701, %v3586
        %v3603 = vadd.f32 %v702, %v3587
        %v3604 = vadd.f32 %v703, %v3588
        %v3605 = vadd.f32 %v704, %v3589
        %v3606 = vpack.c.bf16 %v3591, %v3590
        %v3607 = vpack.c.bf16 %v3593, %v3592
        %v3608 = vpack.c.bf16 %v3595, %v3594
        %v3609 = vpack.c.bf16 %v3597, %v3596
        %v3610 = vpack.c.bf16 %v3599, %v3598
        %v3611 = vpack.c.bf16 %v3601, %v3600
        %v3612 = vpack.c.bf16 %v3603, %v3602
        %v3613 = vpack.c.bf16 %v3605, %v3604
        %v3622 = vunpack.c.l.b16 %v3606
        %v3623 = vunpack.c.h.b16 %v3606
        %v3624 = vunpack.c.l.b16 %v3607
        %v3625 = vunpack.c.h.b16 %v3607
        %v3626 = vunpack.c.l.b16 %v3608
        %v3627 = vunpack.c.h.b16 %v3608
        %v3628 = vunpack.c.l.b16 %v3609
        %v3629 = vunpack.c.h.b16 %v3609
        %v3630 = vunpack.c.l.b16 %v3610
        %v3631 = vunpack.c.h.b16 %v3610
        %v3632 = vunpack.c.l.b16 %v3611
        %v3633 = vunpack.c.h.b16 %v3611
        %v3634 = vunpack.c.l.b16 %v3612
        %v3635 = vunpack.c.h.b16 %v3612
        %v3636 = vunpack.c.l.b16 %v3613
        %v3637 = vunpack.c.h.b16 %v3613
        %v3638 = vpack.c.b16 %v3622, %v3622
        %v3639 = vpack.c.b16 %v3623, %v3623
        %v3640 = vpack.c.b16 %v3624, %v3624
        %v3641 = vpack.c.b16 %v3625, %v3625
        %v3642 = vpack.c.b16 %v3626, %v3626
        %v3643 = vpack.c.b16 %v3627, %v3627
        %v3644 = vpack.c.b16 %v3628, %v3628
        %v3645 = vpack.c.b16 %v3629, %v3629
        %v3646 = vpack.c.b16 %v3630, %v3630
        %v3647 = vpack.c.b16 %v3631, %v3631
        %v3648 = vpack.c.b16 %v3632, %v3632
        %v3649 = vpack.c.b16 %v3633, %v3633
        %v3650 = vpack.c.b16 %v3634, %v3634
        %v3651 = vpack.c.b16 %v3635, %v3635
        %v3652 = vpack.c.b16 %v3636, %v3636
        %v3653 = vpack.c.b16 %v3637, %v3637
        %v3655 = vshrl.u32 %v3638, 16
        %v3657 = vrot.slane %v3655, 7
        %v3658 = vshll.u32 %v3638, 16
        %v3660 = vor.u32 %v3657, %v3658
        %v3661 = vrot.slane %v3657, 4
        %v3663 = vshrl.u32 %v3639, 16
        %v3665 = vrot.slane %v3663, 7
        %v3666 = vshll.u32 %v3639, 16
        %v3668 = vor.u32 %v3665, %v3666
        %v3669 = vrot.slane %v3665, 4
        %v3671 = vshrl.u32 %v3640, 16
        %v3673 = vrot.slane %v3671, 7
        %v3674 = vshll.u32 %v3640, 16
        %v3676 = vor.u32 %v3673, %v3674
        %v3677 = vrot.slane %v3673, 4
        %v3679 = vshrl.u32 %v3641, 16
        %v3681 = vrot.slane %v3679, 7
        %v3682 = vshll.u32 %v3641, 16
        %v3684 = vor.u32 %v3681, %v3682
        %v3685 = vrot.slane %v3681, 4
        %v3687 = vshrl.u32 %v3642, 16
        %v3689 = vrot.slane %v3687, 7
        %v3690 = vshll.u32 %v3642, 16
        %v3692 = vor.u32 %v3689, %v3690
        %v3693 = vrot.slane %v3689, 4
        %v3695 = vshrl.u32 %v3643, 16
        %v3697 = vrot.slane %v3695, 7
        %v3698 = vshll.u32 %v3643, 16
        %v3700 = vor.u32 %v3697, %v3698
        %v3701 = vrot.slane %v3697, 4
        %v3703 = vshrl.u32 %v3644, 16
        %v3705 = vrot.slane %v3703, 7
        %v3706 = vshll.u32 %v3644, 16
        %v3708 = vor.u32 %v3705, %v3706
        %v3709 = vrot.slane %v3705, 4
        %v3711 = vshrl.u32 %v3645, 16
        %v3713 = vrot.slane %v3711, 7
        %v3714 = vshll.u32 %v3645, 16
        %v3716 = vor.u32 %v3713, %v3714
        %v3717 = vrot.slane %v3713, 4
        %v3719 = vshrl.u32 %v3646, 16
        %v3721 = vrot.slane %v3719, 7
        %v3722 = vshll.u32 %v3646, 16
        %v3724 = vor.u32 %v3721, %v3722
        %v3725 = vrot.slane %v3721, 4
        %v3727 = vshrl.u32 %v3647, 16
        %v3729 = vrot.slane %v3727, 7
        %v3730 = vshll.u32 %v3647, 16
        %v3732 = vor.u32 %v3729, %v3730
        %v3733 = vrot.slane %v3729, 4
        %v3735 = vshrl.u32 %v3648, 16
        %v3737 = vrot.slane %v3735, 7
        %v3738 = vshll.u32 %v3648, 16
        %v3740 = vor.u32 %v3737, %v3738
        %v3741 = vrot.slane %v3737, 4
        %v3743 = vshrl.u32 %v3649, 16
        %v3745 = vrot.slane %v3743, 7
        %v3746 = vshll.u32 %v3649, 16
        %v3748 = vor.u32 %v3745, %v3746
        %v3749 = vrot.slane %v3745, 4
        %v3751 = vshrl.u32 %v3650, 16
        %v3753 = vrot.slane %v3751, 7
        %v3754 = vshll.u32 %v3650, 16
        %v3756 = vor.u32 %v3753, %v3754
        %v3757 = vrot.slane %v3753, 4
        %v3759 = vshrl.u32 %v3651, 16
        %v3761 = vrot.slane %v3759, 7
        %v3762 = vshll.u32 %v3651, 16
        %v3764 = vor.u32 %v3761, %v3762
        %v3765 = vrot.slane %v3761, 4
        %v3767 = vshrl.u32 %v3652, 16
        %v3769 = vrot.slane %v3767, 7
        %v3770 = vshll.u32 %v3652, 16
        %v3772 = vor.u32 %v3769, %v3770
        %v3773 = vrot.slane %v3769, 4
        %v3775 = vshrl.u32 %v3653, 16
        %v3777 = vrot.slane %v3775, 7
        %v3778 = vshll.u32 %v3653, 16
        %v3780 = vor.u32 %v3777, %v3778
        %v3781 = vrot.slane %v3777, 4
        %v3814 = vsel %vm958, %v3660, %v1432
        %3815 = vst [vmem:[%s955] sm:$0xf] %v3814
        %v3816 = vld [vmem:[%s955 + $0x4] sm:$0x1]
        %v3817 = vsel %vm964, %v3661, %v3816
        %3818 = vst [vmem:[%s955 + $0x4] sm:$0x1] %v3817
        %v3819 = vld [vmem:[%s955 + $0x8] sm:$0xf]
        %v3820 = vsel %vm958, %v3668, %v3819
        %3821 = vst [vmem:[%s955 + $0x8] sm:$0xf] %v3820
        %v3822 = vld [vmem:[%s955 + $0xc] sm:$0x1]
        %v3823 = vsel %vm964, %v3669, %v3822
        %3824 = vst [vmem:[%s955 + $0xc] sm:$0x1] %v3823
        %v3825 = vld [vmem:[%s955 + $0x10] sm:$0xf]
        %v3826 = vsel %vm958, %v3676, %v3825
        %3827 = vst [vmem:[%s955 + $0x10] sm:$0xf] %v3826
        %v3828 = vld [vmem:[%s955 + $0x14] sm:$0x1]
        %v3829 = vsel %vm964, %v3677, %v3828
        %3830 = vst [vmem:[%s955 + $0x14] sm:$0x1] %v3829
        %v3831 = vld [vmem:[%s955 + $0x18] sm:$0xf]
        %v3832 = vsel %vm958, %v3684, %v3831
        %3833 = vst [vmem:[%s955 + $0x18] sm:$0xf] %v3832
        %v3834 = vld [vmem:[%s955 + $0x1c] sm:$0x1]
        %v3835 = vsel %vm964, %v3685, %v3834
        %3836 = vst [vmem:[%s955 + $0x1c] sm:$0x1] %v3835
        %v3837 = vld [vmem:[%s955 + $0x20] sm:$0xf]
        %v3838 = vsel %vm958, %v3692, %v3837
        %3839 = vst [vmem:[%s955 + $0x20] sm:$0xf] %v3838
        %v3840 = vld [vmem:[%s955 + $0x24] sm:$0x1]
        %v3841 = vsel %vm964, %v3693, %v3840
        %3842 = vst [vmem:[%s955 + $0x24] sm:$0x1] %v3841
        %v3843 = vld [vmem:[%s955 + $0x28] sm:$0xf]
        %v3844 = vsel %vm958, %v3700, %v3843
        %3845 = vst [vmem:[%s955 + $0x28] sm:$0xf] %v3844
        %v3846 = vld [vmem:[%s955 + $0x2c] sm:$0x1]
        %v3847 = vsel %vm964, %v3701, %v3846
        %3848 = vst [vmem:[%s955 + $0x2c] sm:$0x1] %v3847
        %v3849 = vld [vmem:[%s955 + $0x30] sm:$0xf]
        %v3850 = vsel %vm958, %v3708, %v3849
        %3851 = vst [vmem:[%s955 + $0x30] sm:$0xf] %v3850
        %v3852 = vld [vmem:[%s955 + $0x34] sm:$0x1]
        %v3853 = vsel %vm964, %v3709, %v3852
        %3854 = vst [vmem:[%s955 + $0x34] sm:$0x1] %v3853
        %v3855 = vld [vmem:[%s955 + $0x38] sm:$0xf]
        %v3856 = vsel %vm958, %v3716, %v3855
        %3857 = vst [vmem:[%s955 + $0x38] sm:$0xf] %v3856
        %v3858 = vld [vmem:[%s955 + $0x3c] sm:$0x1]
        %v3859 = vsel %vm964, %v3717, %v3858
        %3860 = vst [vmem:[%s955 + $0x3c] sm:$0x1] %v3859
        %v3861 = vld [vmem:[%s955 + $0x50] sm:$0xf]
        %v3862 = vsel %vm958, %v3724, %v3861
        %3863 = vst [vmem:[%s955 + $0x50] sm:$0xf] %v3862
        %v3864 = vld [vmem:[%s955 + $0x54] sm:$0x1]
        %v3865 = vsel %vm964, %v3725, %v3864
        %3866 = vst [vmem:[%s955 + $0x54] sm:$0x1] %v3865
        %v3867 = vld [vmem:[%s955 + $0x58] sm:$0xf]
        %v3868 = vsel %vm958, %v3732, %v3867
        %3869 = vst [vmem:[%s955 + $0x58] sm:$0xf] %v3868
        %v3870 = vld [vmem:[%s955 + $0x5c] sm:$0x1]
        %v3871 = vsel %vm964, %v3733, %v3870
        %3872 = vst [vmem:[%s955 + $0x5c] sm:$0x1] %v3871
        %v3873 = vld [vmem:[%s955 + $0x60] sm:$0xf]
        %v3874 = vsel %vm958, %v3740, %v3873
        %3875 = vst [vmem:[%s955 + $0x60] sm:$0xf] %v3874
        %v3876 = vld [vmem:[%s955 + $0x64] sm:$0x1]
        %v3877 = vsel %vm964, %v3741, %v3876
        %3878 = vst [vmem:[%s955 + $0x64] sm:$0x1] %v3877
        %v3879 = vld [vmem:[%s955 + $0x68] sm:$0xf]
        %v3880 = vsel %vm958, %v3748, %v3879
        %3881 = vst [vmem:[%s955 + $0x68] sm:$0xf] %v3880
        %v3882 = vld [vmem:[%s955 + $0x6c] sm:$0x1]
        %v3883 = vsel %vm964, %v3749, %v3882
        %3884 = vst [vmem:[%s955 + $0x6c] sm:$0x1] %v3883
        %v3885 = vld [vmem:[%s955 + $0x70] sm:$0xf]
        %v3886 = vsel %vm958, %v3756, %v3885
        %3887 = vst [vmem:[%s955 + $0x70] sm:$0xf] %v3886
        %v3888 = vld [vmem:[%s955 + $0x74] sm:$0x1]
        %v3889 = vsel %vm964, %v3757, %v3888
        %3890 = vst [vmem:[%s955 + $0x74] sm:$0x1] %v3889
        %v3891 = vld [vmem:[%s955 + $0x78] sm:$0xf]
        %v3892 = vsel %vm958, %v3764, %v3891
        %3893 = vst [vmem:[%s955 + $0x78] sm:$0xf] %v3892
        %v3894 = vld [vmem:[%s955 + $0x7c] sm:$0x1]
        %v3895 = vsel %vm964, %v3765, %v3894
        %3896 = vst [vmem:[%s955 + $0x7c] sm:$0x1] %v3895
        %v3897 = vld [vmem:[%s955 + $0x80] sm:$0xf]
        %v3898 = vsel %vm958, %v3772, %v3897
        %3899 = vst [vmem:[%s955 + $0x80] sm:$0xf] %v3898
        %v3900 = vld [vmem:[%s955 + $0x84] sm:$0x1]
        %v3901 = vsel %vm964, %v3773, %v3900
        %3902 = vst [vmem:[%s955 + $0x84] sm:$0x1] %v3901
        %v3903 = vld [vmem:[%s955 + $0x88] sm:$0xf]
        %v3904 = vsel %vm958, %v3780, %v3903
        %3905 = vst [vmem:[%s955 + $0x88] sm:$0xf] %v3904
        %v3906 = vld [vmem:[%s955 + $0x8c] sm:$0x1]
        %v3907 = vsel %vm964, %v3781, %v3906
        %3908 = vst [vmem:[%s955 + $0x8c] sm:$0x1] %v3907
        %v3909 = vld [vmem:[#allocation2] sm:$0xf]
        %v3910 = vld [vmem:[#allocation2 + $0x8] sm:$0xf]
        %v3911 = vld [vmem:[#allocation2 + $0x10] sm:$0xf]
        %v3912 = vld [vmem:[#allocation2 + $0x18] sm:$0xf]
        %v3913 = vld [vmem:[#allocation2 + $0x20] sm:$0xf]
        %v3914 = vld [vmem:[#allocation2 + $0x28] sm:$0xf]
        %v3915 = vld [vmem:[#allocation2 + $0x30] sm:$0xf]
        %v3916 = vld [vmem:[#allocation2 + $0x38] sm:$0xf]
        %v3917 = vld [vmem:[#allocation2 + $0x50] sm:$0xf]
        %v3918 = vld [vmem:[#allocation2 + $0x58] sm:$0xf]
        %v3919 = vld [vmem:[#allocation2 + $0x60] sm:$0xf]
        %v3920 = vld [vmem:[#allocation2 + $0x68] sm:$0xf]
        %v3921 = vld [vmem:[#allocation2 + $0x70] sm:$0xf]
        %v3922 = vld [vmem:[#allocation2 + $0x78] sm:$0xf]
        %v3923 = vld [vmem:[#allocation2 + $0x80] sm:$0xf]
        %v3924 = vld [vmem:[#allocation2 + $0x88] sm:$0xf]
        %v3925 = vld [vmem:[#allocation2 + $0x4] sm:$0x1]
        %v3926 = vld [vmem:[#allocation2 + $0xc] sm:$0x1]
        %v3927 = vld [vmem:[#allocation2 + $0x14] sm:$0x1]
        %v3928 = vld [vmem:[#allocation2 + $0x1c] sm:$0x1]
        %v3929 = vld [vmem:[#allocation2 + $0x24] sm:$0x1]
        %v3930 = vld [vmem:[#allocation2 + $0x2c] sm:$0x1]
        %v3931 = vld [vmem:[#allocation2 + $0x34] sm:$0x1]
        %v3932 = vld [vmem:[#allocation2 + $0x3c] sm:$0x1]
        %v3933 = vld [vmem:[#allocation2 + $0x54] sm:$0x1]
        %v3934 = vld [vmem:[#allocation2 + $0x5c] sm:$0x1]
        %v3935 = vld [vmem:[#allocation2 + $0x64] sm:$0x1]
        %v3936 = vld [vmem:[#allocation2 + $0x6c] sm:$0x1]
        %v3937 = vld [vmem:[#allocation2 + $0x74] sm:$0x1]
        %v3938 = vld [vmem:[#allocation2 + $0x7c] sm:$0x1]
        %v3939 = vld [vmem:[#allocation2 + $0x84] sm:$0x1]
        %v3940 = vld [vmem:[#allocation2 + $0x8c] sm:$0x1]
        %v3942 = vshrl.u32 %v3909, 16
        %v3944 = vrot.slane %v3942, 4
        %v3945 = vshll.u32 %v3909, 16
        %v3947 = vrot.slane %v3945, 5
        %v3948 = vor.u32 %v3944, %v3947
        %v3949 = vrot.slane %v3948, 4
        %v3951 = vshll.u32 %v3925, 16
        %v3953 = vrot.slane %v3951, 5
        %v3954 = vsel %vm1092, %v3949, %v3953
        %v3956 = vshrl.u32 %v3910, 16
        %v3958 = vrot.slane %v3956, 4
        %v3959 = vshll.u32 %v3910, 16
        %v3961 = vrot.slane %v3959, 5
        %v3962 = vor.u32 %v3958, %v3961
        %v3963 = vrot.slane %v3962, 4
        %v3965 = vshll.u32 %v3926, 16
        %v3967 = vrot.slane %v3965, 5
        %v3968 = vsel %vm1092, %v3963, %v3967
        %v3970 = vshrl.u32 %v3911, 16
        %v3972 = vrot.slane %v3970, 4
        %v3973 = vshll.u32 %v3911, 16
        %v3975 = vrot.slane %v3973, 5
        %v3976 = vor.u32 %v3972, %v3975
        %v3977 = vrot.slane %v3976, 4
        %v3979 = vshll.u32 %v3927, 16
        %v3981 = vrot.slane %v3979, 5
        %v3982 = vsel %vm1092, %v3977, %v3981
        %v3984 = vshrl.u32 %v3912, 16
        %v3986 = vrot.slane %v3984, 4
        %v3987 = vshll.u32 %v3912, 16
        %v3989 = vrot.slane %v3987, 5
        %v3990 = vor.u32 %v3986, %v3989
        %v3991 = vrot.slane %v3990, 4
        %v3993 = vshll.u32 %v3928, 16
        %v3995 = vrot.slane %v3993, 5
        %v3996 = vsel %vm1092, %v3991, %v3995
        %v3998 = vshrl.u32 %v3913, 16
        %v4000 = vrot.slane %v3998, 4
        %v4001 = vshll.u32 %v3913, 16
        %v4003 = vrot.slane %v4001, 5
        %v4004 = vor.u32 %v4000, %v4003
        %v4005 = vrot.slane %v4004, 4
        %v4007 = vshll.u32 %v3929, 16
        %v4009 = vrot.slane %v4007, 5
        %v4010 = vsel %vm1092, %v4005, %v4009
        %v4012 = vshrl.u32 %v3914, 16
        %v4014 = vrot.slane %v4012, 4
        %v4015 = vshll.u32 %v3914, 16
        %v4017 = vrot.slane %v4015, 5
        %v4018 = vor.u32 %v4014, %v4017
        %v4019 = vrot.slane %v4018, 4
        %v4021 = vshll.u32 %v3930, 16
        %v4023 = vrot.slane %v4021, 5
        %v4024 = vsel %vm1092, %v4019, %v4023
        %v4026 = vshrl.u32 %v3915, 16
        %v4028 = vrot.slane %v4026, 4
        %v4029 = vshll.u32 %v3915, 16
        %v4031 = vrot.slane %v4029, 5
        %v4032 = vor.u32 %v4028, %v4031
        %v4033 = vrot.slane %v4032, 4
        %v4035 = vshll.u32 %v3931, 16
        %v4037 = vrot.slane %v4035, 5
        %v4038 = vsel %vm1092, %v4033, %v4037
        %v4040 = vshrl.u32 %v3916, 16
        %v4042 = vrot.slane %v4040, 4
        %v4043 = vshll.u32 %v3916, 16
        %v4045 = vrot.slane %v4043, 5
        %v4046 = vor.u32 %v4042, %v4045
        %v4047 = vrot.slane %v4046, 4
        %v4049 = vshll.u32 %v3932, 16
        %v4051 = vrot.slane %v4049, 5
        %v4052 = vsel %vm1092, %v4047, %v4051
        %v4054 = vshrl.u32 %v3917, 16
        %v4056 = vrot.slane %v4054, 4
        %v4057 = vshll.u32 %v3917, 16
        %v4059 = vrot.slane %v4057, 5
        %v4060 = vor.u32 %v4056, %v4059
        %v4061 = vrot.slane %v4060, 4
        %v4063 = vshll.u32 %v3933, 16
        %v4065 = vrot.slane %v4063, 5
        %v4066 = vsel %vm1092, %v4061, %v4065
        %v4068 = vshrl.u32 %v3918, 16
        %v4070 = vrot.slane %v4068, 4
        %v4071 = vshll.u32 %v3918, 16
        %v4073 = vrot.slane %v4071, 5
        %v4074 = vor.u32 %v4070, %v4073
        %v4075 = vrot.slane %v4074, 4
        %v4077 = vshll.u32 %v3934, 16
        %v4079 = vrot.slane %v4077, 5
        %v4080 = vsel %vm1092, %v4075, %v4079
        %v4082 = vshrl.u32 %v3919, 16
        %v4084 = vrot.slane %v4082, 4
        %v4085 = vshll.u32 %v3919, 16
        %v4087 = vrot.slane %v4085, 5
        %v4088 = vor.u32 %v4084, %v4087
        %v4089 = vrot.slane %v4088, 4
        %v4091 = vshll.u32 %v3935, 16
        %v4093 = vrot.slane %v4091, 5
        %v4094 = vsel %vm1092, %v4089, %v4093
        %v4096 = vshrl.u32 %v3920, 16
        %v4098 = vrot.slane %v4096, 4
        %v4099 = vshll.u32 %v3920, 16
        %v4101 = vrot.slane %v4099, 5
        %v4102 = vor.u32 %v4098, %v4101
        %v4103 = vrot.slane %v4102, 4
        %v4105 = vshll.u32 %v3936, 16
        %v4107 = vrot.slane %v4105, 5
        %v4108 = vsel %vm1092, %v4103, %v4107
        %v4110 = vshrl.u32 %v3921, 16
        %v4112 = vrot.slane %v4110, 4
        %v4113 = vshll.u32 %v3921, 16
        %v4115 = vrot.slane %v4113, 5
        %v4116 = vor.u32 %v4112, %v4115
        %v4117 = vrot.slane %v4116, 4
        %v4119 = vshll.u32 %v3937, 16
        %v4121 = vrot.slane %v4119, 5
        %v4122 = vsel %vm1092, %v4117, %v4121
        %v4124 = vshrl.u32 %v3922, 16
        %v4126 = vrot.slane %v4124, 4
        %v4127 = vshll.u32 %v3922, 16
        %v4129 = vrot.slane %v4127, 5
        %v4130 = vor.u32 %v4126, %v4129
        %v4131 = vrot.slane %v4130, 4
        %v4133 = vshll.u32 %v3938, 16
        %v4135 = vrot.slane %v4133, 5
        %v4136 = vsel %vm1092, %v4131, %v4135
        %v4138 = vshrl.u32 %v3923, 16
        %v4140 = vrot.slane %v4138, 4
        %v4141 = vshll.u32 %v3923, 16
        %v4143 = vrot.slane %v4141, 5
        %v4144 = vor.u32 %v4140, %v4143
        %v4145 = vrot.slane %v4144, 4
        %v4147 = vshll.u32 %v3939, 16
        %v4149 = vrot.slane %v4147, 5
        %v4150 = vsel %vm1092, %v4145, %v4149
        %v4152 = vshrl.u32 %v3924, 16
        %v4154 = vrot.slane %v4152, 4
        %v4155 = vshll.u32 %v3924, 16
        %v4157 = vrot.slane %v4155, 5
        %v4158 = vor.u32 %v4154, %v4157
        %v4159 = vrot.slane %v4158, 4
        %v4161 = vshll.u32 %v3940, 16
        %v4163 = vrot.slane %v4161, 5
        %v4164 = vsel %vm1092, %v4159, %v4163
        %v4165 = vld [vmem:[#allocation2] sm:$0xe]
        %v4166 = vld [vmem:[#allocation2 + $0x8] sm:$0xe]
        %v4167 = vld [vmem:[#allocation2 + $0x10] sm:$0xe]
        %v4168 = vld [vmem:[#allocation2 + $0x18] sm:$0xe]
        %v4169 = vld [vmem:[#allocation2 + $0x20] sm:$0xe]
        %v4170 = vld [vmem:[#allocation2 + $0x28] sm:$0xe]
        %v4171 = vld [vmem:[#allocation2 + $0x30] sm:$0xe]
        %v4172 = vld [vmem:[#allocation2 + $0x38] sm:$0xe]
        %v4173 = vld [vmem:[#allocation2 + $0x50] sm:$0xe]
        %v4174 = vld [vmem:[#allocation2 + $0x58] sm:$0xe]
        %v4175 = vld [vmem:[#allocation2 + $0x60] sm:$0xe]
        %v4176 = vld [vmem:[#allocation2 + $0x68] sm:$0xe]
        %v4177 = vld [vmem:[#allocation2 + $0x70] sm:$0xe]
        %v4178 = vld [vmem:[#allocation2 + $0x78] sm:$0xe]
        %v4179 = vld [vmem:[#allocation2 + $0x80] sm:$0xe]
        %v4180 = vld [vmem:[#allocation2 + $0x88] sm:$0xe]
        %v4213 = vrot.slane %v4165, 5
        %v4214 = vrot.slane %v4213, 4
        %v4215 = vrot.slane %v3925, 5
        %v4216 = vsel %vm1367, %v4214, %v4215
        %v4217 = vrot.slane %v4166, 5
        %v4218 = vrot.slane %v4217, 4
        %v4219 = vrot.slane %v3926, 5
        %v4220 = vsel %vm1367, %v4218, %v4219
        %v4221 = vrot.slane %v4167, 5
        %v4222 = vrot.slane %v4221, 4
        %v4223 = vrot.slane %v3927, 5
        %v4224 = vsel %vm1367, %v4222, %v4223
        %v4225 = vrot.slane %v4168, 5
        %v4226 = vrot.slane %v4225, 4
        %v4227 = vrot.slane %v3928, 5
        %v4228 = vsel %vm1367, %v4226, %v4227
        %v4229 = vrot.slane %v4169, 5
        %v4230 = vrot.slane %v4229, 4
        %v4231 = vrot.slane %v3929, 5
        %v4232 = vsel %vm1367, %v4230, %v4231
        %v4233 = vrot.slane %v4170, 5
        %v4234 = vrot.slane %v4233, 4
        %v4235 = vrot.slane %v3930, 5
        %v4236 = vsel %vm1367, %v4234, %v4235
        %v4237 = vrot.slane %v4171, 5
        %v4238 = vrot.slane %v4237, 4
        %v4239 = vrot.slane %v3931, 5
        %v4240 = vsel %vm1367, %v4238, %v4239
        %v4241 = vrot.slane %v4172, 5
        %v4242 = vrot.slane %v4241, 4
        %v4243 = vrot.slane %v3932, 5
        %v4244 = vsel %vm1367, %v4242, %v4243
        %v4245 = vrot.slane %v4173, 5
        %v4246 = vrot.slane %v4245, 4
        %v4247 = vrot.slane %v3933, 5
        %v4248 = vsel %vm1367, %v4246, %v4247
        %v4249 = vrot.slane %v4174, 5
        %v4250 = vrot.slane %v4249, 4
        %v4251 = vrot.slane %v3934, 5
        %v4252 = vsel %vm1367, %v4250, %v4251
        %v4253 = vrot.slane %v4175, 5
        %v4254 = vrot.slane %v4253, 4
        %v4255 = vrot.slane %v3935, 5
        %v4256 = vsel %vm1367, %v4254, %v4255
        %v4257 = vrot.slane %v4176, 5
        %v4258 = vrot.slane %v4257, 4
        %v4259 = vrot.slane %v3936, 5
        %v4260 = vsel %vm1367, %v4258, %v4259
        %v4261 = vrot.slane %v4177, 5
        %v4262 = vrot.slane %v4261, 4
        %v4263 = vrot.slane %v3937, 5
        %v4264 = vsel %vm1367, %v4262, %v4263
        %v4265 = vrot.slane %v4178, 5
        %v4266 = vrot.slane %v4265, 4
        %v4267 = vrot.slane %v3938, 5
        %v4268 = vsel %vm1367, %v4266, %v4267
        %v4269 = vrot.slane %v4179, 5
        %v4270 = vrot.slane %v4269, 4
        %v4271 = vrot.slane %v3939, 5
        %v4272 = vsel %vm1367, %v4270, %v4271
        %v4273 = vrot.slane %v4180, 5
        %v4274 = vrot.slane %v4273, 4
        %v4275 = vrot.slane %v3940, 5
        %v4276 = vsel %vm1367, %v4274, %v4275
        %v4277 = vld [vmem:[%s955] sm:$0xf]
        %v4278 = vld [vmem:[%s955 + $0x8] sm:$0xf]
        %v4279 = vld [vmem:[%s955 + $0x10] sm:$0xf]
        %v4280 = vld [vmem:[%s955 + $0x18] sm:$0xf]
        %v4281 = vld [vmem:[%s955 + $0x20] sm:$0xf]
        %v4282 = vld [vmem:[%s955 + $0x28] sm:$0xf]
        %v4283 = vld [vmem:[%s955 + $0x30] sm:$0xf]
        %v4284 = vld [vmem:[%s955 + $0x38] sm:$0xf]
        %v4285 = vld [vmem:[%s955 + $0x50] sm:$0xf]
        %v4286 = vld [vmem:[%s955 + $0x58] sm:$0xf]
        %v4287 = vld [vmem:[%s955 + $0x60] sm:$0xf]
        %v4288 = vld [vmem:[%s955 + $0x68] sm:$0xf]
        %v4289 = vld [vmem:[%s955 + $0x70] sm:$0xf]
        %v4290 = vld [vmem:[%s955 + $0x78] sm:$0xf]
        %v4291 = vld [vmem:[%s955 + $0x80] sm:$0xf]
        %v4292 = vld [vmem:[%s955 + $0x88] sm:$0xf]
        %v4293 = vld [vmem:[%s955 + $0x4] sm:$0x1]
        %v4294 = vld [vmem:[%s955 + $0xc] sm:$0x1]
        %v4295 = vld [vmem:[%s955 + $0x14] sm:$0x1]
        %v4296 = vld [vmem:[%s955 + $0x1c] sm:$0x1]
        %v4297 = vld [vmem:[%s955 + $0x24] sm:$0x1]
        %v4298 = vld [vmem:[%s955 + $0x2c] sm:$0x1]
        %v4299 = vld [vmem:[%s955 + $0x34] sm:$0x1]
        %v4300 = vld [vmem:[%s955 + $0x3c] sm:$0x1]
        %v4301 = vld [vmem:[%s955 + $0x54] sm:$0x1]
        %v4302 = vld [vmem:[%s955 + $0x5c] sm:$0x1]
        %v4303 = vld [vmem:[%s955 + $0x64] sm:$0x1]
        %v4304 = vld [vmem:[%s955 + $0x6c] sm:$0x1]
        %v4305 = vld [vmem:[%s955 + $0x74] sm:$0x1]
        %v4306 = vld [vmem:[%s955 + $0x7c] sm:$0x1]
        %v4307 = vld [vmem:[%s955 + $0x84] sm:$0x1]
        %v4308 = vld [vmem:[%s955 + $0x8c] sm:$0x1]
        %v4310 = vshrl.u32 %v4277, 16
        %v4312 = vrot.slane %v4310, 4
        %v4313 = vshll.u32 %v4277, 16
        %v4315 = vrot.slane %v4313, 5
        %v4316 = vor.u32 %v4312, %v4315
        %v4317 = vrot.slane %v4316, 4
        %v4319 = vshll.u32 %v4293, 16
        %v4321 = vrot.slane %v4319, 5
        %v4322 = vsel %vm1092, %v4317, %v4321
        %v4324 = vshrl.u32 %v4278, 16
        %v4326 = vrot.slane %v4324, 4
        %v4327 = vshll.u32 %v4278, 16
        %v4329 = vrot.slane %v4327, 5
        %v4330 = vor.u32 %v4326, %v4329
        %v4331 = vrot.slane %v4330, 4
        %v4333 = vshll.u32 %v4294, 16
        %v4335 = vrot.slane %v4333, 5
        %v4336 = vsel %vm1092, %v4331, %v4335
        %v4338 = vshrl.u32 %v4279, 16
        %v4340 = vrot.slane %v4338, 4
        %v4341 = vshll.u32 %v4279, 16
        %v4343 = vrot.slane %v4341, 5
        %v4344 = vor.u32 %v4340, %v4343
        %v4345 = vrot.slane %v4344, 4
        %v4347 = vshll.u32 %v4295, 16
        %v4349 = vrot.slane %v4347, 5
        %v4350 = vsel %vm1092, %v4345, %v4349
        %v4352 = vshrl.u32 %v4280, 16
        %v4354 = vrot.slane %v4352, 4
        %v4355 = vshll.u32 %v4280, 16
        %v4357 = vrot.slane %v4355, 5
        %v4358 = vor.u32 %v4354, %v4357
        %v4359 = vrot.slane %v4358, 4
        %v4361 = vshll.u32 %v4296, 16
        %v4363 = vrot.slane %v4361, 5
        %v4364 = vsel %vm1092, %v4359, %v4363
        %v4366 = vshrl.u32 %v4281, 16
        %v4368 = vrot.slane %v4366, 4
        %v4369 = vshll.u32 %v4281, 16
        %v4371 = vrot.slane %v4369, 5
        %v4372 = vor.u32 %v4368, %v4371
        %v4373 = vrot.slane %v4372, 4
        %v4375 = vshll.u32 %v4297, 16
        %v4377 = vrot.slane %v4375, 5
        %v4378 = vsel %vm1092, %v4373, %v4377
        %v4380 = vshrl.u32 %v4282, 16
        %v4382 = vrot.slane %v4380, 4
        %v4383 = vshll.u32 %v4282, 16
        %v4385 = vrot.slane %v4383, 5
        %v4386 = vor.u32 %v4382, %v4385
        %v4387 = vrot.slane %v4386, 4
        %v4389 = vshll.u32 %v4298, 16
        %v4391 = vrot.slane %v4389, 5
        %v4392 = vsel %vm1092, %v4387, %v4391
        %v4394 = vshrl.u32 %v4283, 16
        %v4396 = vrot.slane %v4394, 4
        %v4397 = vshll.u32 %v4283, 16
        %v4399 = vrot.slane %v4397, 5
        %v4400 = vor.u32 %v4396, %v4399
        %v4401 = vrot.slane %v4400, 4
        %v4403 = vshll.u32 %v4299, 16
        %v4405 = vrot.slane %v4403, 5
        %v4406 = vsel %vm1092, %v4401, %v4405
        %v4408 = vshrl.u32 %v4284, 16
        %v4410 = vrot.slane %v4408, 4
        %v4411 = vshll.u32 %v4284, 16
        %v4413 = vrot.slane %v4411, 5
        %v4414 = vor.u32 %v4410, %v4413
        %v4415 = vrot.slane %v4414, 4
        %v4417 = vshll.u32 %v4300, 16
        %v4419 = vrot.slane %v4417, 5
        %v4420 = vsel %vm1092, %v4415, %v4419
        %v4422 = vshrl.u32 %v4285, 16
        %v4424 = vrot.slane %v4422, 4
        %v4425 = vshll.u32 %v4285, 16
        %v4427 = vrot.slane %v4425, 5
        %v4428 = vor.u32 %v4424, %v4427
        %v4429 = vrot.slane %v4428, 4
        %v4431 = vshll.u32 %v4301, 16
        %v4433 = vrot.slane %v4431, 5
        %v4434 = vsel %vm1092, %v4429, %v4433
        %v4436 = vshrl.u32 %v4286, 16
        %v4438 = vrot.slane %v4436, 4
        %v4439 = vshll.u32 %v4286, 16
        %v4441 = vrot.slane %v4439, 5
        %v4442 = vor.u32 %v4438, %v4441
        %v4443 = vrot.slane %v4442, 4
        %v4445 = vshll.u32 %v4302, 16
        %v4447 = vrot.slane %v4445, 5
        %v4448 = vsel %vm1092, %v4443, %v4447
        %v4450 = vshrl.u32 %v4287, 16
        %v4452 = vrot.slane %v4450, 4
        %v4453 = vshll.u32 %v4287, 16
        %v4455 = vrot.slane %v4453, 5
        %v4456 = vor.u32 %v4452, %v4455
        %v4457 = vrot.slane %v4456, 4
        %v4459 = vshll.u32 %v4303, 16
        %v4461 = vrot.slane %v4459, 5
        %v4462 = vsel %vm1092, %v4457, %v4461
        %v4464 = vshrl.u32 %v4288, 16
        %v4466 = vrot.slane %v4464, 4
        %v4467 = vshll.u32 %v4288, 16
        %v4469 = vrot.slane %v4467, 5
        %v4470 = vor.u32 %v4466, %v4469
        %v4471 = vrot.slane %v4470, 4
        %v4473 = vshll.u32 %v4304, 16
        %v4475 = vrot.slane %v4473, 5
        %v4476 = vsel %vm1092, %v4471, %v4475
        %v4478 = vshrl.u32 %v4289, 16
        %v4480 = vrot.slane %v4478, 4
        %v4481 = vshll.u32 %v4289, 16
        %v4483 = vrot.slane %v4481, 5
        %v4484 = vor.u32 %v4480, %v4483
        %v4485 = vrot.slane %v4484, 4
        %v4487 = vshll.u32 %v4305, 16
        %v4489 = vrot.slane %v4487, 5
        %v4490 = vsel %vm1092, %v4485, %v4489
        %v4492 = vshrl.u32 %v4290, 16
        %v4494 = vrot.slane %v4492, 4
        %v4495 = vshll.u32 %v4290, 16
        %v4497 = vrot.slane %v4495, 5
        %v4498 = vor.u32 %v4494, %v4497
        %v4499 = vrot.slane %v4498, 4
        %v4501 = vshll.u32 %v4306, 16
        %v4503 = vrot.slane %v4501, 5
        %v4504 = vsel %vm1092, %v4499, %v4503
        %v4506 = vshrl.u32 %v4291, 16
        %v4508 = vrot.slane %v4506, 4
        %v4509 = vshll.u32 %v4291, 16
        %v4511 = vrot.slane %v4509, 5
        %v4512 = vor.u32 %v4508, %v4511
        %v4513 = vrot.slane %v4512, 4
        %v4515 = vshll.u32 %v4307, 16
        %v4517 = vrot.slane %v4515, 5
        %v4518 = vsel %vm1092, %v4513, %v4517
        %v4520 = vshrl.u32 %v4292, 16
        %v4522 = vrot.slane %v4520, 4
        %v4523 = vshll.u32 %v4292, 16
        %v4525 = vrot.slane %v4523, 5
        %v4526 = vor.u32 %v4522, %v4525
        %v4527 = vrot.slane %v4526, 4
        %v4529 = vshll.u32 %v4308, 16
        %v4531 = vrot.slane %v4529, 5
        %v4532 = vsel %vm1092, %v4527, %v4531
        %v4533 = vld [vmem:[%s955] sm:$0xe]
        %v4534 = vld [vmem:[%s955 + $0x8] sm:$0xe]
        %v4535 = vld [vmem:[%s955 + $0x10] sm:$0xe]
        %v4536 = vld [vmem:[%s955 + $0x18] sm:$0xe]
        %v4537 = vld [vmem:[%s955 + $0x20] sm:$0xe]
        %v4538 = vld [vmem:[%s955 + $0x28] sm:$0xe]
        %v4539 = vld [vmem:[%s955 + $0x30] sm:$0xe]
        %v4540 = vld [vmem:[%s955 + $0x38] sm:$0xe]
        %v4541 = vld [vmem:[%s955 + $0x50] sm:$0xe]
        %v4542 = vld [vmem:[%s955 + $0x58] sm:$0xe]
        %v4543 = vld [vmem:[%s955 + $0x60] sm:$0xe]
        %v4544 = vld [vmem:[%s955 + $0x68] sm:$0xe]
        %v4545 = vld [vmem:[%s955 + $0x70] sm:$0xe]
        %v4546 = vld [vmem:[%s955 + $0x78] sm:$0xe]
        %v4547 = vld [vmem:[%s955 + $0x80] sm:$0xe]
        %v4548 = vld [vmem:[%s955 + $0x88] sm:$0xe]
        %v4581 = vrot.slane %v4533, 5
        %v4582 = vrot.slane %v4581, 4
        %v4583 = vrot.slane %v4293, 5
        %v4584 = vsel %vm1367, %v4582, %v4583
        %v4585 = vrot.slane %v4534, 5
        %v4586 = vrot.slane %v4585, 4
        %v4587 = vrot.slane %v4294, 5
        %v4588 = vsel %vm1367, %v4586, %v4587
        %v4589 = vrot.slane %v4535, 5
        %v4590 = vrot.slane %v4589, 4
        %v4591 = vrot.slane %v4295, 5
        %v4592 = vsel %vm1367, %v4590, %v4591
        %v4593 = vrot.slane %v4536, 5
        %v4594 = vrot.slane %v4593, 4
        %v4595 = vrot.slane %v4296, 5
        %v4596 = vsel %vm1367, %v4594, %v4595
        %v4597 = vrot.slane %v4537, 5
        %v4598 = vrot.slane %v4597, 4
        %v4599 = vrot.slane %v4297, 5
        %v4600 = vsel %vm1367, %v4598, %v4599
        %v4601 = vrot.slane %v4538, 5
        %v4602 = vrot.slane %v4601, 4
        %v4603 = vrot.slane %v4298, 5
        %v4604 = vsel %vm1367, %v4602, %v4603
        %v4605 = vrot.slane %v4539, 5
        %v4606 = vrot.slane %v4605, 4
        %v4607 = vrot.slane %v4299, 5
        %v4608 = vsel %vm1367, %v4606, %v4607
        %v4609 = vrot.slane %v4540, 5
        %v4610 = vrot.slane %v4609, 4
        %v4611 = vrot.slane %v4300, 5
        %v4612 = vsel %vm1367, %v4610, %v4611
        %v4613 = vrot.slane %v4541, 5
        %v4614 = vrot.slane %v4613, 4
        %v4615 = vrot.slane %v4301, 5
        %v4616 = vsel %vm1367, %v4614, %v4615
        %v4617 = vrot.slane %v4542, 5
        %v4618 = vrot.slane %v4617, 4
        %v4619 = vrot.slane %v4302, 5
        %v4620 = vsel %vm1367, %v4618, %v4619
        %v4621 = vrot.slane %v4543, 5
        %v4622 = vrot.slane %v4621, 4
        %v4623 = vrot.slane %v4303, 5
        %v4624 = vsel %vm1367, %v4622, %v4623
        %v4625 = vrot.slane %v4544, 5
        %v4626 = vrot.slane %v4625, 4
        %v4627 = vrot.slane %v4304, 5
        %v4628 = vsel %vm1367, %v4626, %v4627
        %v4629 = vrot.slane %v4545, 5
        %v4630 = vrot.slane %v4629, 4
        %v4631 = vrot.slane %v4305, 5
        %v4632 = vsel %vm1367, %v4630, %v4631
        %v4633 = vrot.slane %v4546, 5
        %v4634 = vrot.slane %v4633, 4
        %v4635 = vrot.slane %v4306, 5
        %v4636 = vsel %vm1367, %v4634, %v4635
        %v4637 = vrot.slane %v4547, 5
        %v4638 = vrot.slane %v4637, 4
        %v4639 = vrot.slane %v4307, 5
        %v4640 = vsel %vm1367, %v4638, %v4639
        %v4641 = vrot.slane %v4548, 5
        %v4642 = vrot.slane %v4641, 4
        %v4643 = vrot.slane %v4308, 5
        %v4644 = vsel %vm1367, %v4642, %v4643
        %v4645 = vld [vmem:[%s1800] sm:$0xf]
        %v4646 = vld [vmem:[%s1800 + $0x8] sm:$0xf]
        %v4647 = vld [vmem:[%s1800 + $0x10] sm:$0xf]
        %v4648 = vld [vmem:[%s1800 + $0x18] sm:$0xf]
        %v4649 = vld [vmem:[%s1800 + $0x20] sm:$0xf]
        %v4650 = vld [vmem:[%s1800 + $0x28] sm:$0xf]
        %v4651 = vld [vmem:[%s1800 + $0x30] sm:$0xf]
        %v4652 = vld [vmem:[%s1800 + $0x38] sm:$0xf]
        %v4653 = vld [vmem:[%s1800 + $0x50] sm:$0xf]
        %v4654 = vld [vmem:[%s1800 + $0x58] sm:$0xf]
        %v4655 = vld [vmem:[%s1800 + $0x60] sm:$0xf]
        %v4656 = vld [vmem:[%s1800 + $0x68] sm:$0xf]
        %v4657 = vld [vmem:[%s1800 + $0x70] sm:$0xf]
        %v4658 = vld [vmem:[%s1800 + $0x78] sm:$0xf]
        %v4659 = vld [vmem:[%s1800 + $0x80] sm:$0xf]
        %v4660 = vld [vmem:[%s1800 + $0x88] sm:$0xf]
        %v4661 = vld [vmem:[%s1800 + $0x4] sm:$0x1]
        %v4662 = vld [vmem:[%s1800 + $0xc] sm:$0x1]
        %v4663 = vld [vmem:[%s1800 + $0x14] sm:$0x1]
        %v4664 = vld [vmem:[%s1800 + $0x1c] sm:$0x1]
        %v4665 = vld [vmem:[%s1800 + $0x24] sm:$0x1]
        %v4666 = vld [vmem:[%s1800 + $0x2c] sm:$0x1]
        %v4667 = vld [vmem:[%s1800 + $0x34] sm:$0x1]
        %v4668 = vld [vmem:[%s1800 + $0x3c] sm:$0x1]
        %v4669 = vld [vmem:[%s1800 + $0x54] sm:$0x1]
        %v4670 = vld [vmem:[%s1800 + $0x5c] sm:$0x1]
        %v4671 = vld [vmem:[%s1800 + $0x64] sm:$0x1]
        %v4672 = vld [vmem:[%s1800 + $0x6c] sm:$0x1]
        %v4673 = vld [vmem:[%s1800 + $0x74] sm:$0x1]
        %v4674 = vld [vmem:[%s1800 + $0x7c] sm:$0x1]
        %v4675 = vld [vmem:[%s1800 + $0x84] sm:$0x1]
        %v4676 = vld [vmem:[%s1800 + $0x8c] sm:$0x1]
        %v4678 = vshrl.u32 %v4645, 16
        %v4680 = vrot.slane %v4678, 4
        %v4681 = vshll.u32 %v4645, 16
        %v4683 = vrot.slane %v4681, 5
        %v4684 = vor.u32 %v4680, %v4683
        %v4685 = vrot.slane %v4684, 4
        %v4687 = vshll.u32 %v4661, 16
        %v4689 = vrot.slane %v4687, 5
        %v4690 = vsel %vm1092, %v4685, %v4689
        %v4692 = vshrl.u32 %v4646, 16
        %v4694 = vrot.slane %v4692, 4
        %v4695 = vshll.u32 %v4646, 16
        %v4697 = vrot.slane %v4695, 5
        %v4698 = vor.u32 %v4694, %v4697
        %v4699 = vrot.slane %v4698, 4
        %v4701 = vshll.u32 %v4662, 16
        %v4703 = vrot.slane %v4701, 5
        %v4704 = vsel %vm1092, %v4699, %v4703
        %v4706 = vshrl.u32 %v4647, 16
        %v4708 = vrot.slane %v4706, 4
        %v4709 = vshll.u32 %v4647, 16
        %v4711 = vrot.slane %v4709, 5
        %v4712 = vor.u32 %v4708, %v4711
        %v4713 = vrot.slane %v4712, 4
        %v4715 = vshll.u32 %v4663, 16
        %v4717 = vrot.slane %v4715, 5
        %v4718 = vsel %vm1092, %v4713, %v4717
        %v4720 = vshrl.u32 %v4648, 16
        %v4722 = vrot.slane %v4720, 4
        %v4723 = vshll.u32 %v4648, 16
        %v4725 = vrot.slane %v4723, 5
        %v4726 = vor.u32 %v4722, %v4725
        %v4727 = vrot.slane %v4726, 4
        %v4729 = vshll.u32 %v4664, 16
        %v4731 = vrot.slane %v4729, 5
        %v4732 = vsel %vm1092, %v4727, %v4731
        %v4734 = vshrl.u32 %v4649, 16
        %v4736 = vrot.slane %v4734, 4
        %v4737 = vshll.u32 %v4649, 16
        %v4739 = vrot.slane %v4737, 5
        %v4740 = vor.u32 %v4736, %v4739
        %v4741 = vrot.slane %v4740, 4
        %v4743 = vshll.u32 %v4665, 16
        %v4745 = vrot.slane %v4743, 5
        %v4746 = vsel %vm1092, %v4741, %v4745
        %v4748 = vshrl.u32 %v4650, 16
        %v4750 = vrot.slane %v4748, 4
        %v4751 = vshll.u32 %v4650, 16
        %v4753 = vrot.slane %v4751, 5
        %v4754 = vor.u32 %v4750, %v4753
        %v4755 = vrot.slane %v4754, 4
        %v4757 = vshll.u32 %v4666, 16
        %v4759 = vrot.slane %v4757, 5
        %v4760 = vsel %vm1092, %v4755, %v4759
        %v4762 = vshrl.u32 %v4651, 16
        %v4764 = vrot.slane %v4762, 4
        %v4765 = vshll.u32 %v4651, 16
        %v4767 = vrot.slane %v4765, 5
        %v4768 = vor.u32 %v4764, %v4767
        %v4769 = vrot.slane %v4768, 4
        %v4771 = vshll.u32 %v4667, 16
        %v4773 = vrot.slane %v4771, 5
        %v4774 = vsel %vm1092, %v4769, %v4773
        %v4776 = vshrl.u32 %v4652, 16
        %v4778 = vrot.slane %v4776, 4
        %v4779 = vshll.u32 %v4652, 16
        %v4781 = vrot.slane %v4779, 5
        %v4782 = vor.u32 %v4778, %v4781
        %v4783 = vrot.slane %v4782, 4
        %v4785 = vshll.u32 %v4668, 16
        %v4787 = vrot.slane %v4785, 5
        %v4788 = vsel %vm1092, %v4783, %v4787
        %v4790 = vshrl.u32 %v4653, 16
        %v4792 = vrot.slane %v4790, 4
        %v4793 = vshll.u32 %v4653, 16
        %v4795 = vrot.slane %v4793, 5
        %v4796 = vor.u32 %v4792, %v4795
        %v4797 = vrot.slane %v4796, 4
        %v4799 = vshll.u32 %v4669, 16
        %v4801 = vrot.slane %v4799, 5
        %v4802 = vsel %vm1092, %v4797, %v4801
        %v4804 = vshrl.u32 %v4654, 16
        %v4806 = vrot.slane %v4804, 4
        %v4807 = vshll.u32 %v4654, 16
        %v4809 = vrot.slane %v4807, 5
        %v4810 = vor.u32 %v4806, %v4809
        %v4811 = vrot.slane %v4810, 4
        %v4813 = vshll.u32 %v4670, 16
        %v4815 = vrot.slane %v4813, 5
        %v4816 = vsel %vm1092, %v4811, %v4815
        %v4818 = vshrl.u32 %v4655, 16
        %v4820 = vrot.slane %v4818, 4
        %v4821 = vshll.u32 %v4655, 16
        %v4823 = vrot.slane %v4821, 5
        %v4824 = vor.u32 %v4820, %v4823
        %v4825 = vrot.slane %v4824, 4
        %v4827 = vshll.u32 %v4671, 16
        %v4829 = vrot.slane %v4827, 5
        %v4830 = vsel %vm1092, %v4825, %v4829
        %v4832 = vshrl.u32 %v4656, 16
        %v4834 = vrot.slane %v4832, 4
        %v4835 = vshll.u32 %v4656, 16
        %v4837 = vrot.slane %v4835, 5
        %v4838 = vor.u32 %v4834, %v4837
        %v4839 = vrot.slane %v4838, 4
        %v4841 = vshll.u32 %v4672, 16
        %v4843 = vrot.slane %v4841, 5
        %v4844 = vsel %vm1092, %v4839, %v4843
        %v4846 = vshrl.u32 %v4657, 16
        %v4848 = vrot.slane %v4846, 4
        %v4849 = vshll.u32 %v4657, 16
        %v4851 = vrot.slane %v4849, 5
        %v4852 = vor.u32 %v4848, %v4851
        %v4853 = vrot.slane %v4852, 4
        %v4855 = vshll.u32 %v4673, 16
        %v4857 = vrot.slane %v4855, 5
        %v4858 = vsel %vm1092, %v4853, %v4857
        %v4860 = vshrl.u32 %v4658, 16
        %v4862 = vrot.slane %v4860, 4
        %v4863 = vshll.u32 %v4658, 16
        %v4865 = vrot.slane %v4863, 5
        %v4866 = vor.u32 %v4862, %v4865
        %v4867 = vrot.slane %v4866, 4
        %v4869 = vshll.u32 %v4674, 16
        %v4871 = vrot.slane %v4869, 5
        %v4872 = vsel %vm1092, %v4867, %v4871
        %v4874 = vshrl.u32 %v4659, 16
        %v4876 = vrot.slane %v4874, 4
        %v4877 = vshll.u32 %v4659, 16
        %v4879 = vrot.slane %v4877, 5
        %v4880 = vor.u32 %v4876, %v4879
        %v4881 = vrot.slane %v4880, 4
        %v4883 = vshll.u32 %v4675, 16
        %v4885 = vrot.slane %v4883, 5
        %v4886 = vsel %vm1092, %v4881, %v4885
        %v4888 = vshrl.u32 %v4660, 16
        %v4890 = vrot.slane %v4888, 4
        %v4891 = vshll.u32 %v4660, 16
        %v4893 = vrot.slane %v4891, 5
        %v4894 = vor.u32 %v4890, %v4893
        %v4895 = vrot.slane %v4894, 4
        %v4897 = vshll.u32 %v4676, 16
        %v4899 = vrot.slane %v4897, 5
        %v4900 = vsel %vm1092, %v4895, %v4899
        %v4901 = vld [vmem:[%s1800] sm:$0xe]
        %v4902 = vld [vmem:[%s1800 + $0x8] sm:$0xe]
        %v4903 = vld [vmem:[%s1800 + $0x10] sm:$0xe]
        %v4904 = vld [vmem:[%s1800 + $0x18] sm:$0xe]
        %v4905 = vld [vmem:[%s1800 + $0x20] sm:$0xe]
        %v4906 = vld [vmem:[%s1800 + $0x28] sm:$0xe]
        %v4907 = vld [vmem:[%s1800 + $0x30] sm:$0xe]
        %v4908 = vld [vmem:[%s1800 + $0x38] sm:$0xe]
        %v4909 = vld [vmem:[%s1800 + $0x50] sm:$0xe]
        %v4910 = vld [vmem:[%s1800 + $0x58] sm:$0xe]
        %v4911 = vld [vmem:[%s1800 + $0x60] sm:$0xe]
        %v4912 = vld [vmem:[%s1800 + $0x68] sm:$0xe]
        %v4913 = vld [vmem:[%s1800 + $0x70] sm:$0xe]
        %v4914 = vld [vmem:[%s1800 + $0x78] sm:$0xe]
        %v4915 = vld [vmem:[%s1800 + $0x80] sm:$0xe]
        %v4916 = vld [vmem:[%s1800 + $0x88] sm:$0xe]
        %v4949 = vrot.slane %v4901, 5
        %v4950 = vrot.slane %v4949, 4
        %v4951 = vrot.slane %v4661, 5
        %v4952 = vsel %vm1367, %v4950, %v4951
        %v4953 = vrot.slane %v4902, 5
        %v4954 = vrot.slane %v4953, 4
        %v4955 = vrot.slane %v4662, 5
        %v4956 = vsel %vm1367, %v4954, %v4955
        %v4957 = vrot.slane %v4903, 5
        %v4958 = vrot.slane %v4957, 4
        %v4959 = vrot.slane %v4663, 5
        %v4960 = vsel %vm1367, %v4958, %v4959
        %v4961 = vrot.slane %v4904, 5
        %v4962 = vrot.slane %v4961, 4
        %v4963 = vrot.slane %v4664, 5
        %v4964 = vsel %vm1367, %v4962, %v4963
        %v4965 = vrot.slane %v4905, 5
        %v4966 = vrot.slane %v4965, 4
        %v4967 = vrot.slane %v4665, 5
        %v4968 = vsel %vm1367, %v4966, %v4967
        %v4969 = vrot.slane %v4906, 5
        %v4970 = vrot.slane %v4969, 4
        %v4971 = vrot.slane %v4666, 5
        %v4972 = vsel %vm1367, %v4970, %v4971
        %v4973 = vrot.slane %v4907, 5
        %v4974 = vrot.slane %v4973, 4
        %v4975 = vrot.slane %v4667, 5
        %v4976 = vsel %vm1367, %v4974, %v4975
        %v4977 = vrot.slane %v4908, 5
        %v4978 = vrot.slane %v4977, 4
        %v4979 = vrot.slane %v4668, 5
        %v4980 = vsel %vm1367, %v4978, %v4979
        %v4981 = vrot.slane %v4909, 5
        %v4982 = vrot.slane %v4981, 4
        %v4983 = vrot.slane %v4669, 5
        %v4984 = vsel %vm1367, %v4982, %v4983
        %v4985 = vrot.slane %v4910, 5
        %v4986 = vrot.slane %v4985, 4
        %v4987 = vrot.slane %v4670, 5
        %v4988 = vsel %vm1367, %v4986, %v4987
        %v4989 = vrot.slane %v4911, 5
        %v4990 = vrot.slane %v4989, 4
        %v4991 = vrot.slane %v4671, 5
        %v4992 = vsel %vm1367, %v4990, %v4991
        %v4993 = vrot.slane %v4912, 5
        %v4994 = vrot.slane %v4993, 4
        %v4995 = vrot.slane %v4672, 5
        %v4996 = vsel %vm1367, %v4994, %v4995
        %v4997 = vrot.slane %v4913, 5
        %v4998 = vrot.slane %v4997, 4
        %v4999 = vrot.slane %v4673, 5
        %v5000 = vsel %vm1367, %v4998, %v4999
        %v5001 = vrot.slane %v4914, 5
        %v5002 = vrot.slane %v5001, 4
        %v5003 = vrot.slane %v4674, 5
        %v5004 = vsel %vm1367, %v5002, %v5003
        %v5005 = vrot.slane %v4915, 5
        %v5006 = vrot.slane %v5005, 4
        %v5007 = vrot.slane %v4675, 5
        %v5008 = vsel %vm1367, %v5006, %v5007
        %v5009 = vrot.slane %v4916, 5
        %v5010 = vrot.slane %v5009, 4
        %v5011 = vrot.slane %v4676, 5
        %v5012 = vsel %vm1367, %v5010, %v5011
        %v5029 = vunpack.c.l.b16 %v3909
        %v5030 = vunpack.c.l.b16 %v3910
        %v5031 = vunpack.c.l.b16 %v3911
        %v5032 = vunpack.c.l.b16 %v3912
        %v5033 = vunpack.c.l.b16 %v3913
        %v5034 = vunpack.c.l.b16 %v3914
        %v5035 = vunpack.c.l.b16 %v3915
        %v5036 = vunpack.c.l.b16 %v3916
        %v5037 = vunpack.c.l.b16 %v3917
        %v5038 = vunpack.c.l.b16 %v3918
        %v5039 = vunpack.c.l.b16 %v3919
        %v5040 = vunpack.c.l.b16 %v3920
        %v5041 = vunpack.c.l.b16 %v3921
        %v5042 = vunpack.c.l.b16 %v3922
        %v5043 = vunpack.c.l.b16 %v3923
        %v5044 = vunpack.c.l.b16 %v3924
        %v5045 = vpack.c.b16 %v5030, %v5029
        %v5046 = vpack.c.b16 %v5032, %v5031
        %v5047 = vpack.c.b16 %v5034, %v5033
        %v5048 = vpack.c.b16 %v5036, %v5035
        %v5049 = vpack.c.b16 %v5038, %v5037
        %v5050 = vpack.c.b16 %v5040, %v5039
        %v5051 = vpack.c.b16 %v5042, %v5041
        %v5052 = vpack.c.b16 %v5044, %v5043
        %v5053 = vunpack.c.l.b16 %v3954
        %v5054 = vunpack.c.l.b16 %v3968
        %v5055 = vunpack.c.l.b16 %v3982
        %v5056 = vunpack.c.l.b16 %v3996
        %v5057 = vunpack.c.l.b16 %v4010
        %v5058 = vunpack.c.l.b16 %v4024
        %v5059 = vunpack.c.l.b16 %v4038
        %v5060 = vunpack.c.l.b16 %v4052
        %v5061 = vunpack.c.l.b16 %v4066
        %v5062 = vunpack.c.l.b16 %v4080
        %v5063 = vunpack.c.l.b16 %v4094
        %v5064 = vunpack.c.l.b16 %v4108
        %v5065 = vunpack.c.l.b16 %v4122
        %v5066 = vunpack.c.l.b16 %v4136
        %v5067 = vunpack.c.l.b16 %v4150
        %v5068 = vunpack.c.l.b16 %v4164
        %v5069 = vpack.c.b16 %v5054, %v5053
        %v5070 = vpack.c.b16 %v5056, %v5055
        %v5071 = vpack.c.b16 %v5058, %v5057
        %v5072 = vpack.c.b16 %v5060, %v5059
        %v5073 = vpack.c.b16 %v5062, %v5061
        %v5074 = vpack.c.b16 %v5064, %v5063
        %v5075 = vpack.c.b16 %v5066, %v5065
        %v5076 = vpack.c.b16 %v5068, %v5067
        %5077 = vrot.lane.b32.xlu0 %v5069, 32
        %v5078 = vpop.permute.xlu0 %5077
        %5079 = vrot.lane.b32.xlu0 %v5070, 32
        %v5080 = vpop.permute.xlu0 %5079
        %5081 = vrot.lane.b32.xlu0 %v5071, 32
        %v5082 = vpop.permute.xlu0 %5081
        %5083 = vrot.lane.b32.xlu0 %v5072, 32
        %v5084 = vpop.permute.xlu0 %5083
        %5085 = vrot.lane.b32.xlu0 %v5073, 32
        %v5086 = vpop.permute.xlu0 %5085
        %5087 = vrot.lane.b32.xlu0 %v5074, 32
        %v5088 = vpop.permute.xlu0 %5087
        %5089 = vrot.lane.b32.xlu0 %v5075, 32
        %v5090 = vpop.permute.xlu0 %5089
        %5091 = vrot.lane.b32.xlu0 %v5076, 32
        %v5092 = vpop.permute.xlu0 %5091
        %v5093 = vunpack.c.l.b16 %v4216
        %v5094 = vunpack.c.l.b16 %v4220
        %v5095 = vunpack.c.l.b16 %v4224
        %v5096 = vunpack.c.l.b16 %v4228
        %v5097 = vunpack.c.l.b16 %v4232
        %v5098 = vunpack.c.l.b16 %v4236
        %v5099 = vunpack.c.l.b16 %v4240
        %v5100 = vunpack.c.l.b16 %v4244
        %v5101 = vunpack.c.l.b16 %v4248
        %v5102 = vunpack.c.l.b16 %v4252
        %v5103 = vunpack.c.l.b16 %v4256
        %v5104 = vunpack.c.l.b16 %v4260
        %v5105 = vunpack.c.l.b16 %v4264
        %v5106 = vunpack.c.l.b16 %v4268
        %v5107 = vunpack.c.l.b16 %v4272
        %v5108 = vunpack.c.l.b16 %v4276
        %v5109 = vpack.c.b16 %v5094, %v5093
        %v5110 = vpack.c.b16 %v5096, %v5095
        %v5111 = vpack.c.b16 %v5098, %v5097
        %v5112 = vpack.c.b16 %v5100, %v5099
        %v5113 = vpack.c.b16 %v5102, %v5101
        %v5114 = vpack.c.b16 %v5104, %v5103
        %v5115 = vpack.c.b16 %v5106, %v5105
        %v5116 = vpack.c.b16 %v5108, %v5107
        %5117 = vrot.lane.b32.xlu0 %v5109, 64
        %v5118 = vpop.permute.xlu0 %5117
        %5119 = vrot.lane.b32.xlu0 %v5110, 64
        %v5120 = vpop.permute.xlu0 %5119
        %5121 = vrot.lane.b32.xlu0 %v5111, 64
        %v5122 = vpop.permute.xlu0 %5121
        %5123 = vrot.lane.b32.xlu0 %v5112, 64
        %v5124 = vpop.permute.xlu0 %5123
        %5125 = vrot.lane.b32.xlu0 %v5113, 64
        %v5126 = vpop.permute.xlu0 %5125
        %5127 = vrot.lane.b32.xlu0 %v5114, 64
        %v5128 = vpop.permute.xlu0 %5127
        %5129 = vrot.lane.b32.xlu0 %v5115, 64
        %v5130 = vpop.permute.xlu0 %5129
        %5131 = vrot.lane.b32.xlu0 %v5116, 64
        %v5132 = vpop.permute.xlu0 %5131
        %v5149 = vunpack.c.l.b16 %v4277
        %v5150 = vunpack.c.l.b16 %v4278
        %v5151 = vunpack.c.l.b16 %v4279
        %v5152 = vunpack.c.l.b16 %v4280
        %v5153 = vunpack.c.l.b16 %v4281
        %v5154 = vunpack.c.l.b16 %v4282
        %v5155 = vunpack.c.l.b16 %v4283
        %v5156 = vunpack.c.l.b16 %v4284
        %v5157 = vunpack.c.l.b16 %v4285
        %v5158 = vunpack.c.l.b16 %v4286
        %v5159 = vunpack.c.l.b16 %v4287
        %v5160 = vunpack.c.l.b16 %v4288
        %v5161 = vunpack.c.l.b16 %v4289
        %v5162 = vunpack.c.l.b16 %v4290
        %v5163 = vunpack.c.l.b16 %v4291
        %v5164 = vunpack.c.l.b16 %v4292
        %v5165 = vpack.c.b16 %v5150, %v5149
        %v5166 = vpack.c.b16 %v5152, %v5151
        %v5167 = vpack.c.b16 %v5154, %v5153
        %v5168 = vpack.c.b16 %v5156, %v5155
        %v5169 = vpack.c.b16 %v5158, %v5157
        %v5170 = vpack.c.b16 %v5160, %v5159
        %v5171 = vpack.c.b16 %v5162, %v5161
        %v5172 = vpack.c.b16 %v5164, %v5163
        %5173 = vrot.lane.b32.xlu0 %v5165, 96
        %v5174 = vpop.permute.xlu0 %5173
        %5175 = vrot.lane.b32.xlu0 %v5166, 96
        %v5176 = vpop.permute.xlu0 %5175
        %5177 = vrot.lane.b32.xlu0 %v5167, 96
        %v5178 = vpop.permute.xlu0 %5177
        %5179 = vrot.lane.b32.xlu0 %v5168, 96
        %v5180 = vpop.permute.xlu0 %5179
        %5181 = vrot.lane.b32.xlu0 %v5169, 96
        %v5182 = vpop.permute.xlu0 %5181
        %5183 = vrot.lane.b32.xlu0 %v5170, 96
        %v5184 = vpop.permute.xlu0 %5183
        %5185 = vrot.lane.b32.xlu0 %v5171, 96
        %v5186 = vpop.permute.xlu0 %5185
        %5187 = vrot.lane.b32.xlu0 %v5172, 96
        %v5188 = vpop.permute.xlu0 %5187
        %v5189 = vunpack.c.l.b16 %v4322
        %v5190 = vunpack.c.l.b16 %v4336
        %v5191 = vunpack.c.l.b16 %v4350
        %v5192 = vunpack.c.l.b16 %v4364
        %v5193 = vunpack.c.l.b16 %v4378
        %v5194 = vunpack.c.l.b16 %v4392
        %v5195 = vunpack.c.l.b16 %v4406
        %v5196 = vunpack.c.l.b16 %v4420
        %v5197 = vunpack.c.l.b16 %v4434
        %v5198 = vunpack.c.l.b16 %v4448
        %v5199 = vunpack.c.l.b16 %v4462
        %v5200 = vunpack.c.l.b16 %v4476
        %v5201 = vunpack.c.l.b16 %v4490
        %v5202 = vunpack.c.l.b16 %v4504
        %v5203 = vunpack.c.l.b16 %v4518
        %v5204 = vunpack.c.l.b16 %v4532
        %v5205 = vpack.c.b16 %v5190, %v5189
        %v5206 = vpack.c.b16 %v5192, %v5191
        %v5207 = vpack.c.b16 %v5194, %v5193
        %v5208 = vpack.c.b16 %v5196, %v5195
        %v5209 = vpack.c.b16 %v5198, %v5197
        %v5210 = vpack.c.b16 %v5200, %v5199
        %v5211 = vpack.c.b16 %v5202, %v5201
        %v5212 = vpack.c.b16 %v5204, %v5203
        %v5213 = vunpack.c.l.b16 %v4584
        %v5214 = vunpack.c.l.b16 %v4588
        %v5215 = vunpack.c.l.b16 %v4592
        %v5216 = vunpack.c.l.b16 %v4596
        %v5217 = vunpack.c.l.b16 %v4600
        %v5218 = vunpack.c.l.b16 %v4604
        %v5219 = vunpack.c.l.b16 %v4608
        %v5220 = vunpack.c.l.b16 %v4612
        %v5221 = vunpack.c.l.b16 %v4616
        %v5222 = vunpack.c.l.b16 %v4620
        %v5223 = vunpack.c.l.b16 %v4624
        %v5224 = vunpack.c.l.b16 %v4628
        %v5225 = vunpack.c.l.b16 %v4632
        %v5226 = vunpack.c.l.b16 %v4636
        %v5227 = vunpack.c.l.b16 %v4640
        %v5228 = vunpack.c.l.b16 %v4644
        %v5229 = vpack.c.b16 %v5214, %v5213
        %v5230 = vpack.c.b16 %v5216, %v5215
        %v5231 = vpack.c.b16 %v5218, %v5217
        %v5232 = vpack.c.b16 %v5220, %v5219
        %v5233 = vpack.c.b16 %v5222, %v5221
        %v5234 = vpack.c.b16 %v5224, %v5223
        %v5235 = vpack.c.b16 %v5226, %v5225
        %v5236 = vpack.c.b16 %v5228, %v5227
        %5237 = vrot.lane.b32.xlu0 %v5229, 32
        %v5238 = vpop.permute.xlu0 %5237
        %5239 = vrot.lane.b32.xlu0 %v5230, 32
        %v5240 = vpop.permute.xlu0 %5239
        %5241 = vrot.lane.b32.xlu0 %v5231, 32
        %v5242 = vpop.permute.xlu0 %5241
        %5243 = vrot.lane.b32.xlu0 %v5232, 32
        %v5244 = vpop.permute.xlu0 %5243
        %5245 = vrot.lane.b32.xlu0 %v5233, 32
        %v5246 = vpop.permute.xlu0 %5245
        %5247 = vrot.lane.b32.xlu0 %v5234, 32
        %v5248 = vpop.permute.xlu0 %5247
        %5249 = vrot.lane.b32.xlu0 %v5235, 32
        %v5250 = vpop.permute.xlu0 %5249
        %5251 = vrot.lane.b32.xlu0 %v5236, 32
        %v5252 = vpop.permute.xlu0 %5251
        %v5269 = vunpack.c.l.b16 %v4645
        %v5270 = vunpack.c.l.b16 %v4646
        %v5271 = vunpack.c.l.b16 %v4647
        %v5272 = vunpack.c.l.b16 %v4648
        %v5273 = vunpack.c.l.b16 %v4649
        %v5274 = vunpack.c.l.b16 %v4650
        %v5275 = vunpack.c.l.b16 %v4651
        %v5276 = vunpack.c.l.b16 %v4652
        %v5277 = vunpack.c.l.b16 %v4653
        %v5278 = vunpack.c.l.b16 %v4654
        %v5279 = vunpack.c.l.b16 %v4655
        %v5280 = vunpack.c.l.b16 %v4656
        %v5281 = vunpack.c.l.b16 %v4657
        %v5282 = vunpack.c.l.b16 %v4658
        %v5283 = vunpack.c.l.b16 %v4659
        %v5284 = vunpack.c.l.b16 %v4660
        %v5285 = vpack.c.b16 %v5270, %v5269
        %v5286 = vpack.c.b16 %v5272, %v5271
        %v5287 = vpack.c.b16 %v5274, %v5273
        %v5288 = vpack.c.b16 %v5276, %v5275
        %v5289 = vpack.c.b16 %v5278, %v5277
        %v5290 = vpack.c.b16 %v5280, %v5279
        %v5291 = vpack.c.b16 %v5282, %v5281
        %v5292 = vpack.c.b16 %v5284, %v5283
        %5293 = vrot.lane.b32.xlu0 %v5285, 64
        %v5294 = vpop.permute.xlu0 %5293
        %5295 = vrot.lane.b32.xlu0 %v5286, 64
        %v5296 = vpop.permute.xlu0 %5295
        %5297 = vrot.lane.b32.xlu0 %v5287, 64
        %v5298 = vpop.permute.xlu0 %5297
        %5299 = vrot.lane.b32.xlu0 %v5288, 64
        %v5300 = vpop.permute.xlu0 %5299
        %5301 = vrot.lane.b32.xlu0 %v5289, 64
        %v5302 = vpop.permute.xlu0 %5301
        %5303 = vrot.lane.b32.xlu0 %v5290, 64
        %v5304 = vpop.permute.xlu0 %5303
        %5305 = vrot.lane.b32.xlu0 %v5291, 64
        %v5306 = vpop.permute.xlu0 %5305
        %5307 = vrot.lane.b32.xlu0 %v5292, 64
        %v5308 = vpop.permute.xlu0 %5307
        %v5309 = vunpack.c.l.b16 %v4690
        %v5310 = vunpack.c.l.b16 %v4704
        %v5311 = vunpack.c.l.b16 %v4718
        %v5312 = vunpack.c.l.b16 %v4732
        %v5313 = vunpack.c.l.b16 %v4746
        %v5314 = vunpack.c.l.b16 %v4760
        %v5315 = vunpack.c.l.b16 %v4774
        %v5316 = vunpack.c.l.b16 %v4788
        %v5317 = vunpack.c.l.b16 %v4802
        %v5318 = vunpack.c.l.b16 %v4816
        %v5319 = vunpack.c.l.b16 %v4830
        %v5320 = vunpack.c.l.b16 %v4844
        %v5321 = vunpack.c.l.b16 %v4858
        %v5322 = vunpack.c.l.b16 %v4872
        %v5323 = vunpack.c.l.b16 %v4886
        %v5324 = vunpack.c.l.b16 %v4900
        %v5325 = vpack.c.b16 %v5310, %v5309
        %v5326 = vpack.c.b16 %v5312, %v5311
        %v5327 = vpack.c.b16 %v5314, %v5313
        %v5328 = vpack.c.b16 %v5316, %v5315
        %v5329 = vpack.c.b16 %v5318, %v5317
        %v5330 = vpack.c.b16 %v5320, %v5319
        %v5331 = vpack.c.b16 %v5322, %v5321
        %v5332 = vpack.c.b16 %v5324, %v5323
        %5333 = vrot.lane.b32.xlu0 %v5325, 96
        %v5334 = vpop.permute.xlu0 %5333
        %5335 = vrot.lane.b32.xlu0 %v5326, 96
        %v5336 = vpop.permute.xlu0 %5335
        %5337 = vrot.lane.b32.xlu0 %v5327, 96
        %v5338 = vpop.permute.xlu0 %5337
        %5339 = vrot.lane.b32.xlu0 %v5328, 96
        %v5340 = vpop.permute.xlu0 %5339
        %5341 = vrot.lane.b32.xlu0 %v5329, 96
        %v5342 = vpop.permute.xlu0 %5341
        %5343 = vrot.lane.b32.xlu0 %v5330, 96
        %v5344 = vpop.permute.xlu0 %5343
        %5345 = vrot.lane.b32.xlu0 %v5331, 96
        %v5346 = vpop.permute.xlu0 %5345
        %5347 = vrot.lane.b32.xlu0 %v5332, 96
        %v5348 = vpop.permute.xlu0 %5347
        %v5349 = vunpack.c.l.b16 %v4952
        %v5350 = vunpack.c.l.b16 %v4956
        %v5351 = vunpack.c.l.b16 %v4960
        %v5352 = vunpack.c.l.b16 %v4964
        %v5353 = vunpack.c.l.b16 %v4968
        %v5354 = vunpack.c.l.b16 %v4972
        %v5355 = vunpack.c.l.b16 %v4976
        %v5356 = vunpack.c.l.b16 %v4980
        %v5357 = vunpack.c.l.b16 %v4984
        %v5358 = vunpack.c.l.b16 %v4988
        %v5359 = vunpack.c.l.b16 %v4992
        %v5360 = vunpack.c.l.b16 %v4996
        %v5361 = vunpack.c.l.b16 %v5000
        %v5362 = vunpack.c.l.b16 %v5004
        %v5363 = vunpack.c.l.b16 %v5008
        %v5364 = vunpack.c.l.b16 %v5012
        %v5365 = vpack.c.b16 %v5350, %v5349
        %v5366 = vpack.c.b16 %v5352, %v5351
        %v5367 = vpack.c.b16 %v5354, %v5353
        %v5368 = vpack.c.b16 %v5356, %v5355
        %v5369 = vpack.c.b16 %v5358, %v5357
        %v5370 = vpack.c.b16 %v5360, %v5359
        %v5371 = vpack.c.b16 %v5362, %v5361
        %v5372 = vpack.c.b16 %v5364, %v5363
        %v5375 = vsel %vm2529, %v5045, %v5078
        %v5378 = vsel %vm2529, %v5046, %v5080
        %v5381 = vsel %vm2529, %v5047, %v5082
        %v5384 = vsel %vm2529, %v5048, %v5084
        %v5387 = vsel %vm2529, %v5049, %v5086
        %v5390 = vsel %vm2529, %v5050, %v5088
        %v5393 = vsel %vm2529, %v5051, %v5090
        %v5396 = vsel %vm2529, %v5052, %v5092
        %v5398 = vsel %vm2554, %v5375, %v5118
        %v5400 = vsel %vm2554, %v5378, %v5120
        %v5402 = vsel %vm2554, %v5381, %v5122
        %v5404 = vsel %vm2554, %v5384, %v5124
        %v5406 = vsel %vm2554, %v5387, %v5126
        %v5408 = vsel %vm2554, %v5390, %v5128
        %v5410 = vsel %vm2554, %v5393, %v5130
        %v5412 = vsel %vm2554, %v5396, %v5132
        %v5414 = vsel %vm2571, %v5398, %v5174
        %v5417 = vsel %vm2571, %v5400, %v5176
        %v5420 = vsel %vm2571, %v5402, %v5178
        %v5423 = vsel %vm2571, %v5404, %v5180
        %v5426 = vsel %vm2571, %v5406, %v5182
        %v5429 = vsel %vm2571, %v5408, %v5184
        %v5432 = vsel %vm2571, %v5410, %v5186
        %v5435 = vsel %vm2571, %v5412, %v5188
        %v5439 = vsel %vm2529, %v5205, %v5238
        %v5442 = vsel %vm2529, %v5206, %v5240
        %v5445 = vsel %vm2529, %v5207, %v5242
        %v5448 = vsel %vm2529, %v5208, %v5244
        %v5451 = vsel %vm2529, %v5209, %v5246
        %v5454 = vsel %vm2529, %v5210, %v5248
        %v5457 = vsel %vm2529, %v5211, %v5250
        %v5460 = vsel %vm2529, %v5212, %v5252
        %v5462 = vsel %vm2554, %v5439, %v5294
        %v5464 = vsel %vm2554, %v5442, %v5296
        %v5466 = vsel %vm2554, %v5445, %v5298
        %v5468 = vsel %vm2554, %v5448, %v5300
        %v5470 = vsel %vm2554, %v5451, %v5302
        %v5472 = vsel %vm2554, %v5454, %v5304
        %v5474 = vsel %vm2554, %v5457, %v5306
        %v5476 = vsel %vm2554, %v5460, %v5308
        %v5478 = vsel %vm2571, %v5462, %v5334
        %v5481 = vsel %vm2571, %v5464, %v5336
        %v5484 = vsel %vm2571, %v5466, %v5338
        %v5487 = vsel %vm2571, %v5468, %v5340
        %v5490 = vsel %vm2571, %v5470, %v5342
        %v5493 = vsel %vm2571, %v5472, %v5344
        %v5496 = vsel %vm2571, %v5474, %v5346
        %v5499 = vsel %vm2571, %v5476, %v5348
        %v5503 = vsel %vm2529, %v5365, %v3606
        %v5507 = vsel %vm2529, %v5366, %v3607
        %v5511 = vsel %vm2529, %v5367, %v3608
        %v5515 = vsel %vm2529, %v5368, %v3609
        %v5519 = vsel %vm2529, %v5369, %v3610
        %v5523 = vsel %vm2529, %v5370, %v3611
        %v5527 = vsel %vm2529, %v5371, %v3612
        %v5531 = vsel %vm2529, %v5372, %v3613
        %s5533 = scalar_lea.vmem %s4, 384
        %v5534 = vld [vmem:[%s5533] sm:$0xff]
        %v5535 = vld [vmem:[%s5533 + $0x8] sm:$0xff]
        %v5536 = vld [vmem:[%s5533 + $0x10] sm:$0xff]
        %v5537 = vld [vmem:[%s5533 + $0x18] sm:$0xff]
        %v5538 = vld [vmem:[%s5533 + $0x20] sm:$0xff]
        %v5539 = vld [vmem:[%s5533 + $0x28] sm:$0xff]
        %v5540 = vld [vmem:[%s5533 + $0x30] sm:$0xff]
        %v5541 = vld [vmem:[%s5533 + $0x38] sm:$0xff]
        %v5542 = vld [vmem:[%s5533 + $0x40] sm:$0xff]
        %v5543 = vld [vmem:[%s5533 + $0x48] sm:$0xff]
        %v5544 = vld [vmem:[%s5533 + $0x50] sm:$0xff]
        %v5545 = vld [vmem:[%s5533 + $0x58] sm:$0xff]
        %v5546 = vld [vmem:[%s5533 + $0x60] sm:$0xff]
        %v5547 = vld [vmem:[%s5533 + $0x68] sm:$0xff]
        %v5548 = vld [vmem:[%s5533 + $0x70] sm:$0xff]
        %v5549 = vld [vmem:[%s5533 + $0x78] sm:$0xff]
        %v5550 = vld [vmem:[%s5533 + $0x80] sm:$0xff]
        %v5551 = vld [vmem:[%s5533 + $0x88] sm:$0xff]
        %v5552 = vld [vmem:[%s5533 + $0x90] sm:$0xff]
        %v5553 = vld [vmem:[%s5533 + $0x98] sm:$0xff]
        %v5554 = vld [vmem:[%s5533 + $0xa0] sm:$0xff]
        %v5555 = vld [vmem:[%s5533 + $0xa8] sm:$0xff]
        %v5556 = vld [vmem:[%s5533 + $0xb0] sm:$0xff]
        %v5557 = vld [vmem:[%s5533 + $0xb8] sm:$0xff]
        %v5558 = vld [vmem:[%s5533 + $0xc0] sm:$0xff]
        %v5559 = vld [vmem:[%s5533 + $0xc8] sm:$0xff]
        %v5560 = vld [vmem:[%s5533 + $0xd0] sm:$0xff]
        %v5561 = vld [vmem:[%s5533 + $0xd8] sm:$0xff]
        %v5562 = vld [vmem:[%s5533 + $0xe0] sm:$0xff]
        %v5563 = vld [vmem:[%s5533 + $0xe8] sm:$0xff]
        %v5564 = vld [vmem:[%s5533 + $0xf0] sm:$0xff]
        %v5565 = vld [vmem:[%s5533 + $0xf8] sm:$0xff]
        %v5566 = vld [vmem:[%s5533 + $0x100] sm:$0xff]
        %v5567 = vld [vmem:[%s5533 + $0x108] sm:$0xff]
        %v5568 = vld [vmem:[%s5533 + $0x110] sm:$0xff]
        %v5569 = vld [vmem:[%s5533 + $0x118] sm:$0xff]
        %v5570 = vld [vmem:[%s5533 + $0x120] sm:$0xff]
        %v5571 = vld [vmem:[%s5533 + $0x128] sm:$0xff]
        %v5572 = vld [vmem:[%s5533 + $0x130] sm:$0xff]
        %v5573 = vld [vmem:[%s5533 + $0x138] sm:$0xff]
        %v5574 = vld [vmem:[%s5533 + $0x140] sm:$0xff]
        %v5575 = vld [vmem:[%s5533 + $0x148] sm:$0xff]
        %v5576 = vld [vmem:[%s5533 + $0x150] sm:$0xff]
        %v5577 = vld [vmem:[%s5533 + $0x158] sm:$0xff]
        %v5578 = vld [vmem:[%s5533 + $0x160] sm:$0xff]
        %v5579 = vld [vmem:[%s5533 + $0x168] sm:$0xff]
        %v5580 = vld [vmem:[%s5533 + $0x170] sm:$0xff]
        %v5581 = vld [vmem:[%s5533 + $0x178] sm:$0xff]
        %v5630 = vunpack.c.l.b16 %v5534
        %v5631 = vunpack.c.h.b16 %v5534
        %v5632 = vunpack.c.l.b16 %v5535
        %v5633 = vunpack.c.h.b16 %v5535
        %v5634 = vunpack.c.l.b16 %v5536
        %v5635 = vunpack.c.h.b16 %v5536
        %v5636 = vunpack.c.l.b16 %v5537
        %v5637 = vunpack.c.h.b16 %v5537
        %v5638 = vunpack.c.l.b16 %v5538
        %v5639 = vunpack.c.h.b16 %v5538
        %v5640 = vunpack.c.l.b16 %v5539
        %v5641 = vunpack.c.h.b16 %v5539
        %v5642 = vunpack.c.l.b16 %v5540
        %v5643 = vunpack.c.h.b16 %v5540
        %v5644 = vunpack.c.l.b16 %v5541
        %v5645 = vunpack.c.h.b16 %v5541
        %v5646 = vunpack.c.l.b16 %v5542
        %v5647 = vunpack.c.h.b16 %v5542
        %v5648 = vunpack.c.l.b16 %v5543
        %v5649 = vunpack.c.h.b16 %v5543
        %v5650 = vunpack.c.l.b16 %v5544
        %v5651 = vunpack.c.h.b16 %v5544
        %v5652 = vunpack.c.l.b16 %v5545
        %v5653 = vunpack.c.h.b16 %v5545
        %v5654 = vunpack.c.l.b16 %v5546
        %v5655 = vunpack.c.h.b16 %v5546
        %v5656 = vunpack.c.l.b16 %v5547
        %v5657 = vunpack.c.h.b16 %v5547
        %v5658 = vunpack.c.l.b16 %v5548
        %v5659 = vunpack.c.h.b16 %v5548
        %v5660 = vunpack.c.l.b16 %v5549
        %v5661 = vunpack.c.h.b16 %v5549
        %v5662 = vunpack.c.l.b16 %v5550
        %v5663 = vunpack.c.h.b16 %v5550
        %v5664 = vunpack.c.l.b16 %v5551
        %v5665 = vunpack.c.h.b16 %v5551
        %v5666 = vunpack.c.l.b16 %v5552
        %v5667 = vunpack.c.h.b16 %v5552
        %v5668 = vunpack.c.l.b16 %v5553
        %v5669 = vunpack.c.h.b16 %v5553
        %v5670 = vunpack.c.l.b16 %v5554
        %v5671 = vunpack.c.h.b16 %v5554
        %v5672 = vunpack.c.l.b16 %v5555
        %v5673 = vunpack.c.h.b16 %v5555
        %v5674 = vunpack.c.l.b16 %v5556
        %v5675 = vunpack.c.h.b16 %v5556
        %v5676 = vunpack.c.l.b16 %v5557
        %v5677 = vunpack.c.h.b16 %v5557
        %v5678 = vunpack.c.l.b16 %v5558
        %v5679 = vunpack.c.h.b16 %v5558
        %v5680 = vunpack.c.l.b16 %v5559
        %v5681 = vunpack.c.h.b16 %v5559
        %v5682 = vunpack.c.l.b16 %v5560
        %v5683 = vunpack.c.h.b16 %v5560
        %v5684 = vunpack.c.l.b16 %v5561
        %v5685 = vunpack.c.h.b16 %v5561
        %v5686 = vunpack.c.l.b16 %v5562
        %v5687 = vunpack.c.h.b16 %v5562
        %v5688 = vunpack.c.l.b16 %v5563
        %v5689 = vunpack.c.h.b16 %v5563
        %v5690 = vunpack.c.l.b16 %v5564
        %v5691 = vunpack.c.h.b16 %v5564
        %v5692 = vunpack.c.l.b16 %v5565
        %v5693 = vunpack.c.h.b16 %v5565
        %v5694 = vunpack.c.l.b16 %v5566
        %v5695 = vunpack.c.h.b16 %v5566
        %v5696 = vunpack.c.l.b16 %v5567
        %v5697 = vunpack.c.h.b16 %v5567
        %v5698 = vunpack.c.l.b16 %v5568
        %v5699 = vunpack.c.h.b16 %v5568
        %v5700 = vunpack.c.l.b16 %v5569
        %v5701 = vunpack.c.h.b16 %v5569
        %v5702 = vunpack.c.l.b16 %v5570
        %v5703 = vunpack.c.h.b16 %v5570
        %v5704 = vunpack.c.l.b16 %v5571
        %v5705 = vunpack.c.h.b16 %v5571
        %v5706 = vunpack.c.l.b16 %v5572
        %v5707 = vunpack.c.h.b16 %v5572
        %v5708 = vunpack.c.l.b16 %v5573
        %v5709 = vunpack.c.h.b16 %v5573
        %v5710 = vunpack.c.l.b16 %v5574
        %v5711 = vunpack.c.h.b16 %v5574
        %v5712 = vunpack.c.l.b16 %v5575
        %v5713 = vunpack.c.h.b16 %v5575
        %v5714 = vunpack.c.l.b16 %v5576
        %v5715 = vunpack.c.h.b16 %v5576
        %v5716 = vunpack.c.l.b16 %v5577
        %v5717 = vunpack.c.h.b16 %v5577
        %v5718 = vunpack.c.l.b16 %v5578
        %v5719 = vunpack.c.h.b16 %v5578
        %v5720 = vunpack.c.l.b16 %v5579
        %v5721 = vunpack.c.h.b16 %v5579
        %v5722 = vunpack.c.l.b16 %v5580
        %v5723 = vunpack.c.h.b16 %v5580
        %v5724 = vunpack.c.l.b16 %v5581
        %v5725 = vunpack.c.h.b16 %v5581
        %v5726 = vpack.c.b16 %v5632, %v5630
        %v5727 = vpack.c.b16 %v5633, %v5631
        %v5728 = vpack.c.b16 %v5636, %v5634
        %v5729 = vpack.c.b16 %v5637, %v5635
        %v5730 = vpack.c.b16 %v5640, %v5638
        %v5731 = vpack.c.b16 %v5641, %v5639
        %v5732 = vpack.c.b16 %v5644, %v5642
        %v5733 = vpack.c.b16 %v5645, %v5643
        %v5734 = vpack.c.b16 %v5648, %v5646
        %v5735 = vpack.c.b16 %v5649, %v5647
        %v5736 = vpack.c.b16 %v5652, %v5650
        %v5737 = vpack.c.b16 %v5653, %v5651
        %v5738 = vpack.c.b16 %v5656, %v5654
        %v5739 = vpack.c.b16 %v5657, %v5655
        %v5740 = vpack.c.b16 %v5660, %v5658
        %v5741 = vpack.c.b16 %v5661, %v5659
        %v5742 = vpack.c.b16 %v5664, %v5662
        %v5743 = vpack.c.b16 %v5665, %v5663
        %v5744 = vpack.c.b16 %v5668, %v5666
        %v5745 = vpack.c.b16 %v5669, %v5667
        %v5746 = vpack.c.b16 %v5672, %v5670
        %v5747 = vpack.c.b16 %v5673, %v5671
        %v5748 = vpack.c.b16 %v5676, %v5674
        %v5749 = vpack.c.b16 %v5677, %v5675
        %v5750 = vpack.c.b16 %v5680, %v5678
        %v5751 = vpack.c.b16 %v5681, %v5679
        %v5752 = vpack.c.b16 %v5684, %v5682
        %v5753 = vpack.c.b16 %v5685, %v5683
        %v5754 = vpack.c.b16 %v5688, %v5686
        %v5755 = vpack.c.b16 %v5689, %v5687
        %v5756 = vpack.c.b16 %v5692, %v5690
        %v5757 = vpack.c.b16 %v5693, %v5691
        %v5758 = vpack.c.b16 %v5696, %v5694
        %v5759 = vpack.c.b16 %v5697, %v5695
        %v5760 = vpack.c.b16 %v5700, %v5698
        %v5761 = vpack.c.b16 %v5701, %v5699
        %v5762 = vpack.c.b16 %v5704, %v5702
        %v5763 = vpack.c.b16 %v5705, %v5703
        %v5764 = vpack.c.b16 %v5708, %v5706
        %v5765 = vpack.c.b16 %v5709, %v5707
        %v5766 = vpack.c.b16 %v5712, %v5710
        %v5767 = vpack.c.b16 %v5713, %v5711
        %v5768 = vpack.c.b16 %v5716, %v5714
        %v5769 = vpack.c.b16 %v5717, %v5715
        %v5770 = vpack.c.b16 %v5720, %v5718
        %v5771 = vpack.c.b16 %v5721, %v5719
        %v5772 = vpack.c.b16 %v5724, %v5722
        %v5773 = vpack.c.b16 %v5725, %v5723
        %5822 = vmatprep.subr.bf16.mxu0 %v5727
        %5823 = vmatpush1.bf16.msra.mxu0 %v5726
        %5824 = vmatprep.subr.bf16.mxu0 %v5729
        %5825 = vmatpush1.bf16.msra.mxu0 %v5728
        %5826 = vmatprep.subr.bf16.mxu0 %v5731
        %5827 = vmatpush1.bf16.msra.mxu0 %v5730
        %5828 = vmatprep.subr.bf16.mxu0 %v5733
        %5829 = vmatpush1.bf16.msra.mxu0 %v5732
        %5830 = vmatprep.subr.bf16.mxu0 %v5735
        %5831 = vmatpush1.bf16.msra.mxu0 %v5734
        %5832 = vmatprep.subr.bf16.mxu0 %v5737
        %5833 = vmatpush1.bf16.msra.mxu0 %v5736
        %5834 = vmatprep.subr.bf16.mxu0 %v5739
        %5835 = vmatpush1.bf16.msra.mxu0 %v5738
        %5836 = vmatprep.subr.bf16.mxu0 %v5741
        %5837 = vmatpush1.bf16.msra.mxu0 %v5740
        %5838 = vmatprep.subr.bf16.mxu0 %v5743
        %5839 = vmatpush1.bf16.msra.mxu0 %v5742
        %5840 = vmatprep.subr.bf16.mxu0 %v5745
        %5841 = vmatpush1.bf16.msra.mxu0 %v5744
        %5842 = vmatprep.subr.bf16.mxu0 %v5747
        %5843 = vmatpush1.bf16.msra.mxu0 %v5746
        %5844 = vmatprep.subr.bf16.mxu0 %v5749
        %5845 = vmatpush1.bf16.msra.mxu0 %v5748
        %5846 = vmatprep.subr.bf16.mxu0 %v5751
        %5847 = vmatpush1.bf16.msra.mxu0 %v5750
        %5848 = vmatprep.subr.bf16.mxu0 %v5753
        %5849 = vmatpush1.bf16.msra.mxu0 %v5752
        %5850 = vmatprep.subr.bf16.mxu0 %v5755
        %5851 = vmatpush1.bf16.msra.mxu0 %v5754
        %5852 = vmatprep.subr.bf16.mxu0 %v5757
        %5853 = vmatpush1.bf16.msra.mxu0 %v5756
        %5854 = vmatprep.mubr.bf16.mxu0 %v5478
        %5855 = vmatmul.mubr.bf16.gmra.mrb[0].mxu0 %v5414
        %v5856 = vpop.f32.mrb[0].mxu0
        %v5857 = vadd.f32 0.0, %v5856
        %v5858 = vpop.f32.mrb[0].mxu0
        %v5859 = vadd.f32 0.0, %v5858
        %v5860 = vpop.f32.mrb[0].mxu0
        %v5861 = vadd.f32 0.0, %v5860
        %v5862 = vpop.f32.mrb[0].mxu0
        %v5863 = vadd.f32 0.0, %v5862
        %5864 = vmatprep.mubr.bf16.mxu0 %v5481
        %5865 = vmatmul.mubr.bf16.gmra.mrb[0].mxu0 %v5417
        %v5866 = vpop.f32.mrb[0].mxu0
        %v5867 = vadd.f32 0.0, %v5866
        %v5868 = vpop.f32.mrb[0].mxu0
        %v5869 = vadd.f32 0.0, %v5868
        %v5870 = vpop.f32.mrb[0].mxu0
        %v5871 = vadd.f32 0.0, %v5870
        %v5872 = vpop.f32.mrb[0].mxu0
        %v5873 = vadd.f32 0.0, %v5872
        %5874 = vmatprep.mubr.bf16.mxu0 %v5484
        %5875 = vmatmul.mubr.bf16.gmra.mrb[0].mxu0 %v5420
        %v5876 = vpop.f32.mrb[0].mxu0
        %v5877 = vadd.f32 0.0, %v5876
        %v5878 = vpop.f32.mrb[0].mxu0
        %v5879 = vadd.f32 0.0, %v5878
        %v5880 = vpop.f32.mrb[0].mxu0
        %v5881 = vadd.f32 0.0, %v5880
        %v5882 = vpop.f32.mrb[0].mxu0
        %v5883 = vadd.f32 0.0, %v5882
        %5884 = vmatprep.mubr.bf16.mxu0 %v5487
        %5885 = vmatmul.mubr.bf16.gmra.mrb[0].mxu0 %v5423
        %v5886 = vpop.f32.mrb[0].mxu0
        %v5887 = vadd.f32 0.0, %v5886
        %v5888 = vpop.f32.mrb[0].mxu0
        %v5889 = vadd.f32 0.0, %v5888
        %v5890 = vpop.f32.mrb[0].mxu0
        %v5891 = vadd.f32 0.0, %v5890
        %v5892 = vpop.f32.mrb[0].mxu0
        %v5893 = vadd.f32 0.0, %v5892
        %5894 = vmatprep.mubr.bf16.mxu0 %v5490
        %5895 = vmatmul.mubr.bf16.gmra.mrb[0].mxu0 %v5426
        %v5896 = vpop.f32.mrb[0].mxu0
        %v5897 = vadd.f32 0.0, %v5896
        %v5898 = vpop.f32.mrb[0].mxu0
        %v5899 = vadd.f32 0.0, %v5898
        %v5900 = vpop.f32.mrb[0].mxu0
        %v5901 = vadd.f32 0.0, %v5900
        %v5902 = vpop.f32.mrb[0].mxu0
        %v5903 = vadd.f32 0.0, %v5902
        %5904 = vmatprep.mubr.bf16.mxu0 %v5493
        %5905 = vmatmul.mubr.bf16.gmra.mrb[0].mxu0 %v5429
        %v5906 = vpop.f32.mrb[0].mxu0
        %v5907 = vadd.f32 0.0, %v5906
        %v5908 = vpop.f32.mrb[0].mxu0
        %v5909 = vadd.f32 0.0, %v5908
        %v5910 = vpop.f32.mrb[0].mxu0
        %v5911 = vadd.f32 0.0, %v5910
        %v5912 = vpop.f32.mrb[0].mxu0
        %v5913 = vadd.f32 0.0, %v5912
        %5914 = vmatprep.mubr.bf16.mxu0 %v5496
        %5915 = vmatmul.mubr.bf16.gmra.mrb[0].mxu0 %v5432
        %v5916 = vpop.f32.mrb[0].mxu0
        %v5917 = vadd.f32 0.0, %v5916
        %v5918 = vpop.f32.mrb[0].mxu0
        %v5919 = vadd.f32 0.0, %v5918
        %v5920 = vpop.f32.mrb[0].mxu0
        %v5921 = vadd.f32 0.0, %v5920
        %v5922 = vpop.f32.mrb[0].mxu0
        %v5923 = vadd.f32 0.0, %v5922
        %5924 = vmatprep.mubr.bf16.mxu0 %v5499
        %5925 = vmatmul.mubr.bf16.gmra.mrb[0].mxu0 %v5435
        %v5926 = vpop.f32.mrb[0].mxu0
        %v5927 = vadd.f32 0.0, %v5926
        %v5928 = vpop.f32.mrb[0].mxu0
        %v5929 = vadd.f32 0.0, %v5928
        %v5930 = vpop.f32.mrb[0].mxu0
        %v5931 = vadd.f32 0.0, %v5930
        %v5932 = vpop.f32.mrb[0].mxu0
        %v5933 = vadd.f32 0.0, %v5932
        %5934 = vdwg.mxu0
        %5935 = vmatprep.subr.bf16.mxu0 %v5759
        %5936 = vmatpush1.bf16.msra.mxu0 %v5758
        %5937 = vmatprep.subr.bf16.mxu0 %v5761
        %5938 = vmatpush1.bf16.msra.mxu0 %v5760
        %5939 = vmatprep.subr.bf16.mxu0 %v5763
        %5940 = vmatpush1.bf16.msra.mxu0 %v5762
        %5941 = vmatprep.subr.bf16.mxu0 %v5765
        %5942 = vmatpush1.bf16.msra.mxu0 %v5764
        %5943 = vmatprep.subr.bf16.mxu0 %v5767
        %5944 = vmatpush1.bf16.msra.mxu0 %v5766
        %5945 = vmatprep.subr.bf16.mxu0 %v5769
        %5946 = vmatpush1.bf16.msra.mxu0 %v5768
        %5947 = vmatprep.subr.bf16.mxu0 %v5771
        %5948 = vmatpush1.bf16.msra.mxu0 %v5770
        %5949 = vmatprep.subr.bf16.mxu0 %v5773
        %5950 = vmatpush1.bf16.msra.mxu0 %v5772
        %5951 = vmatprep.subr.bf16.mxu0 0
        %5952 = vmatpush1.bf16.msra.mxu0 0
        %5953 = vmatprep.subr.bf16.mxu0 0
        %5954 = vmatpush1.bf16.msra.mxu0 0
        %5955 = vmatprep.subr.bf16.mxu0 0
        %5956 = vmatpush1.bf16.msra.mxu0 0
        %5957 = vmatprep.subr.bf16.mxu0 0
        %5958 = vmatpush1.bf16.msra.mxu0 0
        %5959 = vmatprep.subr.bf16.mxu0 0
        %5960 = vmatpush1.bf16.msra.mxu0 0
        %5961 = vmatprep.subr.bf16.mxu0 0
        %5962 = vmatpush1.bf16.msra.mxu0 0
        %5963 = vmatprep.subr.bf16.mxu0 0
        %5964 = vmatpush1.bf16.msra.mxu0 0
        %5965 = vmatprep.subr.bf16.mxu0 0
        %5966 = vmatpush1.bf16.msra.mxu0 0
        %5967 = vmatprep.mubr.bf16.mxu0 0
        %5968 = vmatmul.mubr.bf16.gmra.mrb[0].mxu0 %v5503
        %v5969 = vpop.f32.mrb[0].mxu0
        %v5970 = vadd.f32 %v5857, %v5969
        %v5971 = vpop.f32.mrb[0].mxu0
        %v5972 = vadd.f32 %v5859, %v5971
        %v5973 = vpop.f32.mrb[0].mxu0
        %v5974 = vadd.f32 %v5861, %v5973
        %v5975 = vpop.f32.mrb[0].mxu0
        %v5976 = vadd.f32 %v5863, %v5975
        %5977 = vmatprep.mubr.bf16.mxu0 0
        %5978 = vmatmul.mubr.bf16.gmra.mrb[0].mxu0 %v5507
        %v5979 = vpop.f32.mrb[0].mxu0
        %v5980 = vadd.f32 %v5867, %v5979
        %v5981 = vpop.f32.mrb[0].mxu0
        %v5982 = vadd.f32 %v5869, %v5981
        %v5983 = vpop.f32.mrb[0].mxu0
        %v5984 = vadd.f32 %v5871, %v5983
        %v5985 = vpop.f32.mrb[0].mxu0
        %v5986 = vadd.f32 %v5873, %v5985
        %5987 = vmatprep.mubr.bf16.mxu0 0
        %5988 = vmatmul.mubr.bf16.gmra.mrb[0].mxu0 %v5511
        %v5989 = vpop.f32.mrb[0].mxu0
        %v5990 = vadd.f32 %v5877, %v5989
        %v5991 = vpop.f32.mrb[0].mxu0
        %v5992 = vadd.f32 %v5879, %v5991
        %v5993 = vpop.f32.mrb[0].mxu0
        %v5994 = vadd.f32 %v5881, %v5993
        %v5995 = vpop.f32.mrb[0].mxu0
        %v5996 = vadd.f32 %v5883, %v5995
        %5997 = vmatprep.mubr.bf16.mxu0 0
        %5998 = vmatmul.mubr.bf16.gmra.mrb[0].mxu0 %v5515
        %v5999 = vpop.f32.mrb[0].mxu0
        %v6000 = vadd.f32 %v5887, %v5999
        %v6001 = vpop.f32.mrb[0].mxu0
        %v6002 = vadd.f32 %v5889, %v6001
        %v6003 = vpop.f32.mrb[0].mxu0
        %v6004 = vadd.f32 %v5891, %v6003
        %v6005 = vpop.f32.mrb[0].mxu0
        %v6006 = vadd.f32 %v5893, %v6005
        %6007 = vmatprep.mubr.bf16.mxu0 0
        %6008 = vmatmul.mubr.bf16.gmra.mrb[0].mxu0 %v5519
        %v6009 = vpop.f32.mrb[0].mxu0
        %v6010 = vadd.f32 %v5897, %v6009
        %v6011 = vpop.f32.mrb[0].mxu0
        %v6012 = vadd.f32 %v5899, %v6011
        %v6013 = vpop.f32.mrb[0].mxu0
        %v6014 = vadd.f32 %v5901, %v6013
        %v6015 = vpop.f32.mrb[0].mxu0
        %v6016 = vadd.f32 %v5903, %v6015
        %6017 = vmatprep.mubr.bf16.mxu0 0
        %6018 = vmatmul.mubr.bf16.gmra.mrb[0].mxu0 %v5523
        %v6019 = vpop.f32.mrb[0].mxu0
        %v6020 = vadd.f32 %v5907, %v6019
        %v6021 = vpop.f32.mrb[0].mxu0
        %v6022 = vadd.f32 %v5909, %v6021
        %v6023 = vpop.f32.mrb[0].mxu0
        %v6024 = vadd.f32 %v5911, %v6023
        %v6025 = vpop.f32.mrb[0].mxu0
        %v6026 = vadd.f32 %v5913, %v6025
        %6027 = vmatprep.mubr.bf16.mxu0 0
        %6028 = vmatmul.mubr.bf16.gmra.mrb[0].mxu0 %v5527
        %v6029 = vpop.f32.mrb[0].mxu0
        %v6030 = vadd.f32 %v5917, %v6029
        %v6031 = vpop.f32.mrb[0].mxu0
        %v6032 = vadd.f32 %v5919, %v6031
        %v6033 = vpop.f32.mrb[0].mxu0
        %v6034 = vadd.f32 %v5921, %v6033
        %v6035 = vpop.f32.mrb[0].mxu0
        %v6036 = vadd.f32 %v5923, %v6035
        %6037 = vmatprep.mubr.bf16.mxu0 0
        %6038 = vmatmul.mubr.bf16.gmra.mrb[0].mxu0 %v5531
        %v6039 = vpop.f32.mrb[0].mxu0
        %v6040 = vadd.f32 %v5927, %v6039
        %v6041 = vpop.f32.mrb[0].mxu0
        %v6042 = vadd.f32 %v5929, %v6041
        %v6043 = vpop.f32.mrb[0].mxu0
        %v6044 = vadd.f32 %v5931, %v6043
        %v6045 = vpop.f32.mrb[0].mxu0
        %v6046 = vadd.f32 %v5933, %v6045
        %6047 = vdwg.mxu0
        %s6048 = scalar_lea.vmem %s5, 2
        %v6049 = vld [vmem:[%s6048] sm:$0x3]
        %v6051 = vlaneseq
        %v6052 = vshrl.u32 %v6051, 7
        %v6053 = vsub.s32 0, %v6052
        %v6054 = vrot.slane %v6049, %v6053
        %v6055 = vlaneseq
        %v6056 = vshrl.u32 %v6055, 7
        %v6057 = vsub.s32 1, %v6056
        %v6058 = vrot.slane %v6049, %v6057
        %v6061 = vmul.f32 %v5970, %v6054
        %v6062 = vmul.f32 %v5972, %v6058
        %v6063 = vmul.f32 %v5974, %v6054
        %v6064 = vmul.f32 %v5976, %v6058
        %v6065 = vmul.f32 %v5980, %v6054
        %v6066 = vmul.f32 %v5982, %v6058
        %v6067 = vmul.f32 %v5984, %v6054
        %v6068 = vmul.f32 %v5986, %v6058
        %v6069 = vmul.f32 %v5990, %v6054
        %v6070 = vmul.f32 %v5992, %v6058
        %v6071 = vmul.f32 %v5994, %v6054
        %v6072 = vmul.f32 %v5996, %v6058
        %v6073 = vmul.f32 %v6000, %v6054
        %v6074 = vmul.f32 %v6002, %v6058
        %v6075 = vmul.f32 %v6004, %v6054
        %v6076 = vmul.f32 %v6006, %v6058
        %v6077 = vmul.f32 %v6010, %v6054
        %v6078 = vmul.f32 %v6012, %v6058
        %v6079 = vmul.f32 %v6014, %v6054
        %v6080 = vmul.f32 %v6016, %v6058
        %v6081 = vmul.f32 %v6020, %v6054
        %v6082 = vmul.f32 %v6022, %v6058
        %v6083 = vmul.f32 %v6024, %v6054
        %v6084 = vmul.f32 %v6026, %v6058
        %v6085 = vmul.f32 %v6030, %v6054
        %v6086 = vmul.f32 %v6032, %v6058
        %v6087 = vmul.f32 %v6034, %v6054
        %v6088 = vmul.f32 %v6036, %v6058
        %v6089 = vmul.f32 %v6040, %v6054
        %v6090 = vmul.f32 %v6042, %v6058
        %v6091 = vmul.f32 %v6044, %v6054
        %v6092 = vmul.f32 %v6046, %v6058
        %s6093 = scalar_lea.vmem %s6, 2
        %v6094 = vld [vmem:[%s6093] sm:$0x3]
        %v6096 = vlaneseq
        %v6097 = vshrl.u32 %v6096, 7
        %v6098 = vsub.s32 0, %v6097
        %v6099 = vrot.slane %v6094, %v6098
        %v6100 = vlaneseq
        %v6101 = vshrl.u32 %v6100, 7
        %v6102 = vsub.s32 1, %v6101
        %v6103 = vrot.slane %v6094, %v6102
        %v6106 = vadd.f32 %v6061, %v6099
        %v6107 = vadd.f32 %v6062, %v6103
        %v6108 = vadd.f32 %v6063, %v6099
        %v6109 = vadd.f32 %v6064, %v6103
        %v6110 = vadd.f32 %v6065, %v6099
        %v6111 = vadd.f32 %v6066, %v6103
        %v6112 = vadd.f32 %v6067, %v6099
        %v6113 = vadd.f32 %v6068, %v6103
        %v6114 = vadd.f32 %v6069, %v6099
        %v6115 = vadd.f32 %v6070, %v6103
        %v6116 = vadd.f32 %v6071, %v6099
        %v6117 = vadd.f32 %v6072, %v6103
        %v6118 = vadd.f32 %v6073, %v6099
        %v6119 = vadd.f32 %v6074, %v6103
        %v6120 = vadd.f32 %v6075, %v6099
        %v6121 = vadd.f32 %v6076, %v6103
        %v6122 = vadd.f32 %v6077, %v6099
        %v6123 = vadd.f32 %v6078, %v6103
        %v6124 = vadd.f32 %v6079, %v6099
        %v6125 = vadd.f32 %v6080, %v6103
        %v6126 = vadd.f32 %v6081, %v6099
        %v6127 = vadd.f32 %v6082, %v6103
        %v6128 = vadd.f32 %v6083, %v6099
        %v6129 = vadd.f32 %v6084, %v6103
        %v6130 = vadd.f32 %v6085, %v6099
        %v6131 = vadd.f32 %v6086, %v6103
        %v6132 = vadd.f32 %v6087, %v6099
        %v6133 = vadd.f32 %v6088, %v6103
        %v6134 = vadd.f32 %v6089, %v6099
        %v6135 = vadd.f32 %v6090, %v6103
        %v6136 = vadd.f32 %v6091, %v6099
        %v6137 = vadd.f32 %v6092, %v6103
        %v6138 = vmax.f32 %v6106, 0.0
        %v6139 = vmax.f32 %v6107, 0.0
        %v6140 = vmax.f32 %v6108, 0.0
        %v6141 = vmax.f32 %v6109, 0.0
        %v6142 = vmax.f32 %v6110, 0.0
        %v6143 = vmax.f32 %v6111, 0.0
        %v6144 = vmax.f32 %v6112, 0.0
        %v6145 = vmax.f32 %v6113, 0.0
        %v6146 = vmax.f32 %v6114, 0.0
        %v6147 = vmax.f32 %v6115, 0.0
        %v6148 = vmax.f32 %v6116, 0.0
        %v6149 = vmax.f32 %v6117, 0.0
        %v6150 = vmax.f32 %v6118, 0.0
        %v6151 = vmax.f32 %v6119, 0.0
        %v6152 = vmax.f32 %v6120, 0.0
        %v6153 = vmax.f32 %v6121, 0.0
        %v6154 = vmax.f32 %v6122, 0.0
        %v6155 = vmax.f32 %v6123, 0.0
        %v6156 = vmax.f32 %v6124, 0.0
        %v6157 = vmax.f32 %v6125, 0.0
        %v6158 = vmax.f32 %v6126, 0.0
        %v6159 = vmax.f32 %v6127, 0.0
        %v6160 = vmax.f32 %v6128, 0.0
        %v6161 = vmax.f32 %v6129, 0.0
        %v6162 = vmax.f32 %v6130, 0.0
        %v6163 = vmax.f32 %v6131, 0.0
        %v6164 = vmax.f32 %v6132, 0.0
        %v6165 = vmax.f32 %v6133, 0.0
        %v6166 = vmax.f32 %v6134, 0.0
        %v6167 = vmax.f32 %v6135, 0.0
        %v6168 = vmax.f32 %v6136, 0.0
        %v6169 = vmax.f32 %v6137, 0.0
        %v6170 = vpack.c.bf16 %v6140, %v6138
        %v6171 = vpack.c.bf16 %v6141, %v6139
        %v6172 = vpack.c.bf16 %v6144, %v6142
        %v6173 = vpack.c.bf16 %v6145, %v6143
        %v6174 = vpack.c.bf16 %v6148, %v6146
        %v6175 = vpack.c.bf16 %v6149, %v6147
        %v6176 = vpack.c.bf16 %v6152, %v6150
        %v6177 = vpack.c.bf16 %v6153, %v6151
        %v6178 = vpack.c.bf16 %v6156, %v6154
        %v6179 = vpack.c.bf16 %v6157, %v6155
        %v6180 = vpack.c.bf16 %v6160, %v6158
        %v6181 = vpack.c.bf16 %v6161, %v6159
        %v6182 = vpack.c.bf16 %v6164, %v6162
        %v6183 = vpack.c.bf16 %v6165, %v6163
        %v6184 = vpack.c.bf16 %v6168, %v6166
        %v6185 = vpack.c.bf16 %v6169, %v6167
        %s6186 = scalar_lea.vmem %s7, 128
        %v6187 = vld [vmem:[%s6186] sm:$0xf]
        %v6188 = vld [vmem:[%s6186 + $0x4] sm:$0xf]
        %v6189 = vld [vmem:[%s6186 + $0x8] sm:$0xf]
        %v6190 = vld [vmem:[%s6186 + $0xc] sm:$0xf]
        %v6191 = vld [vmem:[%s6186 + $0x10] sm:$0xf]
        %v6192 = vld [vmem:[%s6186 + $0x14] sm:$0xf]
        %v6193 = vld [vmem:[%s6186 + $0x18] sm:$0xf]
        %v6194 = vld [vmem:[%s6186 + $0x1c] sm:$0xf]
        %v6195 = vld [vmem:[%s6186 + $0x20] sm:$0xf]
        %v6196 = vld [vmem:[%s6186 + $0x24] sm:$0xf]
        %v6197 = vld [vmem:[%s6186 + $0x28] sm:$0xf]
        %v6198 = vld [vmem:[%s6186 + $0x2c] sm:$0xf]
        %v6199 = vld [vmem:[%s6186 + $0x30] sm:$0xf]
        %v6200 = vld [vmem:[%s6186 + $0x34] sm:$0xf]
        %v6201 = vld [vmem:[%s6186 + $0x38] sm:$0xf]
        %v6202 = vld [vmem:[%s6186 + $0x3c] sm:$0xf]
        %v6203 = vld [vmem:[%s6186 + $0x40] sm:$0xf]
        %v6204 = vld [vmem:[%s6186 + $0x44] sm:$0xf]
        %v6205 = vld [vmem:[%s6186 + $0x48] sm:$0xf]
        %v6206 = vld [vmem:[%s6186 + $0x4c] sm:$0xf]
        %v6207 = vld [vmem:[%s6186 + $0x50] sm:$0xf]
        %v6208 = vld [vmem:[%s6186 + $0x54] sm:$0xf]
        %v6209 = vld [vmem:[%s6186 + $0x58] sm:$0xf]
        %v6210 = vld [vmem:[%s6186 + $0x5c] sm:$0xf]
        %v6211 = vld [vmem:[%s6186 + $0x60] sm:$0xf]
        %v6212 = vld [vmem:[%s6186 + $0x64] sm:$0xf]
        %v6213 = vld [vmem:[%s6186 + $0x68] sm:$0xf]
        %v6214 = vld [vmem:[%s6186 + $0x6c] sm:$0xf]
        %v6215 = vld [vmem:[%s6186 + $0x70] sm:$0xf]
        %v6216 = vld [vmem:[%s6186 + $0x74] sm:$0xf]
        %v6217 = vld [vmem:[%s6186 + $0x78] sm:$0xf]
        %v6218 = vld [vmem:[%s6186 + $0x7c] sm:$0xf]
        %v6251 = vunpack.c.l.b16 %v6187
        %v6252 = vunpack.c.l.b16 %v6188
        %v6253 = vunpack.c.l.b16 %v6189
        %v6254 = vunpack.c.l.b16 %v6190
        %v6255 = vunpack.c.l.b16 %v6191
        %v6256 = vunpack.c.l.b16 %v6192
        %v6257 = vunpack.c.l.b16 %v6193
        %v6258 = vunpack.c.l.b16 %v6194
        %v6259 = vunpack.c.l.b16 %v6195
        %v6260 = vunpack.c.l.b16 %v6196
        %v6261 = vunpack.c.l.b16 %v6197
        %v6262 = vunpack.c.l.b16 %v6198
        %v6263 = vunpack.c.l.b16 %v6199
        %v6264 = vunpack.c.l.b16 %v6200
        %v6265 = vunpack.c.l.b16 %v6201
        %v6266 = vunpack.c.l.b16 %v6202
        %v6267 = vunpack.c.l.b16 %v6203
        %v6268 = vunpack.c.l.b16 %v6204
        %v6269 = vunpack.c.l.b16 %v6205
        %v6270 = vunpack.c.l.b16 %v6206
        %v6271 = vunpack.c.l.b16 %v6207
        %v6272 = vunpack.c.l.b16 %v6208
        %v6273 = vunpack.c.l.b16 %v6209
        %v6274 = vunpack.c.l.b16 %v6210
        %v6275 = vunpack.c.l.b16 %v6211
        %v6276 = vunpack.c.l.b16 %v6212
        %v6277 = vunpack.c.l.b16 %v6213
        %v6278 = vunpack.c.l.b16 %v6214
        %v6279 = vunpack.c.l.b16 %v6215
        %v6280 = vunpack.c.l.b16 %v6216
        %v6281 = vunpack.c.l.b16 %v6217
        %v6282 = vunpack.c.l.b16 %v6218
        %v6283 = vpack.c.b16 %v6252, %v6251
        %v6284 = vpack.c.b16 %v6254, %v6253
        %v6285 = vpack.c.b16 %v6256, %v6255
        %v6286 = vpack.c.b16 %v6258, %v6257
        %v6287 = vpack.c.b16 %v6260, %v6259
        %v6288 = vpack.c.b16 %v6262, %v6261
        %v6289 = vpack.c.b16 %v6264, %v6263
        %v6290 = vpack.c.b16 %v6266, %v6265
        %v6291 = vpack.c.b16 %v6268, %v6267
        %v6292 = vpack.c.b16 %v6270, %v6269
        %v6293 = vpack.c.b16 %v6272, %v6271
        %v6294 = vpack.c.b16 %v6274, %v6273
        %v6295 = vpack.c.b16 %v6276, %v6275
        %v6296 = vpack.c.b16 %v6278, %v6277
        %v6297 = vpack.c.b16 %v6280, %v6279
        %v6298 = vpack.c.b16 %v6282, %v6281
        %6315 = vmatprep.subr.bf16.mxu0 0
        %6316 = vmatpush1.bf16.msra.mxu0 %v6283
        %6317 = vmatprep.subr.bf16.mxu0 0
        %6318 = vmatpush1.bf16.msra.mxu0 %v6284
        %6319 = vmatprep.subr.bf16.mxu0 0
        %6320 = vmatpush1.bf16.msra.mxu0 %v6285
        %6321 = vmatprep.subr.bf16.mxu0 0
        %6322 = vmatpush1.bf16.msra.mxu0 %v6286
        %6323 = vmatprep.subr.bf16.mxu0 0
        %6324 = vmatpush1.bf16.msra.mxu0 %v6287
        %6325 = vmatprep.subr.bf16.mxu0 0
        %6326 = vmatpush1.bf16.msra.mxu0 %v6288
        %6327 = vmatprep.subr.bf16.mxu0 0
        %6328 = vmatpush1.bf16.msra.mxu0 %v6289
        %6329 = vmatprep.subr.bf16.mxu0 0
        %6330 = vmatpush1.bf16.msra.mxu0 %v6290
        %6331 = vmatprep.subr.bf16.mxu0 0
        %6332 = vmatpush1.bf16.msra.mxu0 %v6291
        %6333 = vmatprep.subr.bf16.mxu0 0
        %6334 = vmatpush1.bf16.msra.mxu0 %v6292
        %6335 = vmatprep.subr.bf16.mxu0 0
        %6336 = vmatpush1.bf16.msra.mxu0 %v6293
        %6337 = vmatprep.subr.bf16.mxu0 0
        %6338 = vmatpush1.bf16.msra.mxu0 %v6294
        %6339 = vmatprep.subr.bf16.mxu0 0
        %6340 = vmatpush1.bf16.msra.mxu0 %v6295
        %6341 = vmatprep.subr.bf16.mxu0 0
        %6342 = vmatpush1.bf16.msra.mxu0 %v6296
        %6343 = vmatprep.subr.bf16.mxu0 0
        %6344 = vmatpush1.bf16.msra.mxu0 %v6297
        %6345 = vmatprep.subr.bf16.mxu0 0
        %6346 = vmatpush1.bf16.msra.mxu0 %v6298
        %6347 = vmatprep.mubr.bf16.mxu0 %v6171
        %6348 = vmatmul.mubr.bf16.gmra.mrb[0].mxu0 %v6170
        %v6349 = vpop.f32.mrb[0].mxu0
        %v6350 = vadd.f32 0.0, %v6349
        %v6351 = vpop.f32.mrb[0].mxu0
        %v6352 = vpop.f32.mrb[0].mxu0
        %v6353 = vadd.f32 0.0, %v6352
        %v6354 = vpop.f32.mrb[0].mxu0
        %6355 = vmatprep.mubr.bf16.mxu0 %v6173
        %6356 = vmatmul.mubr.bf16.gmra.mrb[0].mxu0 %v6172
        %v6357 = vpop.f32.mrb[0].mxu0
        %v6358 = vadd.f32 0.0, %v6357
        %v6359 = vpop.f32.mrb[0].mxu0
        %v6360 = vpop.f32.mrb[0].mxu0
        %v6361 = vadd.f32 0.0, %v6360
        %v6362 = vpop.f32.mrb[0].mxu0
        %6363 = vmatprep.mubr.bf16.mxu0 %v6175
        %6364 = vmatmul.mubr.bf16.gmra.mrb[0].mxu0 %v6174
        %v6365 = vpop.f32.mrb[0].mxu0
        %v6366 = vadd.f32 0.0, %v6365
        %v6367 = vpop.f32.mrb[0].mxu0
        %v6368 = vpop.f32.mrb[0].mxu0
        %v6369 = vadd.f32 0.0, %v6368
        %v6370 = vpop.f32.mrb[0].mxu0
        %6371 = vmatprep.mubr.bf16.mxu0 %v6177
        %6372 = vmatmul.mubr.bf16.gmra.mrb[0].mxu0 %v6176
        %v6373 = vpop.f32.mrb[0].mxu0
        %v6374 = vadd.f32 0.0, %v6373
        %v6375 = vpop.f32.mrb[0].mxu0
        %v6376 = vpop.f32.mrb[0].mxu0
        %v6377 = vadd.f32 0.0, %v6376
        %v6378 = vpop.f32.mrb[0].mxu0
        %6379 = vmatprep.mubr.bf16.mxu0 %v6179
        %6380 = vmatmul.mubr.bf16.gmra.mrb[0].mxu0 %v6178
        %v6381 = vpop.f32.mrb[0].mxu0
        %v6382 = vadd.f32 0.0, %v6381
        %v6383 = vpop.f32.mrb[0].mxu0
        %v6384 = vpop.f32.mrb[0].mxu0
        %v6385 = vadd.f32 0.0, %v6384
        %v6386 = vpop.f32.mrb[0].mxu0
        %6387 = vmatprep.mubr.bf16.mxu0 %v6181
        %6388 = vmatmul.mubr.bf16.gmra.mrb[0].mxu0 %v6180
        %v6389 = vpop.f32.mrb[0].mxu0
        %v6390 = vadd.f32 0.0, %v6389
        %v6391 = vpop.f32.mrb[0].mxu0
        %v6392 = vpop.f32.mrb[0].mxu0
        %v6393 = vadd.f32 0.0, %v6392
        %v6394 = vpop.f32.mrb[0].mxu0
        %6395 = vmatprep.mubr.bf16.mxu0 %v6183
        %6396 = vmatmul.mubr.bf16.gmra.mrb[0].mxu0 %v6182
        %v6397 = vpop.f32.mrb[0].mxu0
        %v6398 = vadd.f32 0.0, %v6397
        %v6399 = vpop.f32.mrb[0].mxu0
        %v6400 = vpop.f32.mrb[0].mxu0
        %v6401 = vadd.f32 0.0, %v6400
        %v6402 = vpop.f32.mrb[0].mxu0
        %6403 = vmatprep.mubr.bf16.mxu0 %v6185
        %6404 = vmatmul.mubr.bf16.gmra.mrb[0].mxu0 %v6184
        %v6405 = vpop.f32.mrb[0].mxu0
        %v6406 = vadd.f32 0.0, %v6405
        %v6407 = vpop.f32.mrb[0].mxu0
        %v6408 = vpop.f32.mrb[0].mxu0
        %v6409 = vadd.f32 0.0, %v6408
        %v6410 = vpop.f32.mrb[0].mxu0
        %6411 = vdwg.mxu0
        %s6412 = scalar_lea.vmem %s8, 1
        %v6413 = vld [vmem:[%s6412] sm:$0x1]
        %v6415 = vlaneseq
        %v6416 = vshrl.u32 %v6415, 7
        %v6417 = vsub.s32 0, %v6416
        %v6418 = vrot.slane %v6413, %v6417
        %v6420 = vmul.f32 %v6418, %v6350
        %v6421 = vmul.f32 %v6418, %v6353
        %v6422 = vmul.f32 %v6418, %v6358
        %v6423 = vmul.f32 %v6418, %v6361
        %v6424 = vmul.f32 %v6418, %v6366
        %v6425 = vmul.f32 %v6418, %v6369
        %v6426 = vmul.f32 %v6418, %v6374
        %v6427 = vmul.f32 %v6418, %v6377
        %v6428 = vmul.f32 %v6418, %v6382
        %v6429 = vmul.f32 %v6418, %v6385
        %v6430 = vmul.f32 %v6418, %v6390
        %v6431 = vmul.f32 %v6418, %v6393
        %v6432 = vmul.f32 %v6418, %v6398
        %v6433 = vmul.f32 %v6418, %v6401
        %v6434 = vmul.f32 %v6418, %v6406
        %v6435 = vmul.f32 %v6418, %v6409
        %v6436 = vadd.f32 %v3590, %v6420
        %v6437 = vadd.f32 %v3591, %v6421
        %v6438 = vadd.f32 %v3592, %v6422
        %v6439 = vadd.f32 %v3593, %v6423
        %v6440 = vadd.f32 %v3594, %v6424
        %v6441 = vadd.f32 %v3595, %v6425
        %v6442 = vadd.f32 %v3596, %v6426
        %v6443 = vadd.f32 %v3597, %v6427
        %v6444 = vadd.f32 %v3598, %v6428
        %v6445 = vadd.f32 %v3599, %v6429
        %v6446 = vadd.f32 %v3600, %v6430
        %v6447 = vadd.f32 %v3601, %v6431
        %v6448 = vadd.f32 %v3602, %v6432
        %v6449 = vadd.f32 %v3603, %v6433
        %v6450 = vadd.f32 %v3604, %v6434
        %v6451 = vadd.f32 %v3605, %v6435
        %6452 = vst [vmem:[%s328] sm:$0xff] %v6436
        %6453 = vst [vmem:[%s328 + $0x8] sm:$0xff] %v6437
        %6454 = vst [vmem:[%s328 + $0x10] sm:$0xff] %v6438
        %6455 = vst [vmem:[%s328 + $0x18] sm:$0xff] %v6439
        %6456 = vst [vmem:[%s328 + $0x20] sm:$0xff] %v6440
        %6457 = vst [vmem:[%s328 + $0x28] sm:$0xff] %v6441
        %6458 = vst [vmem:[%s328 + $0x30] sm:$0xff] %v6442
        %6459 = vst [vmem:[%s328 + $0x38] sm:$0xff] %v6443
        %6460 = vst [vmem:[%s328 + $0x40] sm:$0xff] %v6444
        %6461 = vst [vmem:[%s328 + $0x48] sm:$0xff] %v6445
        %6462 = vst [vmem:[%s328 + $0x50] sm:$0xff] %v6446
        %6463 = vst [vmem:[%s328 + $0x58] sm:$0xff] %v6447
        %6464 = vst [vmem:[%s328 + $0x60] sm:$0xff] %v6448
        %6465 = vst [vmem:[%s328 + $0x68] sm:$0xff] %v6449
        %6466 = vst [vmem:[%s328 + $0x70] sm:$0xff] %v6450
        %6467 = vst [vmem:[%s328 + $0x78] sm:$0xff] %v6451
        %s6468 = sand.u32 %s225, 1
        %s6469 = scalar_lea.sflag [#allocation4], %s6468
        %s6470 = sand.u32 %s225, 1
        %s6471 = smul.addr %s6470, 128
        %s6472 = scalar_lea.vmem [#allocation3], %s6471
        // Predicated region
        $region57: #{_lambda_.1} parent=55 // pred_check
          %p6473 = pneg %p235
        $region58: #{_lambda_.1} parent=55 // pred_check_branch
          %6475 = sbr.rel (%p6473) target = $region60
        $region59: #{_lambda_.1} parent=55 // pred_region
          %s6476 = smul.u32 2, %s23
          %s6478 = ssub.s32 2048, 2048
          %6479 = vsyncadd %s6469, %s6478
          %s6480 = smul.addr %s6476, 8
          %s6481 = smul.addr %s6480, 128
          %s6482 = scalar_lea.hbm %s9, %s6481
          %s6483 = sshll.u32 %s6472, 4
          %s6484 = int_to_ptr.vmem [resolvable:$true] %s6483
          %6489 = dma.vmem_to_hbm [thread:$0]  %s6484, 2048, %s6482, %s6469, 128, 128, 8
        $region60: #{_lambda_.1} parent=55 // pred_fallthru
          _
      $region56: #{_lambda_.1} parent=5 // pred_fallthru
        _
      %p6490 = scmp.le.s32.totalorder 2, %s18
      // Predicated region
      $region61: #{_lambda_.1} parent=5 // pred_check
        %p6491 = pneg %p6490
      $region62: #{_lambda_.1} parent=5 // pred_check_branch
        %6493 = sbr.rel (%p6491) target = $region64
      $region63: #{_lambda_.1} parent=5 // pred_region
        %s6494 = ssub.s32 %s18, 2
        // Predicated region
        $region65: #{_lambda_.1} parent=63 // pred_check
          %p6495 = pneg %p241
        $region66: #{_lambda_.1} parent=63 // pred_check_branch
          %6497 = sbr.rel (%p6495) target = $region68
        $region67: #{_lambda_.1} parent=63 // pred_region
          %s6498 = sand.u32 %s226, 1
          %s6499 = scalar_lea.sflag [#allocation4], %s6498
          %s6500 = sand.u32 %s226, 1
          %s6501 = smul.addr %s6500, 128
          %s6502 = scalar_lea.vmem [#allocation3], %s6501
          %6503 = dma.done %s6499, 2048
        $region68: #{_lambda_.1} parent=63 // pred_fallthru
          _
      $region64: #{_lambda_.1} parent=5 // pred_fallthru
        _
    $region6: #{_lambda_.1} parent=1 // loop_footer
      %s22 = sadd.s32 1, %s18
    $region7: #{_lambda_.1} parent=1 // loop_footer_branch
      %17 = sbr.rel target = $region3
    $region8: #{_lambda_.1} parent=1 // loop_exit
      _
    %6504 = vsyncpa [#allocation4], 1
    %s6505 = scalar_lea.sflag [#allocation4], 1
    %6506 = vsyncpa %s6505, 1

</llo_original>
